<compile_context>
chip_gen: v7x
topology: tpu7x:2x2x1
jax: 0.10.0
libtpu: 0.0.40
codegen_flags: <defaults>
</compile_context>

<pallas_src>
import jax
import jax.numpy as jnp
from jax.experimental import pallas as pl
from jax.experimental.pallas import tpu as pltpu

_BN_EPS = 1e-5    # PyTorch BatchNorm1d default eps
_HEAD_PAD = 128   # lane-dense padded width of the fused [t|q] head


def _concat_feat_regression_kernel(x1_ref, x2_ref, wp_ref, bp_ref, wh_ref, out_ref):
    """One grid step: (a column slice of) fc_pose + ReLU + fused heads.

    x1_ref, x2_ref : (N, S, C)   activations (C on lanes, spatial on sublanes)
    wp_ref         : (2C, Fs)    fc_pose weight, K-major, BN scale & 1/S folded in
    bp_ref         : (1, Fs)     fc_pose bias with BN shift folded in (f32)
    wh_ref         : (Fs, 128)   fused [t|q] head weight rows for this split
    out_ref        : (1, N, 128) partial head result (head bias added in wrapper)
    """
    # AvgPool2d(7, stride=1) on a 7x7 map == global spatial mean; the 1/S
    # factor is folded into wp, so a raw sublane sum suffices (f32 on the VPU).
    s1 = jnp.sum(x1_ref[...].astype(jnp.float32), axis=-2)   # (N, C)
    s2 = jnp.sum(x2_ref[...].astype(jnp.float32), axis=-2)   # (N, C)

    c = s1.shape[-1]
    wdt = wp_ref.dtype
    # Channel concat folded into the contraction; [:c]/[c:] are static,
    # tile-aligned views of the K-major weight. MXU operands in weight dtype
    # (bf16), accumulation in f32.
    h = (jnp.dot(s1.astype(wdt), wp_ref[:c, :], preferred_element_type=jnp.float32)
         + jnp.dot(s2.astype(wdt), wp_ref[c:, :], preferred_element_type=jnp.float32)
         + bp_ref[...])                                       # (N, Fs), f32
    h = jnp.maximum(h, 0.0)                                   # ReLU (BN already folded)

    res = jnp.dot(h.astype(wh_ref.dtype), wh_ref[...],
                  preferred_element_type=jnp.float32)         # (N, 128)
    out_ref[...] = res[None].astype(out_ref.dtype)


def prepare_params(params, *, spatial=49, weight_dtype=jnp.bfloat16):
    """One-time parameter folding. Call at load time, NOT per forward.

    * Linear weights transposed to K-major (in, out).
    * Eval-mode BatchNorm1d and the 1/spatial average-pool factor folded into
      the fc_pose weight/bias.
    * fc_t / fc_q fused into one zero-padded (F, 128) head weight (t in cols
      0:3, q in cols 3:7); head bias kept separate (added in the wrapper).
    * Large weights cast to `weight_dtype` (bf16 by default, MXU-native).
    """
    f = params["w_pose"].shape[0]                                      # 1024
    scale = params["bn_gamma"] * jax.lax.rsqrt(params["bn_var"] + _BN_EPS)
    shift = params["bn_beta"] - params["bn_mean"] * scale

    w_pose = (params["w_pose"].T * scale[None, :] / float(spatial)).astype(weight_dtype)
    b_pose = (params["b_pose"] * scale + shift).reshape(1, f).astype(jnp.float32)

    wh = jnp.concatenate([params["w_t"].T, params["w_q"].T], axis=1)   # (F, 7)
    n_out = wh.shape[1]
    w_heads = jnp.zeros((f, _HEAD_PAD), weight_dtype).at[:, :n_out].set(
        wh.astype(weight_dtype))
    b_heads = jnp.concatenate([params["b_t"], params["b_q"]]).astype(jnp.float32)

    return {"w_pose": w_pose, "b_pose": b_pose,
            "w_heads": w_heads, "b_heads": b_heads}


def concat_feat_regression(x1, x2, prepared, *, num_splits=1):
    """Pallas ConcatFeatRegression.forward (target='relapose'), eval-mode BN.

    `prepared` comes from prepare_params(). Set num_splits=2 on v7x so both
    TensorCores stream disjoint halves of the fc_pose weight ("parallel" grid
    axis); keep num_splits=1 on single-TensorCore chips (v5e/v6e).
    Outputs are f32 (matching PyTorch with f32 parameters).
    """
    n, c, hh, ww = x1.shape
    assert x2.shape == x1.shape
    # AvgPool2d(kernel=7, stride=1) reduces to a global mean only for 7x7 maps.
    assert hh == 7 and ww == 7, (hh, ww)
    s = hh * ww
    f = prepared["w_pose"].shape[0]
    assert f == 2 * c, (f, c)
    assert f % num_splits == 0 and (f // num_splits) % 128 == 0
    fs = f // num_splits
    nh = prepared["w_heads"].shape[1]

    # Lane-dense activation layout: C on lanes, spatial on sublanes.
    x1r = jnp.transpose(x1, (0, 2, 3, 1)).reshape(n, s, c)
    x2r = jnp.transpose(x2, (0, 2, 3, 1)).reshape(n, s, c)

    partial = pl.pallas_call(
        _concat_feat_regression_kernel,
        out_shape=jax.ShapeDtypeStruct((num_splits, n, nh), jnp.float32),
        grid_spec=pltpu.PrefetchScalarGridSpec(
            num_scalar_prefetch=0,
            grid=(num_splits,),
            in_specs=[
                pl.BlockSpec((n, s, c), lambda i: (0, 0, 0)),   # x1 (whole)
                pl.BlockSpec((n, s, c), lambda i: (0, 0, 0)),   # x2 (whole)
                pl.BlockSpec((f, fs), lambda i: (0, i)),        # fc_pose cols, split i
                pl.BlockSpec((1, fs), lambda i: (0, i)),        # fc_pose bias cols
                pl.BlockSpec((fs, nh), lambda i: (i, 0)),       # head rows, split i
            ],
            out_specs=pl.BlockSpec((1, n, nh), lambda i: (i, 0, 0)),
        ),
        compiler_params=pltpu.CompilerParams(
            dimension_semantics=("parallel",),
            # True double-buffered footprint is ~6 MiB with bf16 weights
            # (~10 MiB for the f32 test variant); 16 MiB leaves headroom on
            # every generation, including v7x's smaller VMEM.
            vmem_limit_bytes=16 * 1024 * 1024,
        ),
    )(x1r, x2r, prepared["w_pose"], prepared["b_pose"], prepared["w_heads"])

    heads = jnp.sum(partial, axis=0)          # (N, 128); sum of per-split partials
    b = prepared["b_heads"]                   # (7,)
    t = heads[:, 0:3] + b[0:3]
    q = heads[:, 3:7] + b[3:7]
    return t, q


def _concat_feat_regression_ref(x1, x2, params):
    """Pure-JAX reference replicating the PyTorch forward (BN in eval mode)."""
    p1 = jnp.mean(x1, axis=(2, 3))
    p2 = jnp.mean(x2, axis=(2, 3))
    x = jnp.concatenate([p1, p2], axis=1)
    h = x @ params["w_pose"].T + params["b_pose"]
    h = ((h - params["bn_mean"]) / jnp.sqrt(params["bn_var"] + _BN_EPS)
         * params["bn_gamma"] + params["bn_beta"])
    h = jnp.maximum(h, 0.0)
    t = h @ params["w_t"].T + params["b_t"]
    q = h @ params["w_q"].T + params["b_q"]
    return t, q


if __name__ == "__main__":
    # Shapes implied by the module: AvgPool2d(7,1) on 7x7 -> 1x1, and
    # Linear(1024, ...) after concat -> each input has 512 channels.
    N, C, H, W = 2, 512, 7, 7
    F = 2 * C
    bound = float(1.0 / (F ** 0.5))

    keys = jax.random.split(jax.random.PRNGKey(0), 12)
    uni = lambda k, shape: jax.random.uniform(k, shape, jnp.float32, -bound, bound)

    params = {
        "w_pose": uni(keys[0], (F, F)),
        "b_pose": uni(keys[1], (F,)),
        "bn_gamma": 1.0 + 0.1 * jax.random.normal(keys[2], (F,), jnp.float32),
        "bn_beta": 0.1 * jax.random.normal(keys[3], (F,), jnp.float32),
        "bn_mean": 0.1 * jax.random.normal(keys[4], (F,), jnp.float32),
        "bn_var": jax.random.uniform(keys[5], (F,), jnp.float32, 0.5, 1.5),
        "w_t": uni(keys[6], (3, F)),
        "b_t": uni(keys[7], (3,)),
        "w_q": uni(keys[8], (4, F)),
        "b_q": uni(keys[9], (4,)),
    }
    x1 = jax.random.normal(keys[10], (N, C, H, W), dtype=jnp.float32)
    x2 = jax.random.normal(keys[11], (N, C, H, W), dtype=jnp.float32)

    t_ref, q_ref = _concat_feat_regression_ref(x1, x2, params)

    # 1) f32-weight variant: kernel math (BN/pool fold, concat fold, fused
    #    heads) must match the reference tightly.
    prep_f32 = prepare_params(params, spatial=H * W, weight_dtype=jnp.float32)
    t, q = concat_feat_regression(x1, x2, prep_f32, num_splits=1)
    jax.block_until_ready((t, q))
    assert t.shape == (N, 3) and q.shape == (N, 4), (t.shape, q.shape)
    assert jnp.allclose(t, t_ref, atol=2e-4, rtol=2e-4), float(jnp.max(jnp.abs(t - t_ref)))
    assert jnp.allclose(q, q_ref, atol=2e-4, rtol=2e-4), float(jnp.max(jnp.abs(q - q_ref)))

    # 2) bf16-weight fast path (and the v7x two-TensorCore split): tolerance
    #    relaxed to account for bf16 weight/activation rounding (inference use).
    prep = prepare_params(params, spatial=H * W)   # bf16 weights
    for ns in (1, 2):
        t, q = concat_feat_regression(x1, x2, prep, num_splits=ns)
        jax.block_until_ready((t, q))
        assert t.shape == (N, 3) and q.shape == (N, 4), (t.shape, q.shape)
        assert jnp.allclose(t, t_ref, atol=1e-2, rtol=5e-2), (
            ns, float(jnp.max(jnp.abs(t - t_ref))))
        assert jnp.allclose(q, q_ref, atol=1e-2, rtol=5e-2), (
            ns, float(jnp.max(jnp.abs(q - q_ref))))

    print("KERNEL_OK")
</pallas_src>

<mosaic_0001>
module attributes {stable_mosaic.version = 11 : i64} {
  func.func @_concat_feat_regression_kernel(%arg0: i32, %arg1: memref<2x49x512xf32, #tpu.memory_space<vmem>>, %arg2: memref<2x49x512xf32, #tpu.memory_space<vmem>>, %arg3: memref<1024x1024xf32, #tpu.memory_space<vmem>>, %arg4: memref<1x1024xf32, #tpu.memory_space<vmem>>, %arg5: memref<1024x128xf32, #tpu.memory_space<vmem>>, %arg6: memref<1x2x128xf32, #tpu.memory_space<vmem>>) attributes {dimension_semantics = [#tpu.dimension_semantics<parallel>], iteration_bounds = array<i64: 1>, scalar_prefetch = 0 : i64, scratch_operands = 0 : i64, tpu.core_type = #tpu.core_type<tc>, window_params = [{pipeline_mode = #tpu.pipeline_mode<synchronous>, transform_indices = @transform_0, window_bounds = array<i64: 2, 49, 512>}, {pipeline_mode = #tpu.pipeline_mode<synchronous>, transform_indices = @transform_1, window_bounds = array<i64: 2, 49, 512>}, {transform_indices = @transform_2, window_bounds = array<i64: 1024, 1024>}, {transform_indices = @transform_3, window_bounds = array<i64: 1, 1024>}, {transform_indices = @transform_4, window_bounds = array<i64: 1024, 128>}, {transform_indices = @transform_5, window_bounds = array<i64: 1, 2, 128>}]} {
    %c0 = arith.constant 0 : index
    %c0_0 = arith.constant 0 : index
    %c0_1 = arith.constant 0 : index
    %0 = vector.load %arg1[%c0, %c0_0, %c0_1] : memref<2x49x512xf32, #tpu.memory_space<vmem>>, vector<2x49x512xf32>
    %cst = arith.constant dense<0.000000e+00> : vector<2x512xf32>
    %1 = vector.multi_reduction <add>, %0, %cst [1] : vector<2x49x512xf32> to vector<2x512xf32>
    %c0_2 = arith.constant 0 : index
    %c0_3 = arith.constant 0 : index
    %c0_4 = arith.constant 0 : index
    %2 = vector.load %arg2[%c0_2, %c0_3, %c0_4] : memref<2x49x512xf32, #tpu.memory_space<vmem>>, vector<2x49x512xf32>
    %cst_5 = arith.constant dense<0.000000e+00> : vector<2x512xf32>
    %3 = vector.multi_reduction <add>, %2, %cst_5 [1] : vector<2x49x512xf32> to vector<2x512xf32>
    %c0_6 = arith.constant 0 : index
    %c0_7 = arith.constant 0 : index
    %4 = vector.load %arg3[%c0_6, %c0_7] : memref<1024x1024xf32, #tpu.memory_space<vmem>>, vector<512x1024xf32>
    %cst_8 = arith.constant dense<0.000000e+00> : vector<2x1024xf32>
    %5 = tpu.matmul %1, %4, %cst_8 {dimension_numbers = #tpu.dot_dimension_numbers<[1], [0], [0], [1], [0, 0, 1, 1], [], []>} : vector<2x512xf32>, vector<512x1024xf32>, vector<2x1024xf32> -> vector<2x1024xf32>
    %c512 = arith.constant 512 : index
    %c0_9 = arith.constant 0 : index
    %6 = vector.load %arg3[%c512, %c0_9] : memref<1024x1024xf32, #tpu.memory_space<vmem>>, vector<512x1024xf32>
    %cst_10 = arith.constant dense<0.000000e+00> : vector<2x1024xf32>
    %7 = tpu.matmul %3, %6, %cst_10 {dimension_numbers = #tpu.dot_dimension_numbers<[1], [0], [0], [1], [0, 0, 1, 1], [], []>} : vector<2x512xf32>, vector<512x1024xf32>, vector<2x1024xf32> -> vector<2x1024xf32>
    %8 = arith.addf %5, %7 : vector<2x1024xf32>
    %c0_11 = arith.constant 0 : index
    %c0_12 = arith.constant 0 : index
    %9 = vector.load %arg4[%c0_11, %c0_12] : memref<1x1024xf32, #tpu.memory_space<vmem>>, vector<1x1024xf32>
    %10 = vector.broadcast %9 : vector<1x1024xf32> to vector<2x1024xf32>
    %11 = arith.addf %8, %10 : vector<2x1024xf32>
    %cst_13 = arith.constant 0.000000e+00 : f32
    %12 = vector.broadcast %cst_13 : f32 to vector<2x1024xf32>
    %13 = arith.maximumf %11, %12 : vector<2x1024xf32>
    %c0_14 = arith.constant 0 : index
    %c0_15 = arith.constant 0 : index
    %14 = vector.load %arg5[%c0_14, %c0_15] : memref<1024x128xf32, #tpu.memory_space<vmem>>, vector<1024x128xf32>
    %cst_16 = arith.constant dense<0.000000e+00> : vector<2x128xf32>
    %15 = tpu.matmul %13, %14, %cst_16 {dimension_numbers = #tpu.dot_dimension_numbers<[1], [0], [0], [1], [0, 0, 1, 1], [], []>} : vector<2x1024xf32>, vector<1024x128xf32>, vector<2x128xf32> -> vector<2x128xf32>
    %16 = vector.shape_cast %15 : vector<2x128xf32> to vector<1x2x128xf32>
    %c0_17 = arith.constant 0 : index
    %c0_18 = arith.constant 0 : index
    %c0_19 = arith.constant 0 : index
    %17 = vector.load %arg6[%c0_17, %c0_18, %c0_19] : memref<1x2x128xf32, #tpu.memory_space<vmem>>, vector<1x2x128xf32>
    tpu.vector_store %arg6[%c0_17, %c0_18, %c0_19], %16 {strides = array<i32>} : memref<1x2x128xf32, #tpu.memory_space<vmem>>, vector<1x2x128xf32>,
    return
  }
  func.func @transform_0(%arg0: i32) -> (i32, i32, i32) {
    %c0_i32 = arith.constant 0 : i32
    %c0_i32_0 = arith.constant 0 : i32
    %c0_i32_1 = arith.constant 0 : i32
    %c0_i32_2 = arith.constant 0 : i32
    return %c0_i32, %c0_i32_0, %c0_i32_1 : i32, i32, i32
  }
  func.func @transform_1(%arg0: i32) -> (i32, i32, i32) {
    %c0_i32 = arith.constant 0 : i32
    %c0_i32_0 = arith.constant 0 : i32
    %c0_i32_1 = arith.constant 0 : i32
    %c0_i32_2 = arith.constant 0 : i32
    return %c0_i32, %c0_i32_0, %c0_i32_1 : i32, i32, i32
  }
  func.func @transform_2(%arg0: i32) -> (i32, i32) {
    %c0_i32 = arith.constant 0 : i32
    %c0_i32_0 = arith.constant 0 : i32
    return %c0_i32, %arg0 : i32, i32
  }
  func.func @transform_3(%arg0: i32) -> (i32, i32) {
    %c0_i32 = arith.constant 0 : i32
    %c0_i32_0 = arith.constant 0 : i32
    return %c0_i32, %arg0 : i32, i32
  }
  func.func @transform_4(%arg0: i32) -> (i32, i32) {
    %c0_i32 = arith.constant 0 : i32
    %c0_i32_0 = arith.constant 0 : i32
    return %arg0, %c0_i32 : i32, i32
  }
  func.func @transform_5(%arg0: i32) -> (i32, i32, i32) {
    %c0_i32 = arith.constant 0 : i32
    %c0_i32_0 = arith.constant 0 : i32
    %c0_i32_1 = arith.constant 0 : i32
    return %arg0, %c0_i32, %c0_i32_0 : i32, i32, i32
  }
}

</mosaic_0001>

<llo_original>
// kernel: tpu_custom_call.1
$region0: #{tpu_custom_call.1}
  #allocation0 [shape = 'u32[]', space=smem, size = 0x4, offset = 0x4, fixed_abs, tag = 'smem constant byte address 0x4 - core index']
  #allocation1 [shape = 'u32[144,128]{1,0:T(1,128)}', space=vmem, size = 0x12000, scoped, tag = 'internal scratch']
  %s0 = inlined_call_operand.vmem [shape: f32[2,49,512], index: 0, kind: input, shape index: {}]
  %s1 = inlined_call_operand.vmem [shape: f32[2,49,512], index: 1, kind: input, shape index: {}]
  %s2 = inlined_call_operand.hbm [shape: f32[1024,1024], index: 2, kind: input, shape index: {}]
  %s3 = inlined_call_operand.hbm [shape: f32[1,1024], index: 3, kind: input, shape index: {}]
  %s4 = inlined_call_operand.hbm [shape: f32[1024,128], index: 4, kind: input, shape index: {}]
  %s5 = inlined_call_operand.hbm [shape: f32[1,2,128], index: 5, kind: output, shape index: {}]
  %s6 = sld [smem:[#allocation0]]
  $region42: #{tpu_custom_call.1} parent=0
    _
  %s8 = ssub.s32 1, %s6
  %s9 = scalar_select 0, %s8, %s6
  $region1: #{tpu_custom_call.1} parent=0
    #allocation2 [shape = 'u8[4194304]{0}', space=vmem, size = 0x400000, scoped, tag = 'input window, operand 2, single buffered']
    #allocation3 [shape = 's32[1]{0}', space=sflag, size = 0x4, scoped, tag = 'scoped memory for tpu_custom_call.1']
    #allocation4 [shape = 's32[1]{0}', space=sflag, size = 0x4, scoped, tag = 'scoped memory for tpu_custom_call.1']
    #allocation5 [shape = 'u8[4096]{0}', space=vmem, size = 0x1000, scoped, tag = 'input window, operand 3, single buffered']
    #allocation6 [shape = 's32[1]{0}', space=sflag, size = 0x4, scoped, tag = 'scoped memory for tpu_custom_call.1']
    #allocation7 [shape = 'u8[524288]{0}', space=vmem, size = 0x80000, scoped, tag = 'input window, operand 4, single buffered']
    #allocation8 [shape = 'u8[1024]{0}', space=vmem, size = 0x400, scoped, tag = 'output window, operand 0, single buffered']
    %10 = vsyncpa [#allocation3], 0
    %11 = vsyncpa [#allocation6], 0
    %12 = vsyncpa [#allocation4], 0
    // Predicated region
    $region2: #{tpu_custom_call.1} parent=1 // pred_check
      _
    $region3: #{tpu_custom_call.1} parent=1 // pred_check_branch
      %14 = sbr.rel (0) target = $region5
    $region4: #{tpu_custom_call.1} parent=1 // pred_region
      _
    $region5: #{tpu_custom_call.1} parent=1 // pred_fallthru
      _
    // Predicated region
    $region6: #{tpu_custom_call.1} parent=1 // pred_check
      _
    $region7: #{tpu_custom_call.1} parent=1 // pred_check_branch
      %16 = sbr.rel (0) target = $region9
    $region8: #{tpu_custom_call.1} parent=1 // pred_region
      _
    $region9: #{tpu_custom_call.1} parent=1 // pred_fallthru
      _
    // Predicated region
    $region10: #{tpu_custom_call.1} parent=1 // pred_check
      _
    $region11: #{tpu_custom_call.1} parent=1 // pred_check_branch
      %18 = sbr.rel (0) target = $region13
    $region12: #{tpu_custom_call.1} parent=1 // pred_region
      %s20 = ssub.s32 131072, 131072
      %21 = vsyncadd [#allocation3], %s20
      %s22 = sshll.u32 [#allocation2], 4
      %s23 = int_to_ptr.vmem [resolvable:$true] %s22
      %28 = dma.hbm_to_vmem [thread:$0]  %s2, 131072, %s23, [#allocation3], 1024, 1024, 64
    $region13: #{tpu_custom_call.1} parent=1 // pred_fallthru
      _
    // Predicated region
    $region14: #{tpu_custom_call.1} parent=1 // pred_check
      _
    $region15: #{tpu_custom_call.1} parent=1 // pred_check_branch
      %30 = sbr.rel (0) target = $region17
    $region16: #{tpu_custom_call.1} parent=1 // pred_region
      %s32 = ssub.s32 128, 128
      %33 = vsyncadd [#allocation6], %s32
      %s35 = sshll.u32 [#allocation5], 4
      %s36 = int_to_ptr.vmem [resolvable:$true] %s35
      %38 = dma.hbm_to_vmem [thread:$0]  %s3, 128, %s36, [#allocation6]
    $region17: #{tpu_custom_call.1} parent=1 // pred_fallthru
      _
    // Predicated region
    $region18: #{tpu_custom_call.1} parent=1 // pred_check
      _
    $region19: #{tpu_custom_call.1} parent=1 // pred_check_branch
      %40 = sbr.rel (0) target = $region21
    $region20: #{tpu_custom_call.1} parent=1 // pred_region
      %s42 = ssub.s32 16384, 16384
      %43 = vsyncadd [#allocation6], %s42
      %s44 = sshll.u32 [#allocation7], 4
      %s45 = int_to_ptr.vmem [resolvable:$true] %s44
      %50 = dma.hbm_to_vmem [thread:$0]  %s4, 16384, %s45, [#allocation6], 128, 128, 8
    $region21: #{tpu_custom_call.1} parent=1 // pred_fallthru
      _
    // Predicated region
    $region22: #{tpu_custom_call.1} parent=1 // pred_check
      _
    $region23: #{tpu_custom_call.1} parent=1 // pred_check_branch
      %52 = sbr.rel (0) target = $region25
    $region24: #{tpu_custom_call.1} parent=1 // pred_region
      %53 = dma.done [#allocation3], 131072
    $region25: #{tpu_custom_call.1} parent=1 // pred_fallthru
      _
    // Predicated region
    $region26: #{tpu_custom_call.1} parent=1 // pred_check
      _
    $region27: #{tpu_custom_call.1} parent=1 // pred_check_branch
      %55 = sbr.rel (0) target = $region29
    $region28: #{tpu_custom_call.1} parent=1 // pred_region
      %56 = dma.done [#allocation6], 128
    $region29: #{tpu_custom_call.1} parent=1 // pred_fallthru
      _
    // Predicated region
    $region30: #{tpu_custom_call.1} parent=1 // pred_check
      _
    $region31: #{tpu_custom_call.1} parent=1 // pred_check_branch
      %58 = sbr.rel (0) target = $region33
    $region32: #{tpu_custom_call.1} parent=1 // pred_region
      %59 = dma.done [#allocation6], 16384
    $region33: #{tpu_custom_call.1} parent=1 // pred_fallthru
      _
    %v60 = vld [vmem:[%s0] sm:$0xff]
    %v61 = vld [vmem:[%s0 + $0x8] sm:$0xff]
    %v62 = vld [vmem:[%s0 + $0x10] sm:$0xff]
    %v63 = vld [vmem:[%s0 + $0x18] sm:$0xff]
    %v64 = vld [vmem:[%s0 + $0x20] sm:$0xff]
    %v65 = vld [vmem:[%s0 + $0x28] sm:$0xff]
    %v66 = vld [vmem:[%s0 + $0x30] sm:$0xff]
    %v67 = vld [vmem:[%s0 + $0x38] sm:$0xff]
    %v68 = vld [vmem:[%s0 + $0x40] sm:$0xff]
    %v69 = vld [vmem:[%s0 + $0x48] sm:$0xff]
    %v70 = vld [vmem:[%s0 + $0x50] sm:$0xff]
    %v71 = vld [vmem:[%s0 + $0x58] sm:$0xff]
    %v72 = vld [vmem:[%s0 + $0x60] sm:$0xff]
    %v73 = vld [vmem:[%s0 + $0x68] sm:$0xff]
    %v74 = vld [vmem:[%s0 + $0x70] sm:$0xff]
    %v75 = vld [vmem:[%s0 + $0x78] sm:$0xff]
    %v76 = vld [vmem:[%s0 + $0x80] sm:$0xff]
    %v77 = vld [vmem:[%s0 + $0x88] sm:$0xff]
    %v78 = vld [vmem:[%s0 + $0x90] sm:$0xff]
    %v79 = vld [vmem:[%s0 + $0x98] sm:$0xff]
    %v80 = vld [vmem:[%s0 + $0xa0] sm:$0xff]
    %v81 = vld [vmem:[%s0 + $0xa8] sm:$0xff]
    %v82 = vld [vmem:[%s0 + $0xb0] sm:$0xff]
    %v83 = vld [vmem:[%s0 + $0xb8] sm:$0xff]
    %v84 = vld [vmem:[%s0 + $0xc0] sm:$0x1]
    %v85 = vld [vmem:[%s0 + $0xc8] sm:$0x1]
    %v86 = vld [vmem:[%s0 + $0xd0] sm:$0x1]
    %v87 = vld [vmem:[%s0 + $0xd8] sm:$0x1]
    %v88 = vld [vmem:[%s0 + $0xe0] sm:$0xff]
    %v89 = vld [vmem:[%s0 + $0xe8] sm:$0xff]
    %v90 = vld [vmem:[%s0 + $0xf0] sm:$0xff]
    %v91 = vld [vmem:[%s0 + $0xf8] sm:$0xff]
    %v92 = vld [vmem:[%s0 + $0x100] sm:$0xff]
    %v93 = vld [vmem:[%s0 + $0x108] sm:$0xff]
    %v94 = vld [vmem:[%s0 + $0x110] sm:$0xff]
    %v95 = vld [vmem:[%s0 + $0x118] sm:$0xff]
    %v96 = vld [vmem:[%s0 + $0x120] sm:$0xff]
    %v97 = vld [vmem:[%s0 + $0x128] sm:$0xff]
    %v98 = vld [vmem:[%s0 + $0x130] sm:$0xff]
    %v99 = vld [vmem:[%s0 + $0x138] sm:$0xff]
    %v100 = vld [vmem:[%s0 + $0x140] sm:$0xff]
    %v101 = vld [vmem:[%s0 + $0x148] sm:$0xff]
    %v102 = vld [vmem:[%s0 + $0x150] sm:$0xff]
    %v103 = vld [vmem:[%s0 + $0x158] sm:$0xff]
    %v104 = vld [vmem:[%s0 + $0x160] sm:$0xff]
    %v105 = vld [vmem:[%s0 + $0x168] sm:$0xff]
    %v106 = vld [vmem:[%s0 + $0x170] sm:$0xff]
    %v107 = vld [vmem:[%s0 + $0x178] sm:$0xff]
    %v108 = vld [vmem:[%s0 + $0x180] sm:$0xff]
    %v109 = vld [vmem:[%s0 + $0x188] sm:$0xff]
    %v110 = vld [vmem:[%s0 + $0x190] sm:$0xff]
    %v111 = vld [vmem:[%s0 + $0x198] sm:$0xff]
    %v112 = vld [vmem:[%s0 + $0x1a0] sm:$0x1]
    %v113 = vld [vmem:[%s0 + $0x1a8] sm:$0x1]
    %v114 = vld [vmem:[%s0 + $0x1b0] sm:$0x1]
    %v115 = vld [vmem:[%s0 + $0x1b8] sm:$0x1]
    %v116 = vadd.f32 %v60, %v64
    %v117 = vadd.f32 %v116, %v68
    %v118 = vadd.f32 %v117, %v72
    %v119 = vadd.f32 %v118, %v76
    %v120 = vadd.f32 %v119, %v80
    %vm121 = vcmask 1040384
    %v122 = vsel %vm121, %v84, 0.0
    %v123 = vadd.f32 %v120, %v122
    %v124 = vrot.slane %v123, 4
    %v125 = vadd.f32 %v123, %v124
    %v126 = vrot.slane %v125, 2
    %v127 = vadd.f32 %v125, %v126
    %v128 = vrot.slane %v127, 1
    %v129 = vadd.f32 %v127, %v128
    %v130 = vadd.f32 %v61, %v65
    %v131 = vadd.f32 %v130, %v69
    %v132 = vadd.f32 %v131, %v73
    %v133 = vadd.f32 %v132, %v77
    %v134 = vadd.f32 %v133, %v81
    %v135 = vsel %vm121, %v85, 0.0
    %v136 = vadd.f32 %v134, %v135
    %v137 = vrot.slane %v136, 4
    %v138 = vadd.f32 %v136, %v137
    %v139 = vrot.slane %v138, 2
    %v140 = vadd.f32 %v138, %v139
    %v141 = vrot.slane %v140, 1
    %v142 = vadd.f32 %v140, %v141
    %v143 = vadd.f32 %v62, %v66
    %v144 = vadd.f32 %v143, %v70
    %v145 = vadd.f32 %v144, %v74
    %v146 = vadd.f32 %v145, %v78
    %v147 = vadd.f32 %v146, %v82
    %v148 = vsel %vm121, %v86, 0.0
    %v149 = vadd.f32 %v147, %v148
    %v150 = vrot.slane %v149, 4
    %v151 = vadd.f32 %v149, %v150
    %v152 = vrot.slane %v151, 2
    %v153 = vadd.f32 %v151, %v152
    %v154 = vrot.slane %v153, 1
    %v155 = vadd.f32 %v153, %v154
    %v156 = vadd.f32 %v63, %v67
    %v157 = vadd.f32 %v156, %v71
    %v158 = vadd.f32 %v157, %v75
    %v159 = vadd.f32 %v158, %v79
    %v160 = vadd.f32 %v159, %v83
    %v161 = vsel %vm121, %v87, 0.0
    %v162 = vadd.f32 %v160, %v161
    %v163 = vrot.slane %v162, 4
    %v164 = vadd.f32 %v162, %v163
    %v165 = vrot.slane %v164, 2
    %v166 = vadd.f32 %v164, %v165
    %v167 = vrot.slane %v166, 1
    %v168 = vadd.f32 %v166, %v167
    %v169 = vadd.f32 %v88, %v92
    %v170 = vadd.f32 %v169, %v96
    %v171 = vadd.f32 %v170, %v100
    %v172 = vadd.f32 %v171, %v104
    %v173 = vadd.f32 %v172, %v108
    %v174 = vsel %vm121, %v112, 0.0
    %v175 = vadd.f32 %v173, %v174
    %v176 = vrot.slane %v175, 4
    %v177 = vadd.f32 %v175, %v176
    %v178 = vrot.slane %v177, 2
    %v179 = vadd.f32 %v177, %v178
    %v180 = vrot.slane %v179, 1
    %v181 = vadd.f32 %v179, %v180
    %v182 = vadd.f32 %v89, %v93
    %v183 = vadd.f32 %v182, %v97
    %v184 = vadd.f32 %v183, %v101
    %v185 = vadd.f32 %v184, %v105
    %v186 = vadd.f32 %v185, %v109
    %v187 = vsel %vm121, %v113, 0.0
    %v188 = vadd.f32 %v186, %v187
    %v189 = vrot.slane %v188, 4
    %v190 = vadd.f32 %v188, %v189
    %v191 = vrot.slane %v190, 2
    %v192 = vadd.f32 %v190, %v191
    %v193 = vrot.slane %v192, 1
    %v194 = vadd.f32 %v192, %v193
    %v195 = vadd.f32 %v90, %v94
    %v196 = vadd.f32 %v195, %v98
    %v197 = vadd.f32 %v196, %v102
    %v198 = vadd.f32 %v197, %v106
    %v199 = vadd.f32 %v198, %v110
    %v200 = vsel %vm121, %v114, 0.0
    %v201 = vadd.f32 %v199, %v200
    %v202 = vrot.slane %v201, 4
    %v203 = vadd.f32 %v201, %v202
    %v204 = vrot.slane %v203, 2
    %v205 = vadd.f32 %v203, %v204
    %v206 = vrot.slane %v205, 1
    %v207 = vadd.f32 %v205, %v206
    %v208 = vadd.f32 %v91, %v95
    %v209 = vadd.f32 %v208, %v99
    %v210 = vadd.f32 %v209, %v103
    %v211 = vadd.f32 %v210, %v107
    %v212 = vadd.f32 %v211, %v111
    %v213 = vsel %vm121, %v115, 0.0
    %v214 = vadd.f32 %v212, %v213
    %v215 = vrot.slane %v214, 4
    %v216 = vadd.f32 %v214, %v215
    %v217 = vrot.slane %v216, 2
    %v218 = vadd.f32 %v216, %v217
    %v219 = vrot.slane %v218, 1
    %v220 = vadd.f32 %v218, %v219
    %v221 = vld [vmem:[%s1] sm:$0xff]
    %v222 = vld [vmem:[%s1 + $0x8] sm:$0xff]
    %v223 = vld [vmem:[%s1 + $0x10] sm:$0xff]
    %v224 = vld [vmem:[%s1 + $0x18] sm:$0xff]
    %v225 = vld [vmem:[%s1 + $0x20] sm:$0xff]
    %v226 = vld [vmem:[%s1 + $0x28] sm:$0xff]
    %v227 = vld [vmem:[%s1 + $0x30] sm:$0xff]
    %v228 = vld [vmem:[%s1 + $0x38] sm:$0xff]
    %v229 = vld [vmem:[%s1 + $0x40] sm:$0xff]
    %v230 = vld [vmem:[%s1 + $0x48] sm:$0xff]
    %v231 = vld [vmem:[%s1 + $0x50] sm:$0xff]
    %v232 = vld [vmem:[%s1 + $0x58] sm:$0xff]
    %v233 = vld [vmem:[%s1 + $0x60] sm:$0xff]
    %v234 = vld [vmem:[%s1 + $0x68] sm:$0xff]
    %v235 = vld [vmem:[%s1 + $0x70] sm:$0xff]
    %v236 = vld [vmem:[%s1 + $0x78] sm:$0xff]
    %v237 = vld [vmem:[%s1 + $0x80] sm:$0xff]
    %v238 = vld [vmem:[%s1 + $0x88] sm:$0xff]
    %v239 = vld [vmem:[%s1 + $0x90] sm:$0xff]
    %v240 = vld [vmem:[%s1 + $0x98] sm:$0xff]
    %v241 = vld [vmem:[%s1 + $0xa0] sm:$0xff]
    %v242 = vld [vmem:[%s1 + $0xa8] sm:$0xff]
    %v243 = vld [vmem:[%s1 + $0xb0] sm:$0xff]
    %v244 = vld [vmem:[%s1 + $0xb8] sm:$0xff]
    %v245 = vld [vmem:[%s1 + $0xc0] sm:$0x1]
    %v246 = vld [vmem:[%s1 + $0xc8] sm:$0x1]
    %v247 = vld [vmem:[%s1 + $0xd0] sm:$0x1]
    %v248 = vld [vmem:[%s1 + $0xd8] sm:$0x1]
    %v249 = vld [vmem:[%s1 + $0xe0] sm:$0xff]
    %v250 = vld [vmem:[%s1 + $0xe8] sm:$0xff]
    %v251 = vld [vmem:[%s1 + $0xf0] sm:$0xff]
    %v252 = vld [vmem:[%s1 + $0xf8] sm:$0xff]
    %v253 = vld [vmem:[%s1 + $0x100] sm:$0xff]
    %v254 = vld [vmem:[%s1 + $0x108] sm:$0xff]
    %v255 = vld [vmem:[%s1 + $0x110] sm:$0xff]
    %v256 = vld [vmem:[%s1 + $0x118] sm:$0xff]
    %v257 = vld [vmem:[%s1 + $0x120] sm:$0xff]
    %v258 = vld [vmem:[%s1 + $0x128] sm:$0xff]
    %v259 = vld [vmem:[%s1 + $0x130] sm:$0xff]
    %v260 = vld [vmem:[%s1 + $0x138] sm:$0xff]
    %v261 = vld [vmem:[%s1 + $0x140] sm:$0xff]
    %v262 = vld [vmem:[%s1 + $0x148] sm:$0xff]
    %v263 = vld [vmem:[%s1 + $0x150] sm:$0xff]
    %v264 = vld [vmem:[%s1 + $0x158] sm:$0xff]
    %v265 = vld [vmem:[%s1 + $0x160] sm:$0xff]
    %v266 = vld [vmem:[%s1 + $0x168] sm:$0xff]
    %v267 = vld [vmem:[%s1 + $0x170] sm:$0xff]
    %v268 = vld [vmem:[%s1 + $0x178] sm:$0xff]
    %v269 = vld [vmem:[%s1 + $0x180] sm:$0xff]
    %v270 = vld [vmem:[%s1 + $0x188] sm:$0xff]
    %v271 = vld [vmem:[%s1 + $0x190] sm:$0xff]
    %v272 = vld [vmem:[%s1 + $0x198] sm:$0xff]
    %v273 = vld [vmem:[%s1 + $0x1a0] sm:$0x1]
    %v274 = vld [vmem:[%s1 + $0x1a8] sm:$0x1]
    %v275 = vld [vmem:[%s1 + $0x1b0] sm:$0x1]
    %v276 = vld [vmem:[%s1 + $0x1b8] sm:$0x1]
    %v277 = vadd.f32 %v221, %v225
    %v278 = vadd.f32 %v277, %v229
    %v279 = vadd.f32 %v278, %v233
    %v280 = vadd.f32 %v279, %v237
    %v281 = vadd.f32 %v280, %v241
    %v282 = vsel %vm121, %v245, 0.0
    %v283 = vadd.f32 %v281, %v282
    %v284 = vrot.slane %v283, 4
    %v285 = vadd.f32 %v283, %v284
    %v286 = vrot.slane %v285, 2
    %v287 = vadd.f32 %v285, %v286
    %v288 = vrot.slane %v287, 1
    %v289 = vadd.f32 %v287, %v288
    %v290 = vadd.f32 %v222, %v226
    %v291 = vadd.f32 %v290, %v230
    %v292 = vadd.f32 %v291, %v234
    %v293 = vadd.f32 %v292, %v238
    %v294 = vadd.f32 %v293, %v242
    %v295 = vsel %vm121, %v246, 0.0
    %v296 = vadd.f32 %v294, %v295
    %v297 = vrot.slane %v296, 4
    %v298 = vadd.f32 %v296, %v297
    %v299 = vrot.slane %v298, 2
    %v300 = vadd.f32 %v298, %v299
    %v301 = vrot.slane %v300, 1
    %v302 = vadd.f32 %v300, %v301
    %v303 = vadd.f32 %v223, %v227
    %v304 = vadd.f32 %v303, %v231
    %v305 = vadd.f32 %v304, %v235
    %v306 = vadd.f32 %v305, %v239
    %v307 = vadd.f32 %v306, %v243
    %v308 = vsel %vm121, %v247, 0.0
    %v309 = vadd.f32 %v307, %v308
    %v310 = vrot.slane %v309, 4
    %v311 = vadd.f32 %v309, %v310
    %v312 = vrot.slane %v311, 2
    %v313 = vadd.f32 %v311, %v312
    %v314 = vrot.slane %v313, 1
    %v315 = vadd.f32 %v313, %v314
    %v316 = vadd.f32 %v224, %v228
    %v317 = vadd.f32 %v316, %v232
    %v318 = vadd.f32 %v317, %v236
    %v319 = vadd.f32 %v318, %v240
    %v320 = vadd.f32 %v319, %v244
    %v321 = vsel %vm121, %v248, 0.0
    %v322 = vadd.f32 %v320, %v321
    %v323 = vrot.slane %v322, 4
    %v324 = vadd.f32 %v322, %v323
    %v325 = vrot.slane %v324, 2
    %v326 = vadd.f32 %v324, %v325
    %v327 = vrot.slane %v326, 1
    %v328 = vadd.f32 %v326, %v327
    %v329 = vadd.f32 %v249, %v253
    %v330 = vadd.f32 %v329, %v257
    %v331 = vadd.f32 %v330, %v261
    %v332 = vadd.f32 %v331, %v265
    %v333 = vadd.f32 %v332, %v269
    %v334 = vsel %vm121, %v273, 0.0
    %v335 = vadd.f32 %v333, %v334
    %v336 = vrot.slane %v335, 4
    %v337 = vadd.f32 %v335, %v336
    %v338 = vrot.slane %v337, 2
    %v339 = vadd.f32 %v337, %v338
    %v340 = vrot.slane %v339, 1
    %v341 = vadd.f32 %v339, %v340
    %v342 = vadd.f32 %v250, %v254
    %v343 = vadd.f32 %v342, %v258
    %v344 = vadd.f32 %v343, %v262
    %v345 = vadd.f32 %v344, %v266
    %v346 = vadd.f32 %v345, %v270
    %v347 = vsel %vm121, %v274, 0.0
    %v348 = vadd.f32 %v346, %v347
    %v349 = vrot.slane %v348, 4
    %v350 = vadd.f32 %v348, %v349
    %v351 = vrot.slane %v350, 2
    %v352 = vadd.f32 %v350, %v351
    %v353 = vrot.slane %v352, 1
    %v354 = vadd.f32 %v352, %v353
    %v355 = vadd.f32 %v251, %v255
    %v356 = vadd.f32 %v355, %v259
    %v357 = vadd.f32 %v356, %v263
    %v358 = vadd.f32 %v357, %v267
    %v359 = vadd.f32 %v358, %v271
    %v360 = vsel %vm121, %v275, 0.0
    %v361 = vadd.f32 %v359, %v360
    %v362 = vrot.slane %v361, 4
    %v363 = vadd.f32 %v361, %v362
    %v364 = vrot.slane %v363, 2
    %v365 = vadd.f32 %v363, %v364
    %v366 = vrot.slane %v365, 1
    %v367 = vadd.f32 %v365, %v366
    %v368 = vadd.f32 %v252, %v256
    %v369 = vadd.f32 %v368, %v260
    %v370 = vadd.f32 %v369, %v264
    %v371 = vadd.f32 %v370, %v268
    %v372 = vadd.f32 %v371, %v272
    %v373 = vsel %vm121, %v276, 0.0
    %v374 = vadd.f32 %v372, %v373
    %v375 = vrot.slane %v374, 4
    %v376 = vadd.f32 %v374, %v375
    %v377 = vrot.slane %v376, 2
    %v378 = vadd.f32 %v376, %v377
    %v379 = vrot.slane %v378, 1
    %v380 = vadd.f32 %v378, %v379
    %v381 = vld [vmem:[#allocation2] sm:$0xff]
    %v382 = vld [vmem:[#allocation2 + $0x8] sm:$0xff]
    %v383 = vld [vmem:[#allocation2 + $0x10] sm:$0xff]
    %v384 = vld [vmem:[#allocation2 + $0x18] sm:$0xff]
    %v385 = vld [vmem:[#allocation2 + $0x20] sm:$0xff]
    %v386 = vld [vmem:[#allocation2 + $0x28] sm:$0xff]
    %v387 = vld [vmem:[#allocation2 + $0x30] sm:$0xff]
    %v388 = vld [vmem:[#allocation2 + $0x38] sm:$0xff]
    %v389 = vld [vmem:[#allocation2 + $0x40] sm:$0xff]
    %v390 = vld [vmem:[#allocation2 + $0x48] sm:$0xff]
    %v391 = vld [vmem:[#allocation2 + $0x50] sm:$0xff]
    %v392 = vld [vmem:[#allocation2 + $0x58] sm:$0xff]
    %v393 = vld [vmem:[#allocation2 + $0x60] sm:$0xff]
    %v394 = vld [vmem:[#allocation2 + $0x68] sm:$0xff]
    %v395 = vld [vmem:[#allocation2 + $0x70] sm:$0xff]
    %v396 = vld [vmem:[#allocation2 + $0x78] sm:$0xff]
    %v397 = vld [vmem:[#allocation2 + $0x80] sm:$0xff]
    %v398 = vld [vmem:[#allocation2 + $0x88] sm:$0xff]
    %v399 = vld [vmem:[#allocation2 + $0x90] sm:$0xff]
    %v400 = vld [vmem:[#allocation2 + $0x98] sm:$0xff]
    %v401 = vld [vmem:[#allocation2 + $0xa0] sm:$0xff]
    %v402 = vld [vmem:[#allocation2 + $0xa8] sm:$0xff]
    %v403 = vld [vmem:[#allocation2 + $0xb0] sm:$0xff]
    %v404 = vld [vmem:[#allocation2 + $0xb8] sm:$0xff]
    %v405 = vld [vmem:[#allocation2 + $0xc0] sm:$0xff]
    %v406 = vld [vmem:[#allocation2 + $0xc8] sm:$0xff]
    %v407 = vld [vmem:[#allocation2 + $0xd0] sm:$0xff]
    %v408 = vld [vmem:[#allocation2 + $0xd8] sm:$0xff]
    %v409 = vld [vmem:[#allocation2 + $0xe0] sm:$0xff]
    %v410 = vld [vmem:[#allocation2 + $0xe8] sm:$0xff]
    %v411 = vld [vmem:[#allocation2 + $0xf0] sm:$0xff]
    %v412 = vld [vmem:[#allocation2 + $0xf8] sm:$0xff]
    %v413 = vld [vmem:[#allocation2 + $0x100] sm:$0xff]
    %v414 = vld [vmem:[#allocation2 + $0x108] sm:$0xff]
    %v415 = vld [vmem:[#allocation2 + $0x110] sm:$0xff]
    %v416 = vld [vmem:[#allocation2 + $0x118] sm:$0xff]
    %v417 = vld [vmem:[#allocation2 + $0x120] sm:$0xff]
    %v418 = vld [vmem:[#allocation2 + $0x128] sm:$0xff]
    %v419 = vld [vmem:[#allocation2 + $0x130] sm:$0xff]
    %v420 = vld [vmem:[#allocation2 + $0x138] sm:$0xff]
    %v421 = vld [vmem:[#allocation2 + $0x140] sm:$0xff]
    %v422 = vld [vmem:[#allocation2 + $0x148] sm:$0xff]
    %v423 = vld [vmem:[#allocation2 + $0x150] sm:$0xff]
    %v424 = vld [vmem:[#allocation2 + $0x158] sm:$0xff]
    %v425 = vld [vmem:[#allocation2 + $0x160] sm:$0xff]
    %v426 = vld [vmem:[#allocation2 + $0x168] sm:$0xff]
    %v427 = vld [vmem:[#allocation2 + $0x170] sm:$0xff]
    %v428 = vld [vmem:[#allocation2 + $0x178] sm:$0xff]
    %v429 = vld [vmem:[#allocation2 + $0x180] sm:$0xff]
    %v430 = vld [vmem:[#allocation2 + $0x188] sm:$0xff]
    %v431 = vld [vmem:[#allocation2 + $0x190] sm:$0xff]
    %v432 = vld [vmem:[#allocation2 + $0x198] sm:$0xff]
    %v433 = vld [vmem:[#allocation2 + $0x1a0] sm:$0xff]
    %v434 = vld [vmem:[#allocation2 + $0x1a8] sm:$0xff]
    %v435 = vld [vmem:[#allocation2 + $0x1b0] sm:$0xff]
    %v436 = vld [vmem:[#allocation2 + $0x1b8] sm:$0xff]
    %v437 = vld [vmem:[#allocation2 + $0x1c0] sm:$0xff]
    %v438 = vld [vmem:[#allocation2 + $0x1c8] sm:$0xff]
    %v439 = vld [vmem:[#allocation2 + $0x1d0] sm:$0xff]
    %v440 = vld [vmem:[#allocation2 + $0x1d8] sm:$0xff]
    %v441 = vld [vmem:[#allocation2 + $0x1e0] sm:$0xff]
    %v442 = vld [vmem:[#allocation2 + $0x1e8] sm:$0xff]
    %v443 = vld [vmem:[#allocation2 + $0x1f0] sm:$0xff]
    %v444 = vld [vmem:[#allocation2 + $0x1f8] sm:$0xff]
    %v445 = vld [vmem:[#allocation2 + $0x200] sm:$0xff]
    %v446 = vld [vmem:[#allocation2 + $0x208] sm:$0xff]
    %v447 = vld [vmem:[#allocation2 + $0x210] sm:$0xff]
    %v448 = vld [vmem:[#allocation2 + $0x218] sm:$0xff]
    %v449 = vld [vmem:[#allocation2 + $0x220] sm:$0xff]
    %v450 = vld [vmem:[#allocation2 + $0x228] sm:$0xff]
    %v451 = vld [vmem:[#allocation2 + $0x230] sm:$0xff]
    %v452 = vld [vmem:[#allocation2 + $0x238] sm:$0xff]
    %v453 = vld [vmem:[#allocation2 + $0x240] sm:$0xff]
    %v454 = vld [vmem:[#allocation2 + $0x248] sm:$0xff]
    %v455 = vld [vmem:[#allocation2 + $0x250] sm:$0xff]
    %v456 = vld [vmem:[#allocation2 + $0x258] sm:$0xff]
    %v457 = vld [vmem:[#allocation2 + $0x260] sm:$0xff]
    %v458 = vld [vmem:[#allocation2 + $0x268] sm:$0xff]
    %v459 = vld [vmem:[#allocation2 + $0x270] sm:$0xff]
    %v460 = vld [vmem:[#allocation2 + $0x278] sm:$0xff]
    %v461 = vld [vmem:[#allocation2 + $0x280] sm:$0xff]
    %v462 = vld [vmem:[#allocation2 + $0x288] sm:$0xff]
    %v463 = vld [vmem:[#allocation2 + $0x290] sm:$0xff]
    %v464 = vld [vmem:[#allocation2 + $0x298] sm:$0xff]
    %v465 = vld [vmem:[#allocation2 + $0x2a0] sm:$0xff]
    %v466 = vld [vmem:[#allocation2 + $0x2a8] sm:$0xff]
    %v467 = vld [vmem:[#allocation2 + $0x2b0] sm:$0xff]
    %v468 = vld [vmem:[#allocation2 + $0x2b8] sm:$0xff]
    %v469 = vld [vmem:[#allocation2 + $0x2c0] sm:$0xff]
    %v470 = vld [vmem:[#allocation2 + $0x2c8] sm:$0xff]
    %v471 = vld [vmem:[#allocation2 + $0x2d0] sm:$0xff]
    %v472 = vld [vmem:[#allocation2 + $0x2d8] sm:$0xff]
    %v473 = vld [vmem:[#allocation2 + $0x2e0] sm:$0xff]
    %v474 = vld [vmem:[#allocation2 + $0x2e8] sm:$0xff]
    %v475 = vld [vmem:[#allocation2 + $0x2f0] sm:$0xff]
    %v476 = vld [vmem:[#allocation2 + $0x2f8] sm:$0xff]
    %v477 = vld [vmem:[#allocation2 + $0x300] sm:$0xff]
    %v478 = vld [vmem:[#allocation2 + $0x308] sm:$0xff]
    %v479 = vld [vmem:[#allocation2 + $0x310] sm:$0xff]
    %v480 = vld [vmem:[#allocation2 + $0x318] sm:$0xff]
    %v481 = vld [vmem:[#allocation2 + $0x320] sm:$0xff]
    %v482 = vld [vmem:[#allocation2 + $0x328] sm:$0xff]
    %v483 = vld [vmem:[#allocation2 + $0x330] sm:$0xff]
    %v484 = vld [vmem:[#allocation2 + $0x338] sm:$0xff]
    %v485 = vld [vmem:[#allocation2 + $0x340] sm:$0xff]
    %v486 = vld [vmem:[#allocation2 + $0x348] sm:$0xff]
    %v487 = vld [vmem:[#allocation2 + $0x350] sm:$0xff]
    %v488 = vld [vmem:[#allocation2 + $0x358] sm:$0xff]
    %v489 = vld [vmem:[#allocation2 + $0x360] sm:$0xff]
    %v490 = vld [vmem:[#allocation2 + $0x368] sm:$0xff]
    %v491 = vld [vmem:[#allocation2 + $0x370] sm:$0xff]
    %v492 = vld [vmem:[#allocation2 + $0x378] sm:$0xff]
    %v493 = vld [vmem:[#allocation2 + $0x380] sm:$0xff]
    %v494 = vld [vmem:[#allocation2 + $0x388] sm:$0xff]
    %v495 = vld [vmem:[#allocation2 + $0x390] sm:$0xff]
    %v496 = vld [vmem:[#allocation2 + $0x398] sm:$0xff]
    %v497 = vld [vmem:[#allocation2 + $0x3a0] sm:$0xff]
    %v498 = vld [vmem:[#allocation2 + $0x3a8] sm:$0xff]
    %v499 = vld [vmem:[#allocation2 + $0x3b0] sm:$0xff]
    %v500 = vld [vmem:[#allocation2 + $0x3b8] sm:$0xff]
    %v501 = vld [vmem:[#allocation2 + $0x3c0] sm:$0xff]
    %v502 = vld [vmem:[#allocation2 + $0x3c8] sm:$0xff]
    %v503 = vld [vmem:[#allocation2 + $0x3d0] sm:$0xff]
    %v504 = vld [vmem:[#allocation2 + $0x3d8] sm:$0xff]
    %v505 = vld [vmem:[#allocation2 + $0x3e0] sm:$0xff]
    %v506 = vld [vmem:[#allocation2 + $0x3e8] sm:$0xff]
    %v507 = vld [vmem:[#allocation2 + $0x3f0] sm:$0xff]
    %v508 = vld [vmem:[#allocation2 + $0x3f8] sm:$0xff]
    %v509 = vld [vmem:[#allocation2 + $0x400] sm:$0xff]
    %v510 = vld [vmem:[#allocation2 + $0x408] sm:$0xff]
    %v511 = vld [vmem:[#allocation2 + $0x410] sm:$0xff]
    %v512 = vld [vmem:[#allocation2 + $0x418] sm:$0xff]
    %v513 = vld [vmem:[#allocation2 + $0x420] sm:$0xff]
    %v514 = vld [vmem:[#allocation2 + $0x428] sm:$0xff]
    %v515 = vld [vmem:[#allocation2 + $0x430] sm:$0xff]
    %v516 = vld [vmem:[#allocation2 + $0x438] sm:$0xff]
    %v517 = vld [vmem:[#allocation2 + $0x440] sm:$0xff]
    %v518 = vld [vmem:[#allocation2 + $0x448] sm:$0xff]
    %v519 = vld [vmem:[#allocation2 + $0x450] sm:$0xff]
    %v520 = vld [vmem:[#allocation2 + $0x458] sm:$0xff]
    %v521 = vld [vmem:[#allocation2 + $0x460] sm:$0xff]
    %v522 = vld [vmem:[#allocation2 + $0x468] sm:$0xff]
    %v523 = vld [vmem:[#allocation2 + $0x470] sm:$0xff]
    %v524 = vld [vmem:[#allocation2 + $0x478] sm:$0xff]
    %v525 = vld [vmem:[#allocation2 + $0x480] sm:$0xff]
    %v526 = vld [vmem:[#allocation2 + $0x488] sm:$0xff]
    %v527 = vld [vmem:[#allocation2 + $0x490] sm:$0xff]
    %v528 = vld [vmem:[#allocation2 + $0x498] sm:$0xff]
    %v529 = vld [vmem:[#allocation2 + $0x4a0] sm:$0xff]
    %v530 = vld [vmem:[#allocation2 + $0x4a8] sm:$0xff]
    %v531 = vld [vmem:[#allocation2 + $0x4b0] sm:$0xff]
    %v532 = vld [vmem:[#allocation2 + $0x4b8] sm:$0xff]
    %v533 = vld [vmem:[#allocation2 + $0x4c0] sm:$0xff]
    %v534 = vld [vmem:[#allocation2 + $0x4c8] sm:$0xff]
    %v535 = vld [vmem:[#allocation2 + $0x4d0] sm:$0xff]
    %v536 = vld [vmem:[#allocation2 + $0x4d8] sm:$0xff]
    %v537 = vld [vmem:[#allocation2 + $0x4e0] sm:$0xff]
    %v538 = vld [vmem:[#allocation2 + $0x4e8] sm:$0xff]
    %v539 = vld [vmem:[#allocation2 + $0x4f0] sm:$0xff]
    %v540 = vld [vmem:[#allocation2 + $0x4f8] sm:$0xff]
    %v541 = vld [vmem:[#allocation2 + $0x500] sm:$0xff]
    %v542 = vld [vmem:[#allocation2 + $0x508] sm:$0xff]
    %v543 = vld [vmem:[#allocation2 + $0x510] sm:$0xff]
    %v544 = vld [vmem:[#allocation2 + $0x518] sm:$0xff]
    %v545 = vld [vmem:[#allocation2 + $0x520] sm:$0xff]
    %v546 = vld [vmem:[#allocation2 + $0x528] sm:$0xff]
    %v547 = vld [vmem:[#allocation2 + $0x530] sm:$0xff]
    %v548 = vld [vmem:[#allocation2 + $0x538] sm:$0xff]
    %v549 = vld [vmem:[#allocation2 + $0x540] sm:$0xff]
    %v550 = vld [vmem:[#allocation2 + $0x548] sm:$0xff]
    %v551 = vld [vmem:[#allocation2 + $0x550] sm:$0xff]
    %v552 = vld [vmem:[#allocation2 + $0x558] sm:$0xff]
    %v553 = vld [vmem:[#allocation2 + $0x560] sm:$0xff]
    %v554 = vld [vmem:[#allocation2 + $0x568] sm:$0xff]
    %v555 = vld [vmem:[#allocation2 + $0x570] sm:$0xff]
    %v556 = vld [vmem:[#allocation2 + $0x578] sm:$0xff]
    %v557 = vld [vmem:[#allocation2 + $0x580] sm:$0xff]
    %v558 = vld [vmem:[#allocation2 + $0x588] sm:$0xff]
    %v559 = vld [vmem:[#allocation2 + $0x590] sm:$0xff]
    %v560 = vld [vmem:[#allocation2 + $0x598] sm:$0xff]
    %v561 = vld [vmem:[#allocation2 + $0x5a0] sm:$0xff]
    %v562 = vld [vmem:[#allocation2 + $0x5a8] sm:$0xff]
    %v563 = vld [vmem:[#allocation2 + $0x5b0] sm:$0xff]
    %v564 = vld [vmem:[#allocation2 + $0x5b8] sm:$0xff]
    %v565 = vld [vmem:[#allocation2 + $0x5c0] sm:$0xff]
    %v566 = vld [vmem:[#allocation2 + $0x5c8] sm:$0xff]
    %v567 = vld [vmem:[#allocation2 + $0x5d0] sm:$0xff]
    %v568 = vld [vmem:[#allocation2 + $0x5d8] sm:$0xff]
    %v569 = vld [vmem:[#allocation2 + $0x5e0] sm:$0xff]
    %v570 = vld [vmem:[#allocation2 + $0x5e8] sm:$0xff]
    %v571 = vld [vmem:[#allocation2 + $0x5f0] sm:$0xff]
    %v572 = vld [vmem:[#allocation2 + $0x5f8] sm:$0xff]
    %v573 = vld [vmem:[#allocation2 + $0x600] sm:$0xff]
    %v574 = vld [vmem:[#allocation2 + $0x608] sm:$0xff]
    %v575 = vld [vmem:[#allocation2 + $0x610] sm:$0xff]
    %v576 = vld [vmem:[#allocation2 + $0x618] sm:$0xff]
    %v577 = vld [vmem:[#allocation2 + $0x620] sm:$0xff]
    %v578 = vld [vmem:[#allocation2 + $0x628] sm:$0xff]
    %v579 = vld [vmem:[#allocation2 + $0x630] sm:$0xff]
    %v580 = vld [vmem:[#allocation2 + $0x638] sm:$0xff]
    %v581 = vld [vmem:[#allocation2 + $0x640] sm:$0xff]
    %v582 = vld [vmem:[#allocation2 + $0x648] sm:$0xff]
    %v583 = vld [vmem:[#allocation2 + $0x650] sm:$0xff]
    %v584 = vld [vmem:[#allocation2 + $0x658] sm:$0xff]
    %v585 = vld [vmem:[#allocation2 + $0x660] sm:$0xff]
    %v586 = vld [vmem:[#allocation2 + $0x668] sm:$0xff]
    %v587 = vld [vmem:[#allocation2 + $0x670] sm:$0xff]
    %v588 = vld [vmem:[#allocation2 + $0x678] sm:$0xff]
    %v589 = vld [vmem:[#allocation2 + $0x680] sm:$0xff]
    %v590 = vld [vmem:[#allocation2 + $0x688] sm:$0xff]
    %v591 = vld [vmem:[#allocation2 + $0x690] sm:$0xff]
    %v592 = vld [vmem:[#allocation2 + $0x698] sm:$0xff]
    %v593 = vld [vmem:[#allocation2 + $0x6a0] sm:$0xff]
    %v594 = vld [vmem:[#allocation2 + $0x6a8] sm:$0xff]
    %v595 = vld [vmem:[#allocation2 + $0x6b0] sm:$0xff]
    %v596 = vld [vmem:[#allocation2 + $0x6b8] sm:$0xff]
    %v597 = vld [vmem:[#allocation2 + $0x6c0] sm:$0xff]
    %v598 = vld [vmem:[#allocation2 + $0x6c8] sm:$0xff]
    %v599 = vld [vmem:[#allocation2 + $0x6d0] sm:$0xff]
    %v600 = vld [vmem:[#allocation2 + $0x6d8] sm:$0xff]
    %v601 = vld [vmem:[#allocation2 + $0x6e0] sm:$0xff]
    %v602 = vld [vmem:[#allocation2 + $0x6e8] sm:$0xff]
    %v603 = vld [vmem:[#allocation2 + $0x6f0] sm:$0xff]
    %v604 = vld [vmem:[#allocation2 + $0x6f8] sm:$0xff]
    %v605 = vld [vmem:[#allocation2 + $0x700] sm:$0xff]
    %v606 = vld [vmem:[#allocation2 + $0x708] sm:$0xff]
    %v607 = vld [vmem:[#allocation2 + $0x710] sm:$0xff]
    %v608 = vld [vmem:[#allocation2 + $0x718] sm:$0xff]
    %v609 = vld [vmem:[#allocation2 + $0x720] sm:$0xff]
    %v610 = vld [vmem:[#allocation2 + $0x728] sm:$0xff]
    %v611 = vld [vmem:[#allocation2 + $0x730] sm:$0xff]
    %v612 = vld [vmem:[#allocation2 + $0x738] sm:$0xff]
    %v613 = vld [vmem:[#allocation2 + $0x740] sm:$0xff]
    %v614 = vld [vmem:[#allocation2 + $0x748] sm:$0xff]
    %v615 = vld [vmem:[#allocation2 + $0x750] sm:$0xff]
    %v616 = vld [vmem:[#allocation2 + $0x758] sm:$0xff]
    %v617 = vld [vmem:[#allocation2 + $0x760] sm:$0xff]
    %v618 = vld [vmem:[#allocation2 + $0x768] sm:$0xff]
    %v619 = vld [vmem:[#allocation2 + $0x770] sm:$0xff]
    %v620 = vld [vmem:[#allocation2 + $0x778] sm:$0xff]
    %v621 = vld [vmem:[#allocation2 + $0x780] sm:$0xff]
    %v622 = vld [vmem:[#allocation2 + $0x788] sm:$0xff]
    %v623 = vld [vmem:[#allocation2 + $0x790] sm:$0xff]
    %v624 = vld [vmem:[#allocation2 + $0x798] sm:$0xff]
    %v625 = vld [vmem:[#allocation2 + $0x7a0] sm:$0xff]
    %v626 = vld [vmem:[#allocation2 + $0x7a8] sm:$0xff]
    %v627 = vld [vmem:[#allocation2 + $0x7b0] sm:$0xff]
    %v628 = vld [vmem:[#allocation2 + $0x7b8] sm:$0xff]
    %v629 = vld [vmem:[#allocation2 + $0x7c0] sm:$0xff]
    %v630 = vld [vmem:[#allocation2 + $0x7c8] sm:$0xff]
    %v631 = vld [vmem:[#allocation2 + $0x7d0] sm:$0xff]
    %v632 = vld [vmem:[#allocation2 + $0x7d8] sm:$0xff]
    %v633 = vld [vmem:[#allocation2 + $0x7e0] sm:$0xff]
    %v634 = vld [vmem:[#allocation2 + $0x7e8] sm:$0xff]
    %v635 = vld [vmem:[#allocation2 + $0x7f0] sm:$0xff]
    %v636 = vld [vmem:[#allocation2 + $0x7f8] sm:$0xff]
    %v637 = vld [vmem:[#allocation2 + $0x800] sm:$0xff]
    %v638 = vld [vmem:[#allocation2 + $0x808] sm:$0xff]
    %v639 = vld [vmem:[#allocation2 + $0x810] sm:$0xff]
    %v640 = vld [vmem:[#allocation2 + $0x818] sm:$0xff]
    %v641 = vld [vmem:[#allocation2 + $0x820] sm:$0xff]
    %v642 = vld [vmem:[#allocation2 + $0x828] sm:$0xff]
    %v643 = vld [vmem:[#allocation2 + $0x830] sm:$0xff]
    %v644 = vld [vmem:[#allocation2 + $0x838] sm:$0xff]
    %v645 = vld [vmem:[#allocation2 + $0x840] sm:$0xff]
    %v646 = vld [vmem:[#allocation2 + $0x848] sm:$0xff]
    %v647 = vld [vmem:[#allocation2 + $0x850] sm:$0xff]
    %v648 = vld [vmem:[#allocation2 + $0x858] sm:$0xff]
    %v649 = vld [vmem:[#allocation2 + $0x860] sm:$0xff]
    %v650 = vld [vmem:[#allocation2 + $0x868] sm:$0xff]
    %v651 = vld [vmem:[#allocation2 + $0x870] sm:$0xff]
    %v652 = vld [vmem:[#allocation2 + $0x878] sm:$0xff]
    %v653 = vld [vmem:[#allocation2 + $0x880] sm:$0xff]
    %v654 = vld [vmem:[#allocation2 + $0x888] sm:$0xff]
    %v655 = vld [vmem:[#allocation2 + $0x890] sm:$0xff]
    %v656 = vld [vmem:[#allocation2 + $0x898] sm:$0xff]
    %v657 = vld [vmem:[#allocation2 + $0x8a0] sm:$0xff]
    %v658 = vld [vmem:[#allocation2 + $0x8a8] sm:$0xff]
    %v659 = vld [vmem:[#allocation2 + $0x8b0] sm:$0xff]
    %v660 = vld [vmem:[#allocation2 + $0x8b8] sm:$0xff]
    %v661 = vld [vmem:[#allocation2 + $0x8c0] sm:$0xff]
    %v662 = vld [vmem:[#allocation2 + $0x8c8] sm:$0xff]
    %v663 = vld [vmem:[#allocation2 + $0x8d0] sm:$0xff]
    %v664 = vld [vmem:[#allocation2 + $0x8d8] sm:$0xff]
    %v665 = vld [vmem:[#allocation2 + $0x8e0] sm:$0xff]
    %v666 = vld [vmem:[#allocation2 + $0x8e8] sm:$0xff]
    %v667 = vld [vmem:[#allocation2 + $0x8f0] sm:$0xff]
    %v668 = vld [vmem:[#allocation2 + $0x8f8] sm:$0xff]
    %v669 = vld [vmem:[#allocation2 + $0x900] sm:$0xff]
    %v670 = vld [vmem:[#allocation2 + $0x908] sm:$0xff]
    %v671 = vld [vmem:[#allocation2 + $0x910] sm:$0xff]
    %v672 = vld [vmem:[#allocation2 + $0x918] sm:$0xff]
    %v673 = vld [vmem:[#allocation2 + $0x920] sm:$0xff]
    %v674 = vld [vmem:[#allocation2 + $0x928] sm:$0xff]
    %v675 = vld [vmem:[#allocation2 + $0x930] sm:$0xff]
    %v676 = vld [vmem:[#allocation2 + $0x938] sm:$0xff]
    %v677 = vld [vmem:[#allocation2 + $0x940] sm:$0xff]
    %v678 = vld [vmem:[#allocation2 + $0x948] sm:$0xff]
    %v679 = vld [vmem:[#allocation2 + $0x950] sm:$0xff]
    %v680 = vld [vmem:[#allocation2 + $0x958] sm:$0xff]
    %v681 = vld [vmem:[#allocation2 + $0x960] sm:$0xff]
    %v682 = vld [vmem:[#allocation2 + $0x968] sm:$0xff]
    %v683 = vld [vmem:[#allocation2 + $0x970] sm:$0xff]
    %v684 = vld [vmem:[#allocation2 + $0x978] sm:$0xff]
    %v685 = vld [vmem:[#allocation2 + $0x980] sm:$0xff]
    %v686 = vld [vmem:[#allocation2 + $0x988] sm:$0xff]
    %v687 = vld [vmem:[#allocation2 + $0x990] sm:$0xff]
    %v688 = vld [vmem:[#allocation2 + $0x998] sm:$0xff]
    %v689 = vld [vmem:[#allocation2 + $0x9a0] sm:$0xff]
    %v690 = vld [vmem:[#allocation2 + $0x9a8] sm:$0xff]
    %v691 = vld [vmem:[#allocation2 + $0x9b0] sm:$0xff]
    %v692 = vld [vmem:[#allocation2 + $0x9b8] sm:$0xff]
    %v693 = vld [vmem:[#allocation2 + $0x9c0] sm:$0xff]
    %v694 = vld [vmem:[#allocation2 + $0x9c8] sm:$0xff]
    %v695 = vld [vmem:[#allocation2 + $0x9d0] sm:$0xff]
    %v696 = vld [vmem:[#allocation2 + $0x9d8] sm:$0xff]
    %v697 = vld [vmem:[#allocation2 + $0x9e0] sm:$0xff]
    %v698 = vld [vmem:[#allocation2 + $0x9e8] sm:$0xff]
    %v699 = vld [vmem:[#allocation2 + $0x9f0] sm:$0xff]
    %v700 = vld [vmem:[#allocation2 + $0x9f8] sm:$0xff]
    %v701 = vld [vmem:[#allocation2 + $0xa00] sm:$0xff]
    %v702 = vld [vmem:[#allocation2 + $0xa08] sm:$0xff]
    %v703 = vld [vmem:[#allocation2 + $0xa10] sm:$0xff]
    %v704 = vld [vmem:[#allocation2 + $0xa18] sm:$0xff]
    %v705 = vld [vmem:[#allocation2 + $0xa20] sm:$0xff]
    %v706 = vld [vmem:[#allocation2 + $0xa28] sm:$0xff]
    %v707 = vld [vmem:[#allocation2 + $0xa30] sm:$0xff]
    %v708 = vld [vmem:[#allocation2 + $0xa38] sm:$0xff]
    %v709 = vld [vmem:[#allocation2 + $0xa40] sm:$0xff]
    %v710 = vld [vmem:[#allocation2 + $0xa48] sm:$0xff]
    %v711 = vld [vmem:[#allocation2 + $0xa50] sm:$0xff]
    %v712 = vld [vmem:[#allocation2 + $0xa58] sm:$0xff]
    %v713 = vld [vmem:[#allocation2 + $0xa60] sm:$0xff]
    %v714 = vld [vmem:[#allocation2 + $0xa68] sm:$0xff]
    %v715 = vld [vmem:[#allocation2 + $0xa70] sm:$0xff]
    %v716 = vld [vmem:[#allocation2 + $0xa78] sm:$0xff]
    %v717 = vld [vmem:[#allocation2 + $0xa80] sm:$0xff]
    %v718 = vld [vmem:[#allocation2 + $0xa88] sm:$0xff]
    %v719 = vld [vmem:[#allocation2 + $0xa90] sm:$0xff]
    %v720 = vld [vmem:[#allocation2 + $0xa98] sm:$0xff]
    %v721 = vld [vmem:[#allocation2 + $0xaa0] sm:$0xff]
    %v722 = vld [vmem:[#allocation2 + $0xaa8] sm:$0xff]
    %v723 = vld [vmem:[#allocation2 + $0xab0] sm:$0xff]
    %v724 = vld [vmem:[#allocation2 + $0xab8] sm:$0xff]
    %v725 = vld [vmem:[#allocation2 + $0xac0] sm:$0xff]
    %v726 = vld [vmem:[#allocation2 + $0xac8] sm:$0xff]
    %v727 = vld [vmem:[#allocation2 + $0xad0] sm:$0xff]
    %v728 = vld [vmem:[#allocation2 + $0xad8] sm:$0xff]
    %v729 = vld [vmem:[#allocation2 + $0xae0] sm:$0xff]
    %v730 = vld [vmem:[#allocation2 + $0xae8] sm:$0xff]
    %v731 = vld [vmem:[#allocation2 + $0xaf0] sm:$0xff]
    %v732 = vld [vmem:[#allocation2 + $0xaf8] sm:$0xff]
    %v733 = vld [vmem:[#allocation2 + $0xb00] sm:$0xff]
    %v734 = vld [vmem:[#allocation2 + $0xb08] sm:$0xff]
    %v735 = vld [vmem:[#allocation2 + $0xb10] sm:$0xff]
    %v736 = vld [vmem:[#allocation2 + $0xb18] sm:$0xff]
    %v737 = vld [vmem:[#allocation2 + $0xb20] sm:$0xff]
    %v738 = vld [vmem:[#allocation2 + $0xb28] sm:$0xff]
    %v739 = vld [vmem:[#allocation2 + $0xb30] sm:$0xff]
    %v740 = vld [vmem:[#allocation2 + $0xb38] sm:$0xff]
    %v741 = vld [vmem:[#allocation2 + $0xb40] sm:$0xff]
    %v742 = vld [vmem:[#allocation2 + $0xb48] sm:$0xff]
    %v743 = vld [vmem:[#allocation2 + $0xb50] sm:$0xff]
    %v744 = vld [vmem:[#allocation2 + $0xb58] sm:$0xff]
    %v745 = vld [vmem:[#allocation2 + $0xb60] sm:$0xff]
    %v746 = vld [vmem:[#allocation2 + $0xb68] sm:$0xff]
    %v747 = vld [vmem:[#allocation2 + $0xb70] sm:$0xff]
    %v748 = vld [vmem:[#allocation2 + $0xb78] sm:$0xff]
    %v749 = vld [vmem:[#allocation2 + $0xb80] sm:$0xff]
    %v750 = vld [vmem:[#allocation2 + $0xb88] sm:$0xff]
    %v751 = vld [vmem:[#allocation2 + $0xb90] sm:$0xff]
    %v752 = vld [vmem:[#allocation2 + $0xb98] sm:$0xff]
    %v753 = vld [vmem:[#allocation2 + $0xba0] sm:$0xff]
    %v754 = vld [vmem:[#allocation2 + $0xba8] sm:$0xff]
    %v755 = vld [vmem:[#allocation2 + $0xbb0] sm:$0xff]
    %v756 = vld [vmem:[#allocation2 + $0xbb8] sm:$0xff]
    %v757 = vld [vmem:[#allocation2 + $0xbc0] sm:$0xff]
    %v758 = vld [vmem:[#allocation2 + $0xbc8] sm:$0xff]
    %v759 = vld [vmem:[#allocation2 + $0xbd0] sm:$0xff]
    %v760 = vld [vmem:[#allocation2 + $0xbd8] sm:$0xff]
    %v761 = vld [vmem:[#allocation2 + $0xbe0] sm:$0xff]
    %v762 = vld [vmem:[#allocation2 + $0xbe8] sm:$0xff]
    %v763 = vld [vmem:[#allocation2 + $0xbf0] sm:$0xff]
    %v764 = vld [vmem:[#allocation2 + $0xbf8] sm:$0xff]
    %v765 = vld [vmem:[#allocation2 + $0xc00] sm:$0xff]
    %v766 = vld [vmem:[#allocation2 + $0xc08] sm:$0xff]
    %v767 = vld [vmem:[#allocation2 + $0xc10] sm:$0xff]
    %v768 = vld [vmem:[#allocation2 + $0xc18] sm:$0xff]
    %v769 = vld [vmem:[#allocation2 + $0xc20] sm:$0xff]
    %v770 = vld [vmem:[#allocation2 + $0xc28] sm:$0xff]
    %v771 = vld [vmem:[#allocation2 + $0xc30] sm:$0xff]
    %v772 = vld [vmem:[#allocation2 + $0xc38] sm:$0xff]
    %v773 = vld [vmem:[#allocation2 + $0xc40] sm:$0xff]
    %v774 = vld [vmem:[#allocation2 + $0xc48] sm:$0xff]
    %v775 = vld [vmem:[#allocation2 + $0xc50] sm:$0xff]
    %v776 = vld [vmem:[#allocation2 + $0xc58] sm:$0xff]
    %v777 = vld [vmem:[#allocation2 + $0xc60] sm:$0xff]
    %v778 = vld [vmem:[#allocation2 + $0xc68] sm:$0xff]
    %v779 = vld [vmem:[#allocation2 + $0xc70] sm:$0xff]
    %v780 = vld [vmem:[#allocation2 + $0xc78] sm:$0xff]
    %v781 = vld [vmem:[#allocation2 + $0xc80] sm:$0xff]
    %v782 = vld [vmem:[#allocation2 + $0xc88] sm:$0xff]
    %v783 = vld [vmem:[#allocation2 + $0xc90] sm:$0xff]
    %v784 = vld [vmem:[#allocation2 + $0xc98] sm:$0xff]
    %v785 = vld [vmem:[#allocation2 + $0xca0] sm:$0xff]
    %v786 = vld [vmem:[#allocation2 + $0xca8] sm:$0xff]
    %v787 = vld [vmem:[#allocation2 + $0xcb0] sm:$0xff]
    %v788 = vld [vmem:[#allocation2 + $0xcb8] sm:$0xff]
    %v789 = vld [vmem:[#allocation2 + $0xcc0] sm:$0xff]
    %v790 = vld [vmem:[#allocation2 + $0xcc8] sm:$0xff]
    %v791 = vld [vmem:[#allocation2 + $0xcd0] sm:$0xff]
    %v792 = vld [vmem:[#allocation2 + $0xcd8] sm:$0xff]
    %v793 = vld [vmem:[#allocation2 + $0xce0] sm:$0xff]
    %v794 = vld [vmem:[#allocation2 + $0xce8] sm:$0xff]
    %v795 = vld [vmem:[#allocation2 + $0xcf0] sm:$0xff]
    %v796 = vld [vmem:[#allocation2 + $0xcf8] sm:$0xff]
    %v797 = vld [vmem:[#allocation2 + $0xd00] sm:$0xff]
    %v798 = vld [vmem:[#allocation2 + $0xd08] sm:$0xff]
    %v799 = vld [vmem:[#allocation2 + $0xd10] sm:$0xff]
    %v800 = vld [vmem:[#allocation2 + $0xd18] sm:$0xff]
    %v801 = vld [vmem:[#allocation2 + $0xd20] sm:$0xff]
    %v802 = vld [vmem:[#allocation2 + $0xd28] sm:$0xff]
    %v803 = vld [vmem:[#allocation2 + $0xd30] sm:$0xff]
    %v804 = vld [vmem:[#allocation2 + $0xd38] sm:$0xff]
    %v805 = vld [vmem:[#allocation2 + $0xd40] sm:$0xff]
    %v806 = vld [vmem:[#allocation2 + $0xd48] sm:$0xff]
    %v807 = vld [vmem:[#allocation2 + $0xd50] sm:$0xff]
    %v808 = vld [vmem:[#allocation2 + $0xd58] sm:$0xff]
    %v809 = vld [vmem:[#allocation2 + $0xd60] sm:$0xff]
    %v810 = vld [vmem:[#allocation2 + $0xd68] sm:$0xff]
    %v811 = vld [vmem:[#allocation2 + $0xd70] sm:$0xff]
    %v812 = vld [vmem:[#allocation2 + $0xd78] sm:$0xff]
    %v813 = vld [vmem:[#allocation2 + $0xd80] sm:$0xff]
    %v814 = vld [vmem:[#allocation2 + $0xd88] sm:$0xff]
    %v815 = vld [vmem:[#allocation2 + $0xd90] sm:$0xff]
    %v816 = vld [vmem:[#allocation2 + $0xd98] sm:$0xff]
    %v817 = vld [vmem:[#allocation2 + $0xda0] sm:$0xff]
    %v818 = vld [vmem:[#allocation2 + $0xda8] sm:$0xff]
    %v819 = vld [vmem:[#allocation2 + $0xdb0] sm:$0xff]
    %v820 = vld [vmem:[#allocation2 + $0xdb8] sm:$0xff]
    %v821 = vld [vmem:[#allocation2 + $0xdc0] sm:$0xff]
    %v822 = vld [vmem:[#allocation2 + $0xdc8] sm:$0xff]
    %v823 = vld [vmem:[#allocation2 + $0xdd0] sm:$0xff]
    %v824 = vld [vmem:[#allocation2 + $0xdd8] sm:$0xff]
    %v825 = vld [vmem:[#allocation2 + $0xde0] sm:$0xff]
    %v826 = vld [vmem:[#allocation2 + $0xde8] sm:$0xff]
    %v827 = vld [vmem:[#allocation2 + $0xdf0] sm:$0xff]
    %v828 = vld [vmem:[#allocation2 + $0xdf8] sm:$0xff]
    %v829 = vld [vmem:[#allocation2 + $0xe00] sm:$0xff]
    %v830 = vld [vmem:[#allocation2 + $0xe08] sm:$0xff]
    %v831 = vld [vmem:[#allocation2 + $0xe10] sm:$0xff]
    %v832 = vld [vmem:[#allocation2 + $0xe18] sm:$0xff]
    %v833 = vld [vmem:[#allocation2 + $0xe20] sm:$0xff]
    %v834 = vld [vmem:[#allocation2 + $0xe28] sm:$0xff]
    %v835 = vld [vmem:[#allocation2 + $0xe30] sm:$0xff]
    %v836 = vld [vmem:[#allocation2 + $0xe38] sm:$0xff]
    %v837 = vld [vmem:[#allocation2 + $0xe40] sm:$0xff]
    %v838 = vld [vmem:[#allocation2 + $0xe48] sm:$0xff]
    %v839 = vld [vmem:[#allocation2 + $0xe50] sm:$0xff]
    %v840 = vld [vmem:[#allocation2 + $0xe58] sm:$0xff]
    %v841 = vld [vmem:[#allocation2 + $0xe60] sm:$0xff]
    %v842 = vld [vmem:[#allocation2 + $0xe68] sm:$0xff]
    %v843 = vld [vmem:[#allocation2 + $0xe70] sm:$0xff]
    %v844 = vld [vmem:[#allocation2 + $0xe78] sm:$0xff]
    %v845 = vld [vmem:[#allocation2 + $0xe80] sm:$0xff]
    %v846 = vld [vmem:[#allocation2 + $0xe88] sm:$0xff]
    %v847 = vld [vmem:[#allocation2 + $0xe90] sm:$0xff]
    %v848 = vld [vmem:[#allocation2 + $0xe98] sm:$0xff]
    %v849 = vld [vmem:[#allocation2 + $0xea0] sm:$0xff]
    %v850 = vld [vmem:[#allocation2 + $0xea8] sm:$0xff]
    %v851 = vld [vmem:[#allocation2 + $0xeb0] sm:$0xff]
    %v852 = vld [vmem:[#allocation2 + $0xeb8] sm:$0xff]
    %v853 = vld [vmem:[#allocation2 + $0xec0] sm:$0xff]
    %v854 = vld [vmem:[#allocation2 + $0xec8] sm:$0xff]
    %v855 = vld [vmem:[#allocation2 + $0xed0] sm:$0xff]
    %v856 = vld [vmem:[#allocation2 + $0xed8] sm:$0xff]
    %v857 = vld [vmem:[#allocation2 + $0xee0] sm:$0xff]
    %v858 = vld [vmem:[#allocation2 + $0xee8] sm:$0xff]
    %v859 = vld [vmem:[#allocation2 + $0xef0] sm:$0xff]
    %v860 = vld [vmem:[#allocation2 + $0xef8] sm:$0xff]
    %v861 = vld [vmem:[#allocation2 + $0xf00] sm:$0xff]
    %v862 = vld [vmem:[#allocation2 + $0xf08] sm:$0xff]
    %v863 = vld [vmem:[#allocation2 + $0xf10] sm:$0xff]
    %v864 = vld [vmem:[#allocation2 + $0xf18] sm:$0xff]
    %v865 = vld [vmem:[#allocation2 + $0xf20] sm:$0xff]
    %v866 = vld [vmem:[#allocation2 + $0xf28] sm:$0xff]
    %v867 = vld [vmem:[#allocation2 + $0xf30] sm:$0xff]
    %v868 = vld [vmem:[#allocation2 + $0xf38] sm:$0xff]
    %v869 = vld [vmem:[#allocation2 + $0xf40] sm:$0xff]
    %v870 = vld [vmem:[#allocation2 + $0xf48] sm:$0xff]
    %v871 = vld [vmem:[#allocation2 + $0xf50] sm:$0xff]
    %v872 = vld [vmem:[#allocation2 + $0xf58] sm:$0xff]
    %v873 = vld [vmem:[#allocation2 + $0xf60] sm:$0xff]
    %v874 = vld [vmem:[#allocation2 + $0xf68] sm:$0xff]
    %v875 = vld [vmem:[#allocation2 + $0xf70] sm:$0xff]
    %v876 = vld [vmem:[#allocation2 + $0xf78] sm:$0xff]
    %v877 = vld [vmem:[#allocation2 + $0xf80] sm:$0xff]
    %v878 = vld [vmem:[#allocation2 + $0xf88] sm:$0xff]
    %v879 = vld [vmem:[#allocation2 + $0xf90] sm:$0xff]
    %v880 = vld [vmem:[#allocation2 + $0xf98] sm:$0xff]
    %v881 = vld [vmem:[#allocation2 + $0xfa0] sm:$0xff]
    %v882 = vld [vmem:[#allocation2 + $0xfa8] sm:$0xff]
    %v883 = vld [vmem:[#allocation2 + $0xfb0] sm:$0xff]
    %v884 = vld [vmem:[#allocation2 + $0xfb8] sm:$0xff]
    %v885 = vld [vmem:[#allocation2 + $0xfc0] sm:$0xff]
    %v886 = vld [vmem:[#allocation2 + $0xfc8] sm:$0xff]
    %v887 = vld [vmem:[#allocation2 + $0xfd0] sm:$0xff]
    %v888 = vld [vmem:[#allocation2 + $0xfd8] sm:$0xff]
    %v889 = vld [vmem:[#allocation2 + $0xfe0] sm:$0xff]
    %v890 = vld [vmem:[#allocation2 + $0xfe8] sm:$0xff]
    %v891 = vld [vmem:[#allocation2 + $0xff0] sm:$0xff]
    %v892 = vld [vmem:[#allocation2 + $0xff8] sm:$0xff]
    %v893 = vld [vmem:[#allocation2 + $0x1000] sm:$0xff]
    %v894 = vld [vmem:[#allocation2 + $0x1008] sm:$0xff]
    %v895 = vld [vmem:[#allocation2 + $0x1010] sm:$0xff]
    %v896 = vld [vmem:[#allocation2 + $0x1018] sm:$0xff]
    %v897 = vld [vmem:[#allocation2 + $0x1020] sm:$0xff]
    %v898 = vld [vmem:[#allocation2 + $0x1028] sm:$0xff]
    %v899 = vld [vmem:[#allocation2 + $0x1030] sm:$0xff]
    %v900 = vld [vmem:[#allocation2 + $0x1038] sm:$0xff]
    %v901 = vld [vmem:[#allocation2 + $0x1040] sm:$0xff]
    %v902 = vld [vmem:[#allocation2 + $0x1048] sm:$0xff]
    %v903 = vld [vmem:[#allocation2 + $0x1050] sm:$0xff]
    %v904 = vld [vmem:[#allocation2 + $0x1058] sm:$0xff]
    %v905 = vld [vmem:[#allocation2 + $0x1060] sm:$0xff]
    %v906 = vld [vmem:[#allocation2 + $0x1068] sm:$0xff]
    %v907 = vld [vmem:[#allocation2 + $0x1070] sm:$0xff]
    %v908 = vld [vmem:[#allocation2 + $0x1078] sm:$0xff]
    %v909 = vld [vmem:[#allocation2 + $0x1080] sm:$0xff]
    %v910 = vld [vmem:[#allocation2 + $0x1088] sm:$0xff]
    %v911 = vld [vmem:[#allocation2 + $0x1090] sm:$0xff]
    %v912 = vld [vmem:[#allocation2 + $0x1098] sm:$0xff]
    %v913 = vld [vmem:[#allocation2 + $0x10a0] sm:$0xff]
    %v914 = vld [vmem:[#allocation2 + $0x10a8] sm:$0xff]
    %v915 = vld [vmem:[#allocation2 + $0x10b0] sm:$0xff]
    %v916 = vld [vmem:[#allocation2 + $0x10b8] sm:$0xff]
    %v917 = vld [vmem:[#allocation2 + $0x10c0] sm:$0xff]
    %v918 = vld [vmem:[#allocation2 + $0x10c8] sm:$0xff]
    %v919 = vld [vmem:[#allocation2 + $0x10d0] sm:$0xff]
    %v920 = vld [vmem:[#allocation2 + $0x10d8] sm:$0xff]
    %v921 = vld [vmem:[#allocation2 + $0x10e0] sm:$0xff]
    %v922 = vld [vmem:[#allocation2 + $0x10e8] sm:$0xff]
    %v923 = vld [vmem:[#allocation2 + $0x10f0] sm:$0xff]
    %v924 = vld [vmem:[#allocation2 + $0x10f8] sm:$0xff]
    %v925 = vld [vmem:[#allocation2 + $0x1100] sm:$0xff]
    %v926 = vld [vmem:[#allocation2 + $0x1108] sm:$0xff]
    %v927 = vld [vmem:[#allocation2 + $0x1110] sm:$0xff]
    %v928 = vld [vmem:[#allocation2 + $0x1118] sm:$0xff]
    %v929 = vld [vmem:[#allocation2 + $0x1120] sm:$0xff]
    %v930 = vld [vmem:[#allocation2 + $0x1128] sm:$0xff]
    %v931 = vld [vmem:[#allocation2 + $0x1130] sm:$0xff]
    %v932 = vld [vmem:[#allocation2 + $0x1138] sm:$0xff]
    %v933 = vld [vmem:[#allocation2 + $0x1140] sm:$0xff]
    %v934 = vld [vmem:[#allocation2 + $0x1148] sm:$0xff]
    %v935 = vld [vmem:[#allocation2 + $0x1150] sm:$0xff]
    %v936 = vld [vmem:[#allocation2 + $0x1158] sm:$0xff]
    %v937 = vld [vmem:[#allocation2 + $0x1160] sm:$0xff]
    %v938 = vld [vmem:[#allocation2 + $0x1168] sm:$0xff]
    %v939 = vld [vmem:[#allocation2 + $0x1170] sm:$0xff]
    %v940 = vld [vmem:[#allocation2 + $0x1178] sm:$0xff]
    %v941 = vld [vmem:[#allocation2 + $0x1180] sm:$0xff]
    %v942 = vld [vmem:[#allocation2 + $0x1188] sm:$0xff]
    %v943 = vld [vmem:[#allocation2 + $0x1190] sm:$0xff]
    %v944 = vld [vmem:[#allocation2 + $0x1198] sm:$0xff]
    %v945 = vld [vmem:[#allocation2 + $0x11a0] sm:$0xff]
    %v946 = vld [vmem:[#allocation2 + $0x11a8] sm:$0xff]
    %v947 = vld [vmem:[#allocation2 + $0x11b0] sm:$0xff]
    %v948 = vld [vmem:[#allocation2 + $0x11b8] sm:$0xff]
    %v949 = vld [vmem:[#allocation2 + $0x11c0] sm:$0xff]
    %v950 = vld [vmem:[#allocation2 + $0x11c8] sm:$0xff]
    %v951 = vld [vmem:[#allocation2 + $0x11d0] sm:$0xff]
    %v952 = vld [vmem:[#allocation2 + $0x11d8] sm:$0xff]
    %v953 = vld [vmem:[#allocation2 + $0x11e0] sm:$0xff]
    %v954 = vld [vmem:[#allocation2 + $0x11e8] sm:$0xff]
    %v955 = vld [vmem:[#allocation2 + $0x11f0] sm:$0xff]
    %v956 = vld [vmem:[#allocation2 + $0x11f8] sm:$0xff]
    %v957 = vld [vmem:[#allocation2 + $0x1200] sm:$0xff]
    %v958 = vld [vmem:[#allocation2 + $0x1208] sm:$0xff]
    %v959 = vld [vmem:[#allocation2 + $0x1210] sm:$0xff]
    %v960 = vld [vmem:[#allocation2 + $0x1218] sm:$0xff]
    %v961 = vld [vmem:[#allocation2 + $0x1220] sm:$0xff]
    %v962 = vld [vmem:[#allocation2 + $0x1228] sm:$0xff]
    %v963 = vld [vmem:[#allocation2 + $0x1230] sm:$0xff]
    %v964 = vld [vmem:[#allocation2 + $0x1238] sm:$0xff]
    %v965 = vld [vmem:[#allocation2 + $0x1240] sm:$0xff]
    %v966 = vld [vmem:[#allocation2 + $0x1248] sm:$0xff]
    %v967 = vld [vmem:[#allocation2 + $0x1250] sm:$0xff]
    %v968 = vld [vmem:[#allocation2 + $0x1258] sm:$0xff]
    %v969 = vld [vmem:[#allocation2 + $0x1260] sm:$0xff]
    %v970 = vld [vmem:[#allocation2 + $0x1268] sm:$0xff]
    %v971 = vld [vmem:[#allocation2 + $0x1270] sm:$0xff]
    %v972 = vld [vmem:[#allocation2 + $0x1278] sm:$0xff]
    %v973 = vld [vmem:[#allocation2 + $0x1280] sm:$0xff]
    %v974 = vld [vmem:[#allocation2 + $0x1288] sm:$0xff]
    %v975 = vld [vmem:[#allocation2 + $0x1290] sm:$0xff]
    %v976 = vld [vmem:[#allocation2 + $0x1298] sm:$0xff]
    %v977 = vld [vmem:[#allocation2 + $0x12a0] sm:$0xff]
    %v978 = vld [vmem:[#allocation2 + $0x12a8] sm:$0xff]
    %v979 = vld [vmem:[#allocation2 + $0x12b0] sm:$0xff]
    %v980 = vld [vmem:[#allocation2 + $0x12b8] sm:$0xff]
    %v981 = vld [vmem:[#allocation2 + $0x12c0] sm:$0xff]
    %v982 = vld [vmem:[#allocation2 + $0x12c8] sm:$0xff]
    %v983 = vld [vmem:[#allocation2 + $0x12d0] sm:$0xff]
    %v984 = vld [vmem:[#allocation2 + $0x12d8] sm:$0xff]
    %v985 = vld [vmem:[#allocation2 + $0x12e0] sm:$0xff]
    %v986 = vld [vmem:[#allocation2 + $0x12e8] sm:$0xff]
    %v987 = vld [vmem:[#allocation2 + $0x12f0] sm:$0xff]
    %v988 = vld [vmem:[#allocation2 + $0x12f8] sm:$0xff]
    %v989 = vld [vmem:[#allocation2 + $0x1300] sm:$0xff]
    %v990 = vld [vmem:[#allocation2 + $0x1308] sm:$0xff]
    %v991 = vld [vmem:[#allocation2 + $0x1310] sm:$0xff]
    %v992 = vld [vmem:[#allocation2 + $0x1318] sm:$0xff]
    %v993 = vld [vmem:[#allocation2 + $0x1320] sm:$0xff]
    %v994 = vld [vmem:[#allocation2 + $0x1328] sm:$0xff]
    %v995 = vld [vmem:[#allocation2 + $0x1330] sm:$0xff]
    %v996 = vld [vmem:[#allocation2 + $0x1338] sm:$0xff]
    %v997 = vld [vmem:[#allocation2 + $0x1340] sm:$0xff]
    %v998 = vld [vmem:[#allocation2 + $0x1348] sm:$0xff]
    %v999 = vld [vmem:[#allocation2 + $0x1350] sm:$0xff]
    %v1000 = vld [vmem:[#allocation2 + $0x1358] sm:$0xff]
    %v1001 = vld [vmem:[#allocation2 + $0x1360] sm:$0xff]
    %v1002 = vld [vmem:[#allocation2 + $0x1368] sm:$0xff]
    %v1003 = vld [vmem:[#allocation2 + $0x1370] sm:$0xff]
    %v1004 = vld [vmem:[#allocation2 + $0x1378] sm:$0xff]
    %v1005 = vld [vmem:[#allocation2 + $0x1380] sm:$0xff]
    %v1006 = vld [vmem:[#allocation2 + $0x1388] sm:$0xff]
    %v1007 = vld [vmem:[#allocation2 + $0x1390] sm:$0xff]
    %v1008 = vld [vmem:[#allocation2 + $0x1398] sm:$0xff]
    %v1009 = vld [vmem:[#allocation2 + $0x13a0] sm:$0xff]
    %v1010 = vld [vmem:[#allocation2 + $0x13a8] sm:$0xff]
    %v1011 = vld [vmem:[#allocation2 + $0x13b0] sm:$0xff]
    %v1012 = vld [vmem:[#allocation2 + $0x13b8] sm:$0xff]
    %v1013 = vld [vmem:[#allocation2 + $0x13c0] sm:$0xff]
    %v1014 = vld [vmem:[#allocation2 + $0x13c8] sm:$0xff]
    %v1015 = vld [vmem:[#allocation2 + $0x13d0] sm:$0xff]
    %v1016 = vld [vmem:[#allocation2 + $0x13d8] sm:$0xff]
    %v1017 = vld [vmem:[#allocation2 + $0x13e0] sm:$0xff]
    %v1018 = vld [vmem:[#allocation2 + $0x13e8] sm:$0xff]
    %v1019 = vld [vmem:[#allocation2 + $0x13f0] sm:$0xff]
    %v1020 = vld [vmem:[#allocation2 + $0x13f8] sm:$0xff]
    %v1021 = vld [vmem:[#allocation2 + $0x1400] sm:$0xff]
    %v1022 = vld [vmem:[#allocation2 + $0x1408] sm:$0xff]
    %v1023 = vld [vmem:[#allocation2 + $0x1410] sm:$0xff]
    %v1024 = vld [vmem:[#allocation2 + $0x1418] sm:$0xff]
    %v1025 = vld [vmem:[#allocation2 + $0x1420] sm:$0xff]
    %v1026 = vld [vmem:[#allocation2 + $0x1428] sm:$0xff]
    %v1027 = vld [vmem:[#allocation2 + $0x1430] sm:$0xff]
    %v1028 = vld [vmem:[#allocation2 + $0x1438] sm:$0xff]
    %v1029 = vld [vmem:[#allocation2 + $0x1440] sm:$0xff]
    %v1030 = vld [vmem:[#allocation2 + $0x1448] sm:$0xff]
    %v1031 = vld [vmem:[#allocation2 + $0x1450] sm:$0xff]
    %v1032 = vld [vmem:[#allocation2 + $0x1458] sm:$0xff]
    %v1033 = vld [vmem:[#allocation2 + $0x1460] sm:$0xff]
    %v1034 = vld [vmem:[#allocation2 + $0x1468] sm:$0xff]
    %v1035 = vld [vmem:[#allocation2 + $0x1470] sm:$0xff]
    %v1036 = vld [vmem:[#allocation2 + $0x1478] sm:$0xff]
    %v1037 = vld [vmem:[#allocation2 + $0x1480] sm:$0xff]
    %v1038 = vld [vmem:[#allocation2 + $0x1488] sm:$0xff]
    %v1039 = vld [vmem:[#allocation2 + $0x1490] sm:$0xff]
    %v1040 = vld [vmem:[#allocation2 + $0x1498] sm:$0xff]
    %v1041 = vld [vmem:[#allocation2 + $0x14a0] sm:$0xff]
    %v1042 = vld [vmem:[#allocation2 + $0x14a8] sm:$0xff]
    %v1043 = vld [vmem:[#allocation2 + $0x14b0] sm:$0xff]
    %v1044 = vld [vmem:[#allocation2 + $0x14b8] sm:$0xff]
    %v1045 = vld [vmem:[#allocation2 + $0x14c0] sm:$0xff]
    %v1046 = vld [vmem:[#allocation2 + $0x14c8] sm:$0xff]
    %v1047 = vld [vmem:[#allocation2 + $0x14d0] sm:$0xff]
    %v1048 = vld [vmem:[#allocation2 + $0x14d8] sm:$0xff]
    %v1049 = vld [vmem:[#allocation2 + $0x14e0] sm:$0xff]
    %v1050 = vld [vmem:[#allocation2 + $0x14e8] sm:$0xff]
    %v1051 = vld [vmem:[#allocation2 + $0x14f0] sm:$0xff]
    %v1052 = vld [vmem:[#allocation2 + $0x14f8] sm:$0xff]
    %v1053 = vld [vmem:[#allocation2 + $0x1500] sm:$0xff]
    %v1054 = vld [vmem:[#allocation2 + $0x1508] sm:$0xff]
    %v1055 = vld [vmem:[#allocation2 + $0x1510] sm:$0xff]
    %v1056 = vld [vmem:[#allocation2 + $0x1518] sm:$0xff]
    %v1057 = vld [vmem:[#allocation2 + $0x1520] sm:$0xff]
    %v1058 = vld [vmem:[#allocation2 + $0x1528] sm:$0xff]
    %v1059 = vld [vmem:[#allocation2 + $0x1530] sm:$0xff]
    %v1060 = vld [vmem:[#allocation2 + $0x1538] sm:$0xff]
    %v1061 = vld [vmem:[#allocation2 + $0x1540] sm:$0xff]
    %v1062 = vld [vmem:[#allocation2 + $0x1548] sm:$0xff]
    %v1063 = vld [vmem:[#allocation2 + $0x1550] sm:$0xff]
    %v1064 = vld [vmem:[#allocation2 + $0x1558] sm:$0xff]
    %v1065 = vld [vmem:[#allocation2 + $0x1560] sm:$0xff]
    %v1066 = vld [vmem:[#allocation2 + $0x1568] sm:$0xff]
    %v1067 = vld [vmem:[#allocation2 + $0x1570] sm:$0xff]
    %v1068 = vld [vmem:[#allocation2 + $0x1578] sm:$0xff]
    %v1069 = vld [vmem:[#allocation2 + $0x1580] sm:$0xff]
    %v1070 = vld [vmem:[#allocation2 + $0x1588] sm:$0xff]
    %v1071 = vld [vmem:[#allocation2 + $0x1590] sm:$0xff]
    %v1072 = vld [vmem:[#allocation2 + $0x1598] sm:$0xff]
    %v1073 = vld [vmem:[#allocation2 + $0x15a0] sm:$0xff]
    %v1074 = vld [vmem:[#allocation2 + $0x15a8] sm:$0xff]
    %v1075 = vld [vmem:[#allocation2 + $0x15b0] sm:$0xff]
    %v1076 = vld [vmem:[#allocation2 + $0x15b8] sm:$0xff]
    %v1077 = vld [vmem:[#allocation2 + $0x15c0] sm:$0xff]
    %v1078 = vld [vmem:[#allocation2 + $0x15c8] sm:$0xff]
    %v1079 = vld [vmem:[#allocation2 + $0x15d0] sm:$0xff]
    %v1080 = vld [vmem:[#allocation2 + $0x15d8] sm:$0xff]
    %v1081 = vld [vmem:[#allocation2 + $0x15e0] sm:$0xff]
    %v1082 = vld [vmem:[#allocation2 + $0x15e8] sm:$0xff]
    %v1083 = vld [vmem:[#allocation2 + $0x15f0] sm:$0xff]
    %v1084 = vld [vmem:[#allocation2 + $0x15f8] sm:$0xff]
    %v1085 = vld [vmem:[#allocation2 + $0x1600] sm:$0xff]
    %v1086 = vld [vmem:[#allocation2 + $0x1608] sm:$0xff]
    %v1087 = vld [vmem:[#allocation2 + $0x1610] sm:$0xff]
    %v1088 = vld [vmem:[#allocation2 + $0x1618] sm:$0xff]
    %v1089 = vld [vmem:[#allocation2 + $0x1620] sm:$0xff]
    %v1090 = vld [vmem:[#allocation2 + $0x1628] sm:$0xff]
    %v1091 = vld [vmem:[#allocation2 + $0x1630] sm:$0xff]
    %v1092 = vld [vmem:[#allocation2 + $0x1638] sm:$0xff]
    %v1093 = vld [vmem:[#allocation2 + $0x1640] sm:$0xff]
    %v1094 = vld [vmem:[#allocation2 + $0x1648] sm:$0xff]
    %v1095 = vld [vmem:[#allocation2 + $0x1650] sm:$0xff]
    %v1096 = vld [vmem:[#allocation2 + $0x1658] sm:$0xff]
    %v1097 = vld [vmem:[#allocation2 + $0x1660] sm:$0xff]
    %v1098 = vld [vmem:[#allocation2 + $0x1668] sm:$0xff]
    %v1099 = vld [vmem:[#allocation2 + $0x1670] sm:$0xff]
    %v1100 = vld [vmem:[#allocation2 + $0x1678] sm:$0xff]
    %v1101 = vld [vmem:[#allocation2 + $0x1680] sm:$0xff]
    %v1102 = vld [vmem:[#allocation2 + $0x1688] sm:$0xff]
    %v1103 = vld [vmem:[#allocation2 + $0x1690] sm:$0xff]
    %v1104 = vld [vmem:[#allocation2 + $0x1698] sm:$0xff]
    %v1105 = vld [vmem:[#allocation2 + $0x16a0] sm:$0xff]
    %v1106 = vld [vmem:[#allocation2 + $0x16a8] sm:$0xff]
    %v1107 = vld [vmem:[#allocation2 + $0x16b0] sm:$0xff]
    %v1108 = vld [vmem:[#allocation2 + $0x16b8] sm:$0xff]
    %v1109 = vld [vmem:[#allocation2 + $0x16c0] sm:$0xff]
    %v1110 = vld [vmem:[#allocation2 + $0x16c8] sm:$0xff]
    %v1111 = vld [vmem:[#allocation2 + $0x16d0] sm:$0xff]
    %v1112 = vld [vmem:[#allocation2 + $0x16d8] sm:$0xff]
    %v1113 = vld [vmem:[#allocation2 + $0x16e0] sm:$0xff]
    %v1114 = vld [vmem:[#allocation2 + $0x16e8] sm:$0xff]
    %v1115 = vld [vmem:[#allocation2 + $0x16f0] sm:$0xff]
    %v1116 = vld [vmem:[#allocation2 + $0x16f8] sm:$0xff]
    %v1117 = vld [vmem:[#allocation2 + $0x1700] sm:$0xff]
    %v1118 = vld [vmem:[#allocation2 + $0x1708] sm:$0xff]
    %v1119 = vld [vmem:[#allocation2 + $0x1710] sm:$0xff]
    %v1120 = vld [vmem:[#allocation2 + $0x1718] sm:$0xff]
    %v1121 = vld [vmem:[#allocation2 + $0x1720] sm:$0xff]
    %v1122 = vld [vmem:[#allocation2 + $0x1728] sm:$0xff]
    %v1123 = vld [vmem:[#allocation2 + $0x1730] sm:$0xff]
    %v1124 = vld [vmem:[#allocation2 + $0x1738] sm:$0xff]
    %v1125 = vld [vmem:[#allocation2 + $0x1740] sm:$0xff]
    %v1126 = vld [vmem:[#allocation2 + $0x1748] sm:$0xff]
    %v1127 = vld [vmem:[#allocation2 + $0x1750] sm:$0xff]
    %v1128 = vld [vmem:[#allocation2 + $0x1758] sm:$0xff]
    %v1129 = vld [vmem:[#allocation2 + $0x1760] sm:$0xff]
    %v1130 = vld [vmem:[#allocation2 + $0x1768] sm:$0xff]
    %v1131 = vld [vmem:[#allocation2 + $0x1770] sm:$0xff]
    %v1132 = vld [vmem:[#allocation2 + $0x1778] sm:$0xff]
    %v1133 = vld [vmem:[#allocation2 + $0x1780] sm:$0xff]
    %v1134 = vld [vmem:[#allocation2 + $0x1788] sm:$0xff]
    %v1135 = vld [vmem:[#allocation2 + $0x1790] sm:$0xff]
    %v1136 = vld [vmem:[#allocation2 + $0x1798] sm:$0xff]
    %v1137 = vld [vmem:[#allocation2 + $0x17a0] sm:$0xff]
    %v1138 = vld [vmem:[#allocation2 + $0x17a8] sm:$0xff]
    %v1139 = vld [vmem:[#allocation2 + $0x17b0] sm:$0xff]
    %v1140 = vld [vmem:[#allocation2 + $0x17b8] sm:$0xff]
    %v1141 = vld [vmem:[#allocation2 + $0x17c0] sm:$0xff]
    %v1142 = vld [vmem:[#allocation2 + $0x17c8] sm:$0xff]
    %v1143 = vld [vmem:[#allocation2 + $0x17d0] sm:$0xff]
    %v1144 = vld [vmem:[#allocation2 + $0x17d8] sm:$0xff]
    %v1145 = vld [vmem:[#allocation2 + $0x17e0] sm:$0xff]
    %v1146 = vld [vmem:[#allocation2 + $0x17e8] sm:$0xff]
    %v1147 = vld [vmem:[#allocation2 + $0x17f0] sm:$0xff]
    %v1148 = vld [vmem:[#allocation2 + $0x17f8] sm:$0xff]
    %v1149 = vld [vmem:[#allocation2 + $0x1800] sm:$0xff]
    %v1150 = vld [vmem:[#allocation2 + $0x1808] sm:$0xff]
    %v1151 = vld [vmem:[#allocation2 + $0x1810] sm:$0xff]
    %v1152 = vld [vmem:[#allocation2 + $0x1818] sm:$0xff]
    %v1153 = vld [vmem:[#allocation2 + $0x1820] sm:$0xff]
    %v1154 = vld [vmem:[#allocation2 + $0x1828] sm:$0xff]
    %v1155 = vld [vmem:[#allocation2 + $0x1830] sm:$0xff]
    %v1156 = vld [vmem:[#allocation2 + $0x1838] sm:$0xff]
    %v1157 = vld [vmem:[#allocation2 + $0x1840] sm:$0xff]
    %v1158 = vld [vmem:[#allocation2 + $0x1848] sm:$0xff]
    %v1159 = vld [vmem:[#allocation2 + $0x1850] sm:$0xff]
    %v1160 = vld [vmem:[#allocation2 + $0x1858] sm:$0xff]
    %v1161 = vld [vmem:[#allocation2 + $0x1860] sm:$0xff]
    %v1162 = vld [vmem:[#allocation2 + $0x1868] sm:$0xff]
    %v1163 = vld [vmem:[#allocation2 + $0x1870] sm:$0xff]
    %v1164 = vld [vmem:[#allocation2 + $0x1878] sm:$0xff]
    %v1165 = vld [vmem:[#allocation2 + $0x1880] sm:$0xff]
    %v1166 = vld [vmem:[#allocation2 + $0x1888] sm:$0xff]
    %v1167 = vld [vmem:[#allocation2 + $0x1890] sm:$0xff]
    %v1168 = vld [vmem:[#allocation2 + $0x1898] sm:$0xff]
    %v1169 = vld [vmem:[#allocation2 + $0x18a0] sm:$0xff]
    %v1170 = vld [vmem:[#allocation2 + $0x18a8] sm:$0xff]
    %v1171 = vld [vmem:[#allocation2 + $0x18b0] sm:$0xff]
    %v1172 = vld [vmem:[#allocation2 + $0x18b8] sm:$0xff]
    %v1173 = vld [vmem:[#allocation2 + $0x18c0] sm:$0xff]
    %v1174 = vld [vmem:[#allocation2 + $0x18c8] sm:$0xff]
    %v1175 = vld [vmem:[#allocation2 + $0x18d0] sm:$0xff]
    %v1176 = vld [vmem:[#allocation2 + $0x18d8] sm:$0xff]
    %v1177 = vld [vmem:[#allocation2 + $0x18e0] sm:$0xff]
    %v1178 = vld [vmem:[#allocation2 + $0x18e8] sm:$0xff]
    %v1179 = vld [vmem:[#allocation2 + $0x18f0] sm:$0xff]
    %v1180 = vld [vmem:[#allocation2 + $0x18f8] sm:$0xff]
    %v1181 = vld [vmem:[#allocation2 + $0x1900] sm:$0xff]
    %v1182 = vld [vmem:[#allocation2 + $0x1908] sm:$0xff]
    %v1183 = vld [vmem:[#allocation2 + $0x1910] sm:$0xff]
    %v1184 = vld [vmem:[#allocation2 + $0x1918] sm:$0xff]
    %v1185 = vld [vmem:[#allocation2 + $0x1920] sm:$0xff]
    %v1186 = vld [vmem:[#allocation2 + $0x1928] sm:$0xff]
    %v1187 = vld [vmem:[#allocation2 + $0x1930] sm:$0xff]
    %v1188 = vld [vmem:[#allocation2 + $0x1938] sm:$0xff]
    %v1189 = vld [vmem:[#allocation2 + $0x1940] sm:$0xff]
    %v1190 = vld [vmem:[#allocation2 + $0x1948] sm:$0xff]
    %v1191 = vld [vmem:[#allocation2 + $0x1950] sm:$0xff]
    %v1192 = vld [vmem:[#allocation2 + $0x1958] sm:$0xff]
    %v1193 = vld [vmem:[#allocation2 + $0x1960] sm:$0xff]
    %v1194 = vld [vmem:[#allocation2 + $0x1968] sm:$0xff]
    %v1195 = vld [vmem:[#allocation2 + $0x1970] sm:$0xff]
    %v1196 = vld [vmem:[#allocation2 + $0x1978] sm:$0xff]
    %v1197 = vld [vmem:[#allocation2 + $0x1980] sm:$0xff]
    %v1198 = vld [vmem:[#allocation2 + $0x1988] sm:$0xff]
    %v1199 = vld [vmem:[#allocation2 + $0x1990] sm:$0xff]
    %v1200 = vld [vmem:[#allocation2 + $0x1998] sm:$0xff]
    %v1201 = vld [vmem:[#allocation2 + $0x19a0] sm:$0xff]
    %v1202 = vld [vmem:[#allocation2 + $0x19a8] sm:$0xff]
    %v1203 = vld [vmem:[#allocation2 + $0x19b0] sm:$0xff]
    %v1204 = vld [vmem:[#allocation2 + $0x19b8] sm:$0xff]
    %v1205 = vld [vmem:[#allocation2 + $0x19c0] sm:$0xff]
    %v1206 = vld [vmem:[#allocation2 + $0x19c8] sm:$0xff]
    %v1207 = vld [vmem:[#allocation2 + $0x19d0] sm:$0xff]
    %v1208 = vld [vmem:[#allocation2 + $0x19d8] sm:$0xff]
    %v1209 = vld [vmem:[#allocation2 + $0x19e0] sm:$0xff]
    %v1210 = vld [vmem:[#allocation2 + $0x19e8] sm:$0xff]
    %v1211 = vld [vmem:[#allocation2 + $0x19f0] sm:$0xff]
    %v1212 = vld [vmem:[#allocation2 + $0x19f8] sm:$0xff]
    %v1213 = vld [vmem:[#allocation2 + $0x1a00] sm:$0xff]
    %v1214 = vld [vmem:[#allocation2 + $0x1a08] sm:$0xff]
    %v1215 = vld [vmem:[#allocation2 + $0x1a10] sm:$0xff]
    %v1216 = vld [vmem:[#allocation2 + $0x1a18] sm:$0xff]
    %v1217 = vld [vmem:[#allocation2 + $0x1a20] sm:$0xff]
    %v1218 = vld [vmem:[#allocation2 + $0x1a28] sm:$0xff]
    %v1219 = vld [vmem:[#allocation2 + $0x1a30] sm:$0xff]
    %v1220 = vld [vmem:[#allocation2 + $0x1a38] sm:$0xff]
    %v1221 = vld [vmem:[#allocation2 + $0x1a40] sm:$0xff]
    %v1222 = vld [vmem:[#allocation2 + $0x1a48] sm:$0xff]
    %v1223 = vld [vmem:[#allocation2 + $0x1a50] sm:$0xff]
    %v1224 = vld [vmem:[#allocation2 + $0x1a58] sm:$0xff]
    %v1225 = vld [vmem:[#allocation2 + $0x1a60] sm:$0xff]
    %v1226 = vld [vmem:[#allocation2 + $0x1a68] sm:$0xff]
    %v1227 = vld [vmem:[#allocation2 + $0x1a70] sm:$0xff]
    %v1228 = vld [vmem:[#allocation2 + $0x1a78] sm:$0xff]
    %v1229 = vld [vmem:[#allocation2 + $0x1a80] sm:$0xff]
    %v1230 = vld [vmem:[#allocation2 + $0x1a88] sm:$0xff]
    %v1231 = vld [vmem:[#allocation2 + $0x1a90] sm:$0xff]
    %v1232 = vld [vmem:[#allocation2 + $0x1a98] sm:$0xff]
    %v1233 = vld [vmem:[#allocation2 + $0x1aa0] sm:$0xff]
    %v1234 = vld [vmem:[#allocation2 + $0x1aa8] sm:$0xff]
    %v1235 = vld [vmem:[#allocation2 + $0x1ab0] sm:$0xff]
    %v1236 = vld [vmem:[#allocation2 + $0x1ab8] sm:$0xff]
    %v1237 = vld [vmem:[#allocation2 + $0x1ac0] sm:$0xff]
    %v1238 = vld [vmem:[#allocation2 + $0x1ac8] sm:$0xff]
    %v1239 = vld [vmem:[#allocation2 + $0x1ad0] sm:$0xff]
    %v1240 = vld [vmem:[#allocation2 + $0x1ad8] sm:$0xff]
    %v1241 = vld [vmem:[#allocation2 + $0x1ae0] sm:$0xff]
    %v1242 = vld [vmem:[#allocation2 + $0x1ae8] sm:$0xff]
    %v1243 = vld [vmem:[#allocation2 + $0x1af0] sm:$0xff]
    %v1244 = vld [vmem:[#allocation2 + $0x1af8] sm:$0xff]
    %v1245 = vld [vmem:[#allocation2 + $0x1b00] sm:$0xff]
    %v1246 = vld [vmem:[#allocation2 + $0x1b08] sm:$0xff]
    %v1247 = vld [vmem:[#allocation2 + $0x1b10] sm:$0xff]
    %v1248 = vld [vmem:[#allocation2 + $0x1b18] sm:$0xff]
    %v1249 = vld [vmem:[#allocation2 + $0x1b20] sm:$0xff]
    %v1250 = vld [vmem:[#allocation2 + $0x1b28] sm:$0xff]
    %v1251 = vld [vmem:[#allocation2 + $0x1b30] sm:$0xff]
    %v1252 = vld [vmem:[#allocation2 + $0x1b38] sm:$0xff]
    %v1253 = vld [vmem:[#allocation2 + $0x1b40] sm:$0xff]
    %v1254 = vld [vmem:[#allocation2 + $0x1b48] sm:$0xff]
    %v1255 = vld [vmem:[#allocation2 + $0x1b50] sm:$0xff]
    %v1256 = vld [vmem:[#allocation2 + $0x1b58] sm:$0xff]
    %v1257 = vld [vmem:[#allocation2 + $0x1b60] sm:$0xff]
    %v1258 = vld [vmem:[#allocation2 + $0x1b68] sm:$0xff]
    %v1259 = vld [vmem:[#allocation2 + $0x1b70] sm:$0xff]
    %v1260 = vld [vmem:[#allocation2 + $0x1b78] sm:$0xff]
    %v1261 = vld [vmem:[#allocation2 + $0x1b80] sm:$0xff]
    %v1262 = vld [vmem:[#allocation2 + $0x1b88] sm:$0xff]
    %v1263 = vld [vmem:[#allocation2 + $0x1b90] sm:$0xff]
    %v1264 = vld [vmem:[#allocation2 + $0x1b98] sm:$0xff]
    %v1265 = vld [vmem:[#allocation2 + $0x1ba0] sm:$0xff]
    %v1266 = vld [vmem:[#allocation2 + $0x1ba8] sm:$0xff]
    %v1267 = vld [vmem:[#allocation2 + $0x1bb0] sm:$0xff]
    %v1268 = vld [vmem:[#allocation2 + $0x1bb8] sm:$0xff]
    %v1269 = vld [vmem:[#allocation2 + $0x1bc0] sm:$0xff]
    %v1270 = vld [vmem:[#allocation2 + $0x1bc8] sm:$0xff]
    %v1271 = vld [vmem:[#allocation2 + $0x1bd0] sm:$0xff]
    %v1272 = vld [vmem:[#allocation2 + $0x1bd8] sm:$0xff]
    %v1273 = vld [vmem:[#allocation2 + $0x1be0] sm:$0xff]
    %v1274 = vld [vmem:[#allocation2 + $0x1be8] sm:$0xff]
    %v1275 = vld [vmem:[#allocation2 + $0x1bf0] sm:$0xff]
    %v1276 = vld [vmem:[#allocation2 + $0x1bf8] sm:$0xff]
    %v1277 = vld [vmem:[#allocation2 + $0x1c00] sm:$0xff]
    %v1278 = vld [vmem:[#allocation2 + $0x1c08] sm:$0xff]
    %v1279 = vld [vmem:[#allocation2 + $0x1c10] sm:$0xff]
    %v1280 = vld [vmem:[#allocation2 + $0x1c18] sm:$0xff]
    %v1281 = vld [vmem:[#allocation2 + $0x1c20] sm:$0xff]
    %v1282 = vld [vmem:[#allocation2 + $0x1c28] sm:$0xff]
    %v1283 = vld [vmem:[#allocation2 + $0x1c30] sm:$0xff]
    %v1284 = vld [vmem:[#allocation2 + $0x1c38] sm:$0xff]
    %v1285 = vld [vmem:[#allocation2 + $0x1c40] sm:$0xff]
    %v1286 = vld [vmem:[#allocation2 + $0x1c48] sm:$0xff]
    %v1287 = vld [vmem:[#allocation2 + $0x1c50] sm:$0xff]
    %v1288 = vld [vmem:[#allocation2 + $0x1c58] sm:$0xff]
    %v1289 = vld [vmem:[#allocation2 + $0x1c60] sm:$0xff]
    %v1290 = vld [vmem:[#allocation2 + $0x1c68] sm:$0xff]
    %v1291 = vld [vmem:[#allocation2 + $0x1c70] sm:$0xff]
    %v1292 = vld [vmem:[#allocation2 + $0x1c78] sm:$0xff]
    %v1293 = vld [vmem:[#allocation2 + $0x1c80] sm:$0xff]
    %v1294 = vld [vmem:[#allocation2 + $0x1c88] sm:$0xff]
    %v1295 = vld [vmem:[#allocation2 + $0x1c90] sm:$0xff]
    %v1296 = vld [vmem:[#allocation2 + $0x1c98] sm:$0xff]
    %v1297 = vld [vmem:[#allocation2 + $0x1ca0] sm:$0xff]
    %v1298 = vld [vmem:[#allocation2 + $0x1ca8] sm:$0xff]
    %v1299 = vld [vmem:[#allocation2 + $0x1cb0] sm:$0xff]
    %v1300 = vld [vmem:[#allocation2 + $0x1cb8] sm:$0xff]
    %v1301 = vld [vmem:[#allocation2 + $0x1cc0] sm:$0xff]
    %v1302 = vld [vmem:[#allocation2 + $0x1cc8] sm:$0xff]
    %v1303 = vld [vmem:[#allocation2 + $0x1cd0] sm:$0xff]
    %v1304 = vld [vmem:[#allocation2 + $0x1cd8] sm:$0xff]
    %v1305 = vld [vmem:[#allocation2 + $0x1ce0] sm:$0xff]
    %v1306 = vld [vmem:[#allocation2 + $0x1ce8] sm:$0xff]
    %v1307 = vld [vmem:[#allocation2 + $0x1cf0] sm:$0xff]
    %v1308 = vld [vmem:[#allocation2 + $0x1cf8] sm:$0xff]
    %v1309 = vld [vmem:[#allocation2 + $0x1d00] sm:$0xff]
    %v1310 = vld [vmem:[#allocation2 + $0x1d08] sm:$0xff]
    %v1311 = vld [vmem:[#allocation2 + $0x1d10] sm:$0xff]
    %v1312 = vld [vmem:[#allocation2 + $0x1d18] sm:$0xff]
    %v1313 = vld [vmem:[#allocation2 + $0x1d20] sm:$0xff]
    %v1314 = vld [vmem:[#allocation2 + $0x1d28] sm:$0xff]
    %v1315 = vld [vmem:[#allocation2 + $0x1d30] sm:$0xff]
    %v1316 = vld [vmem:[#allocation2 + $0x1d38] sm:$0xff]
    %v1317 = vld [vmem:[#allocation2 + $0x1d40] sm:$0xff]
    %v1318 = vld [vmem:[#allocation2 + $0x1d48] sm:$0xff]
    %v1319 = vld [vmem:[#allocation2 + $0x1d50] sm:$0xff]
    %v1320 = vld [vmem:[#allocation2 + $0x1d58] sm:$0xff]
    %v1321 = vld [vmem:[#allocation2 + $0x1d60] sm:$0xff]
    %v1322 = vld [vmem:[#allocation2 + $0x1d68] sm:$0xff]
    %v1323 = vld [vmem:[#allocation2 + $0x1d70] sm:$0xff]
    %v1324 = vld [vmem:[#allocation2 + $0x1d78] sm:$0xff]
    %v1325 = vld [vmem:[#allocation2 + $0x1d80] sm:$0xff]
    %v1326 = vld [vmem:[#allocation2 + $0x1d88] sm:$0xff]
    %v1327 = vld [vmem:[#allocation2 + $0x1d90] sm:$0xff]
    %v1328 = vld [vmem:[#allocation2 + $0x1d98] sm:$0xff]
    %v1329 = vld [vmem:[#allocation2 + $0x1da0] sm:$0xff]
    %v1330 = vld [vmem:[#allocation2 + $0x1da8] sm:$0xff]
    %v1331 = vld [vmem:[#allocation2 + $0x1db0] sm:$0xff]
    %v1332 = vld [vmem:[#allocation2 + $0x1db8] sm:$0xff]
    %v1333 = vld [vmem:[#allocation2 + $0x1dc0] sm:$0xff]
    %v1334 = vld [vmem:[#allocation2 + $0x1dc8] sm:$0xff]
    %v1335 = vld [vmem:[#allocation2 + $0x1dd0] sm:$0xff]
    %v1336 = vld [vmem:[#allocation2 + $0x1dd8] sm:$0xff]
    %v1337 = vld [vmem:[#allocation2 + $0x1de0] sm:$0xff]
    %v1338 = vld [vmem:[#allocation2 + $0x1de8] sm:$0xff]
    %v1339 = vld [vmem:[#allocation2 + $0x1df0] sm:$0xff]
    %v1340 = vld [vmem:[#allocation2 + $0x1df8] sm:$0xff]
    %v1341 = vld [vmem:[#allocation2 + $0x1e00] sm:$0xff]
    %v1342 = vld [vmem:[#allocation2 + $0x1e08] sm:$0xff]
    %v1343 = vld [vmem:[#allocation2 + $0x1e10] sm:$0xff]
    %v1344 = vld [vmem:[#allocation2 + $0x1e18] sm:$0xff]
    %v1345 = vld [vmem:[#allocation2 + $0x1e20] sm:$0xff]
    %v1346 = vld [vmem:[#allocation2 + $0x1e28] sm:$0xff]
    %v1347 = vld [vmem:[#allocation2 + $0x1e30] sm:$0xff]
    %v1348 = vld [vmem:[#allocation2 + $0x1e38] sm:$0xff]
    %v1349 = vld [vmem:[#allocation2 + $0x1e40] sm:$0xff]
    %v1350 = vld [vmem:[#allocation2 + $0x1e48] sm:$0xff]
    %v1351 = vld [vmem:[#allocation2 + $0x1e50] sm:$0xff]
    %v1352 = vld [vmem:[#allocation2 + $0x1e58] sm:$0xff]
    %v1353 = vld [vmem:[#allocation2 + $0x1e60] sm:$0xff]
    %v1354 = vld [vmem:[#allocation2 + $0x1e68] sm:$0xff]
    %v1355 = vld [vmem:[#allocation2 + $0x1e70] sm:$0xff]
    %v1356 = vld [vmem:[#allocation2 + $0x1e78] sm:$0xff]
    %v1357 = vld [vmem:[#allocation2 + $0x1e80] sm:$0xff]
    %v1358 = vld [vmem:[#allocation2 + $0x1e88] sm:$0xff]
    %v1359 = vld [vmem:[#allocation2 + $0x1e90] sm:$0xff]
    %v1360 = vld [vmem:[#allocation2 + $0x1e98] sm:$0xff]
    %v1361 = vld [vmem:[#allocation2 + $0x1ea0] sm:$0xff]
    %v1362 = vld [vmem:[#allocation2 + $0x1ea8] sm:$0xff]
    %v1363 = vld [vmem:[#allocation2 + $0x1eb0] sm:$0xff]
    %v1364 = vld [vmem:[#allocation2 + $0x1eb8] sm:$0xff]
    %v1365 = vld [vmem:[#allocation2 + $0x1ec0] sm:$0xff]
    %v1366 = vld [vmem:[#allocation2 + $0x1ec8] sm:$0xff]
    %v1367 = vld [vmem:[#allocation2 + $0x1ed0] sm:$0xff]
    %v1368 = vld [vmem:[#allocation2 + $0x1ed8] sm:$0xff]
    %v1369 = vld [vmem:[#allocation2 + $0x1ee0] sm:$0xff]
    %v1370 = vld [vmem:[#allocation2 + $0x1ee8] sm:$0xff]
    %v1371 = vld [vmem:[#allocation2 + $0x1ef0] sm:$0xff]
    %v1372 = vld [vmem:[#allocation2 + $0x1ef8] sm:$0xff]
    %v1373 = vld [vmem:[#allocation2 + $0x1f00] sm:$0xff]
    %v1374 = vld [vmem:[#allocation2 + $0x1f08] sm:$0xff]
    %v1375 = vld [vmem:[#allocation2 + $0x1f10] sm:$0xff]
    %v1376 = vld [vmem:[#allocation2 + $0x1f18] sm:$0xff]
    %v1377 = vld [vmem:[#allocation2 + $0x1f20] sm:$0xff]
    %v1378 = vld [vmem:[#allocation2 + $0x1f28] sm:$0xff]
    %v1379 = vld [vmem:[#allocation2 + $0x1f30] sm:$0xff]
    %v1380 = vld [vmem:[#allocation2 + $0x1f38] sm:$0xff]
    %v1381 = vld [vmem:[#allocation2 + $0x1f40] sm:$0xff]
    %v1382 = vld [vmem:[#allocation2 + $0x1f48] sm:$0xff]
    %v1383 = vld [vmem:[#allocation2 + $0x1f50] sm:$0xff]
    %v1384 = vld [vmem:[#allocation2 + $0x1f58] sm:$0xff]
    %v1385 = vld [vmem:[#allocation2 + $0x1f60] sm:$0xff]
    %v1386 = vld [vmem:[#allocation2 + $0x1f68] sm:$0xff]
    %v1387 = vld [vmem:[#allocation2 + $0x1f70] sm:$0xff]
    %v1388 = vld [vmem:[#allocation2 + $0x1f78] sm:$0xff]
    %v1389 = vld [vmem:[#allocation2 + $0x1f80] sm:$0xff]
    %v1390 = vld [vmem:[#allocation2 + $0x1f88] sm:$0xff]
    %v1391 = vld [vmem:[#allocation2 + $0x1f90] sm:$0xff]
    %v1392 = vld [vmem:[#allocation2 + $0x1f98] sm:$0xff]
    %v1393 = vld [vmem:[#allocation2 + $0x1fa0] sm:$0xff]
    %v1394 = vld [vmem:[#allocation2 + $0x1fa8] sm:$0xff]
    %v1395 = vld [vmem:[#allocation2 + $0x1fb0] sm:$0xff]
    %v1396 = vld [vmem:[#allocation2 + $0x1fb8] sm:$0xff]
    %v1397 = vld [vmem:[#allocation2 + $0x1fc0] sm:$0xff]
    %v1398 = vld [vmem:[#allocation2 + $0x1fc8] sm:$0xff]
    %v1399 = vld [vmem:[#allocation2 + $0x1fd0] sm:$0xff]
    %v1400 = vld [vmem:[#allocation2 + $0x1fd8] sm:$0xff]
    %v1401 = vld [vmem:[#allocation2 + $0x1fe0] sm:$0xff]
    %v1402 = vld [vmem:[#allocation2 + $0x1fe8] sm:$0xff]
    %v1403 = vld [vmem:[#allocation2 + $0x1ff0] sm:$0xff]
    %v1404 = vld [vmem:[#allocation2 + $0x1ff8] sm:$0xff]
    %vm1413 = vcmask 1041409
    %v1414 = vsel %vm1413, %v341, %v289
    %v1415 = vsel %vm1413, %v354, %v302
    %v1416 = vsel %vm1413, %v367, %v315
    %v1417 = vsel %vm1413, %v380, %v328
    %1422 = vmatprep.subr.mxu0 %v894
    %1423 = vmatpush1.msra.mxu0 %v893
    %1424 = vmatprep.subr.mxu0 %v902
    %1425 = vmatpush1.msra.mxu0 %v901
    %1426 = vmatprep.subr.mxu0 %v910
    %1427 = vmatpush1.msra.mxu0 %v909
    %1428 = vmatprep.subr.mxu0 %v918
    %1429 = vmatpush1.msra.mxu0 %v917
    %1430 = vmatprep.subr.mxu0 %v926
    %1431 = vmatpush1.msra.mxu0 %v925
    %1432 = vmatprep.subr.mxu0 %v934
    %1433 = vmatpush1.msra.mxu0 %v933
    %1434 = vmatprep.subr.mxu0 %v942
    %1435 = vmatpush1.msra.mxu0 %v941
    %1436 = vmatprep.subr.mxu0 %v950
    %1437 = vmatpush1.msra.mxu0 %v949
    %1438 = vmatprep.subr.mxu0 %v958
    %1439 = vmatpush1.msra.mxu0 %v957
    %1440 = vmatprep.subr.mxu0 %v966
    %1441 = vmatpush1.msra.mxu0 %v965
    %1442 = vmatprep.subr.mxu0 %v974
    %1443 = vmatpush1.msra.mxu0 %v973
    %1444 = vmatprep.subr.mxu0 %v982
    %1445 = vmatpush1.msra.mxu0 %v981
    %1446 = vmatprep.subr.mxu0 %v990
    %1447 = vmatpush1.msra.mxu0 %v989
    %1448 = vmatprep.subr.mxu0 %v998
    %1449 = vmatpush1.msra.mxu0 %v997
    %1450 = vmatprep.subr.mxu0 %v1006
    %1451 = vmatpush1.msra.mxu0 %v1005
    %1452 = vmatprep.subr.mxu0 %v1014
    %1453 = vmatpush1.msra.mxu0 %v1013
    %1454 = vmatprep.subr.mxu0 %v1022
    %1455 = vmatpush1.msra.mxu0 %v1021
    %1456 = vmatprep.subr.mxu0 %v1030
    %1457 = vmatpush1.msra.mxu0 %v1029
    %1458 = vmatprep.subr.mxu0 %v1038
    %1459 = vmatpush1.msra.mxu0 %v1037
    %1460 = vmatprep.subr.mxu0 %v1046
    %1461 = vmatpush1.msra.mxu0 %v1045
    %1462 = vmatprep.subr.mxu0 %v1054
    %1463 = vmatpush1.msra.mxu0 %v1053
    %1464 = vmatprep.subr.mxu0 %v1062
    %1465 = vmatpush1.msra.mxu0 %v1061
    %1466 = vmatprep.subr.mxu0 %v1070
    %1467 = vmatpush1.msra.mxu0 %v1069
    %1468 = vmatprep.subr.mxu0 %v1078
    %1469 = vmatpush1.msra.mxu0 %v1077
    %1470 = vmatprep.subr.mxu0 %v1086
    %1471 = vmatpush1.msra.mxu0 %v1085
    %1472 = vmatprep.subr.mxu0 %v1094
    %1473 = vmatpush1.msra.mxu0 %v1093
    %1474 = vmatprep.subr.mxu0 %v1102
    %1475 = vmatpush1.msra.mxu0 %v1101
    %1476 = vmatprep.subr.mxu0 %v1110
    %1477 = vmatpush1.msra.mxu0 %v1109
    %1478 = vmatprep.subr.mxu0 %v1118
    %1479 = vmatpush1.msra.mxu0 %v1117
    %1480 = vmatprep.subr.mxu0 %v1126
    %1481 = vmatpush1.msra.mxu0 %v1125
    %1482 = vmatprep.subr.mxu0 %v1134
    %1483 = vmatpush1.msra.mxu0 %v1133
    %1484 = vmatprep.subr.mxu0 %v1142
    %1485 = vmatpush1.msra.mxu0 %v1141
    %1486 = vmatprep.mubr.f32.mxu0 %v1415
    %1487 = vmatmul.mubr.f32.gmra.mrb[0].mxu0 %v1414
    %v1488 = vpop.f32.mrb[0].mxu0
    %v1489 = vadd.f32 0.0, %v1488
    %v1490 = vpop.f32.mrb[0].mxu0
    %v1491 = vadd.f32 0.0, %v1490
    %1492 = vdwg.mxu0
    %1493 = vmatprep.subr.mxu0 %v1150
    %1494 = vmatpush1.msra.mxu0 %v1149
    %1495 = vmatprep.subr.mxu0 %v1158
    %1496 = vmatpush1.msra.mxu0 %v1157
    %1497 = vmatprep.subr.mxu0 %v1166
    %1498 = vmatpush1.msra.mxu0 %v1165
    %1499 = vmatprep.subr.mxu0 %v1174
    %1500 = vmatpush1.msra.mxu0 %v1173
    %1501 = vmatprep.subr.mxu0 %v1182
    %1502 = vmatpush1.msra.mxu0 %v1181
    %1503 = vmatprep.subr.mxu0 %v1190
    %1504 = vmatpush1.msra.mxu0 %v1189
    %1505 = vmatprep.subr.mxu0 %v1198
    %1506 = vmatpush1.msra.mxu0 %v1197
    %1507 = vmatprep.subr.mxu0 %v1206
    %1508 = vmatpush1.msra.mxu0 %v1205
    %1509 = vmatprep.subr.mxu0 %v1214
    %1510 = vmatpush1.msra.mxu0 %v1213
    %1511 = vmatprep.subr.mxu0 %v1222
    %1512 = vmatpush1.msra.mxu0 %v1221
    %1513 = vmatprep.subr.mxu0 %v1230
    %1514 = vmatpush1.msra.mxu0 %v1229
    %1515 = vmatprep.subr.mxu0 %v1238
    %1516 = vmatpush1.msra.mxu0 %v1237
    %1517 = vmatprep.subr.mxu0 %v1246
    %1518 = vmatpush1.msra.mxu0 %v1245
    %1519 = vmatprep.subr.mxu0 %v1254
    %1520 = vmatpush1.msra.mxu0 %v1253
    %1521 = vmatprep.subr.mxu0 %v1262
    %1522 = vmatpush1.msra.mxu0 %v1261
    %1523 = vmatprep.subr.mxu0 %v1270
    %1524 = vmatpush1.msra.mxu0 %v1269
    %1525 = vmatprep.subr.mxu0 %v1278
    %1526 = vmatpush1.msra.mxu0 %v1277
    %1527 = vmatprep.subr.mxu0 %v1286
    %1528 = vmatpush1.msra.mxu0 %v1285
    %1529 = vmatprep.subr.mxu0 %v1294
    %1530 = vmatpush1.msra.mxu0 %v1293
    %1531 = vmatprep.subr.mxu0 %v1302
    %1532 = vmatpush1.msra.mxu0 %v1301
    %1533 = vmatprep.subr.mxu0 %v1310
    %1534 = vmatpush1.msra.mxu0 %v1309
    %1535 = vmatprep.subr.mxu0 %v1318
    %1536 = vmatpush1.msra.mxu0 %v1317
    %1537 = vmatprep.subr.mxu0 %v1326
    %1538 = vmatpush1.msra.mxu0 %v1325
    %1539 = vmatprep.subr.mxu0 %v1334
    %1540 = vmatpush1.msra.mxu0 %v1333
    %1541 = vmatprep.subr.mxu0 %v1342
    %1542 = vmatpush1.msra.mxu0 %v1341
    %1543 = vmatprep.subr.mxu0 %v1350
    %1544 = vmatpush1.msra.mxu0 %v1349
    %1545 = vmatprep.subr.mxu0 %v1358
    %1546 = vmatpush1.msra.mxu0 %v1357
    %1547 = vmatprep.subr.mxu0 %v1366
    %1548 = vmatpush1.msra.mxu0 %v1365
    %1549 = vmatprep.subr.mxu0 %v1374
    %1550 = vmatpush1.msra.mxu0 %v1373
    %1551 = vmatprep.subr.mxu0 %v1382
    %1552 = vmatpush1.msra.mxu0 %v1381
    %1553 = vmatprep.subr.mxu0 %v1390
    %1554 = vmatpush1.msra.mxu0 %v1389
    %1555 = vmatprep.subr.mxu0 %v1398
    %1556 = vmatpush1.msra.mxu0 %v1397
    %1557 = vmatprep.mubr.f32.mxu0 %v1417
    %1558 = vmatmul.mubr.f32.gmra.mrb[0].mxu0 %v1416
    %v1559 = vpop.f32.mrb[0].mxu0
    %v1560 = vadd.f32 %v1489, %v1559
    %v1561 = vpop.f32.mrb[0].mxu0
    %v1562 = vadd.f32 %v1491, %v1561
    %1563 = vdwg.mxu0
    %1564 = vmatprep.subr.mxu0 %v896
    %1565 = vmatpush1.msra.mxu0 %v895
    %1566 = vmatprep.subr.mxu0 %v904
    %1567 = vmatpush1.msra.mxu0 %v903
    %1568 = vmatprep.subr.mxu0 %v912
    %1569 = vmatpush1.msra.mxu0 %v911
    %1570 = vmatprep.subr.mxu0 %v920
    %1571 = vmatpush1.msra.mxu0 %v919
    %1572 = vmatprep.subr.mxu0 %v928
    %1573 = vmatpush1.msra.mxu0 %v927
    %1574 = vmatprep.subr.mxu0 %v936
    %1575 = vmatpush1.msra.mxu0 %v935
    %1576 = vmatprep.subr.mxu0 %v944
    %1577 = vmatpush1.msra.mxu0 %v943
    %1578 = vmatprep.subr.mxu0 %v952
    %1579 = vmatpush1.msra.mxu0 %v951
    %1580 = vmatprep.subr.mxu0 %v960
    %1581 = vmatpush1.msra.mxu0 %v959
    %1582 = vmatprep.subr.mxu0 %v968
    %1583 = vmatpush1.msra.mxu0 %v967
    %1584 = vmatprep.subr.mxu0 %v976
    %1585 = vmatpush1.msra.mxu0 %v975
    %1586 = vmatprep.subr.mxu0 %v984
    %1587 = vmatpush1.msra.mxu0 %v983
    %1588 = vmatprep.subr.mxu0 %v992
    %1589 = vmatpush1.msra.mxu0 %v991
    %1590 = vmatprep.subr.mxu0 %v1000
    %1591 = vmatpush1.msra.mxu0 %v999
    %1592 = vmatprep.subr.mxu0 %v1008
    %1593 = vmatpush1.msra.mxu0 %v1007
    %1594 = vmatprep.subr.mxu0 %v1016
    %1595 = vmatpush1.msra.mxu0 %v1015
    %1596 = vmatprep.subr.mxu0 %v1024
    %1597 = vmatpush1.msra.mxu0 %v1023
    %1598 = vmatprep.subr.mxu0 %v1032
    %1599 = vmatpush1.msra.mxu0 %v1031
    %1600 = vmatprep.subr.mxu0 %v1040
    %1601 = vmatpush1.msra.mxu0 %v1039
    %1602 = vmatprep.subr.mxu0 %v1048
    %1603 = vmatpush1.msra.mxu0 %v1047
    %1604 = vmatprep.subr.mxu0 %v1056
    %1605 = vmatpush1.msra.mxu0 %v1055
    %1606 = vmatprep.subr.mxu0 %v1064
    %1607 = vmatpush1.msra.mxu0 %v1063
    %1608 = vmatprep.subr.mxu0 %v1072
    %1609 = vmatpush1.msra.mxu0 %v1071
    %1610 = vmatprep.subr.mxu0 %v1080
    %1611 = vmatpush1.msra.mxu0 %v1079
    %1612 = vmatprep.subr.mxu0 %v1088
    %1613 = vmatpush1.msra.mxu0 %v1087
    %1614 = vmatprep.subr.mxu0 %v1096
    %1615 = vmatpush1.msra.mxu0 %v1095
    %1616 = vmatprep.subr.mxu0 %v1104
    %1617 = vmatpush1.msra.mxu0 %v1103
    %1618 = vmatprep.subr.mxu0 %v1112
    %1619 = vmatpush1.msra.mxu0 %v1111
    %1620 = vmatprep.subr.mxu0 %v1120
    %1621 = vmatpush1.msra.mxu0 %v1119
    %1622 = vmatprep.subr.mxu0 %v1128
    %1623 = vmatpush1.msra.mxu0 %v1127
    %1624 = vmatprep.subr.mxu0 %v1136
    %1625 = vmatpush1.msra.mxu0 %v1135
    %1626 = vmatprep.subr.mxu0 %v1144
    %1627 = vmatpush1.msra.mxu0 %v1143
    %1628 = vmatprep.mubr.f32.mxu0 %v1415
    %1629 = vmatmul.mubr.f32.gmra.mrb[0].mxu0 %v1414
    %v1630 = vpop.f32.mrb[0].mxu0
    %v1631 = vadd.f32 0.0, %v1630
    %v1632 = vpop.f32.mrb[0].mxu0
    %v1633 = vadd.f32 0.0, %v1632
    %1634 = vdwg.mxu0
    %1635 = vmatprep.subr.mxu0 %v1152
    %1636 = vmatpush1.msra.mxu0 %v1151
    %1637 = vmatprep.subr.mxu0 %v1160
    %1638 = vmatpush1.msra.mxu0 %v1159
    %1639 = vmatprep.subr.mxu0 %v1168
    %1640 = vmatpush1.msra.mxu0 %v1167
    %1641 = vmatprep.subr.mxu0 %v1176
    %1642 = vmatpush1.msra.mxu0 %v1175
    %1643 = vmatprep.subr.mxu0 %v1184
    %1644 = vmatpush1.msra.mxu0 %v1183
    %1645 = vmatprep.subr.mxu0 %v1192
    %1646 = vmatpush1.msra.mxu0 %v1191
    %1647 = vmatprep.subr.mxu0 %v1200
    %1648 = vmatpush1.msra.mxu0 %v1199
    %1649 = vmatprep.subr.mxu0 %v1208
    %1650 = vmatpush1.msra.mxu0 %v1207
    %1651 = vmatprep.subr.mxu0 %v1216
    %1652 = vmatpush1.msra.mxu0 %v1215
    %1653 = vmatprep.subr.mxu0 %v1224
    %1654 = vmatpush1.msra.mxu0 %v1223
    %1655 = vmatprep.subr.mxu0 %v1232
    %1656 = vmatpush1.msra.mxu0 %v1231
    %1657 = vmatprep.subr.mxu0 %v1240
    %1658 = vmatpush1.msra.mxu0 %v1239
    %1659 = vmatprep.subr.mxu0 %v1248
    %1660 = vmatpush1.msra.mxu0 %v1247
    %1661 = vmatprep.subr.mxu0 %v1256
    %1662 = vmatpush1.msra.mxu0 %v1255
    %1663 = vmatprep.subr.mxu0 %v1264
    %1664 = vmatpush1.msra.mxu0 %v1263
    %1665 = vmatprep.subr.mxu0 %v1272
    %1666 = vmatpush1.msra.mxu0 %v1271
    %1667 = vmatprep.subr.mxu0 %v1280
    %1668 = vmatpush1.msra.mxu0 %v1279
    %1669 = vmatprep.subr.mxu0 %v1288
    %1670 = vmatpush1.msra.mxu0 %v1287
    %1671 = vmatprep.subr.mxu0 %v1296
    %1672 = vmatpush1.msra.mxu0 %v1295
    %1673 = vmatprep.subr.mxu0 %v1304
    %1674 = vmatpush1.msra.mxu0 %v1303
    %1675 = vmatprep.subr.mxu0 %v1312
    %1676 = vmatpush1.msra.mxu0 %v1311
    %1677 = vmatprep.subr.mxu0 %v1320
    %1678 = vmatpush1.msra.mxu0 %v1319
    %1679 = vmatprep.subr.mxu0 %v1328
    %1680 = vmatpush1.msra.mxu0 %v1327
    %1681 = vmatprep.subr.mxu0 %v1336
    %1682 = vmatpush1.msra.mxu0 %v1335
    %1683 = vmatprep.subr.mxu0 %v1344
    %1684 = vmatpush1.msra.mxu0 %v1343
    %1685 = vmatprep.subr.mxu0 %v1352
    %1686 = vmatpush1.msra.mxu0 %v1351
    %1687 = vmatprep.subr.mxu0 %v1360
    %1688 = vmatpush1.msra.mxu0 %v1359
    %1689 = vmatprep.subr.mxu0 %v1368
    %1690 = vmatpush1.msra.mxu0 %v1367
    %1691 = vmatprep.subr.mxu0 %v1376
    %1692 = vmatpush1.msra.mxu0 %v1375
    %1693 = vmatprep.subr.mxu0 %v1384
    %1694 = vmatpush1.msra.mxu0 %v1383
    %1695 = vmatprep.subr.mxu0 %v1392
    %1696 = vmatpush1.msra.mxu0 %v1391
    %1697 = vmatprep.subr.mxu0 %v1400
    %1698 = vmatpush1.msra.mxu0 %v1399
    %1699 = vmatprep.mubr.f32.mxu0 %v1417
    %1700 = vmatmul.mubr.f32.gmra.mrb[0].mxu0 %v1416
    %v1701 = vpop.f32.mrb[0].mxu0
    %v1702 = vadd.f32 %v1631, %v1701
    %v1703 = vpop.f32.mrb[0].mxu0
    %v1704 = vadd.f32 %v1633, %v1703
    %1705 = vdwg.mxu0
    %1706 = vmatprep.subr.mxu0 %v898
    %1707 = vmatpush1.msra.mxu0 %v897
    %1708 = vmatprep.subr.mxu0 %v906
    %1709 = vmatpush1.msra.mxu0 %v905
    %1710 = vmatprep.subr.mxu0 %v914
    %1711 = vmatpush1.msra.mxu0 %v913
    %1712 = vmatprep.subr.mxu0 %v922
    %1713 = vmatpush1.msra.mxu0 %v921
    %1714 = vmatprep.subr.mxu0 %v930
    %1715 = vmatpush1.msra.mxu0 %v929
    %1716 = vmatprep.subr.mxu0 %v938
    %1717 = vmatpush1.msra.mxu0 %v937
    %1718 = vmatprep.subr.mxu0 %v946
    %1719 = vmatpush1.msra.mxu0 %v945
    %1720 = vmatprep.subr.mxu0 %v954
    %1721 = vmatpush1.msra.mxu0 %v953
    %1722 = vmatprep.subr.mxu0 %v962
    %1723 = vmatpush1.msra.mxu0 %v961
    %1724 = vmatprep.subr.mxu0 %v970
    %1725 = vmatpush1.msra.mxu0 %v969
    %1726 = vmatprep.subr.mxu0 %v978
    %1727 = vmatpush1.msra.mxu0 %v977
    %1728 = vmatprep.subr.mxu0 %v986
    %1729 = vmatpush1.msra.mxu0 %v985
    %1730 = vmatprep.subr.mxu0 %v994
    %1731 = vmatpush1.msra.mxu0 %v993
    %1732 = vmatprep.subr.mxu0 %v1002
    %1733 = vmatpush1.msra.mxu0 %v1001
    %1734 = vmatprep.subr.mxu0 %v1010
    %1735 = vmatpush1.msra.mxu0 %v1009
    %1736 = vmatprep.subr.mxu0 %v1018
    %1737 = vmatpush1.msra.mxu0 %v1017
    %1738 = vmatprep.subr.mxu0 %v1026
    %1739 = vmatpush1.msra.mxu0 %v1025
    %1740 = vmatprep.subr.mxu0 %v1034
    %1741 = vmatpush1.msra.mxu0 %v1033
    %1742 = vmatprep.subr.mxu0 %v1042
    %1743 = vmatpush1.msra.mxu0 %v1041
    %1744 = vmatprep.subr.mxu0 %v1050
    %1745 = vmatpush1.msra.mxu0 %v1049
    %1746 = vmatprep.subr.mxu0 %v1058
    %1747 = vmatpush1.msra.mxu0 %v1057
    %1748 = vmatprep.subr.mxu0 %v1066
    %1749 = vmatpush1.msra.mxu0 %v1065
    %1750 = vmatprep.subr.mxu0 %v1074
    %1751 = vmatpush1.msra.mxu0 %v1073
    %1752 = vmatprep.subr.mxu0 %v1082
    %1753 = vmatpush1.msra.mxu0 %v1081
    %1754 = vmatprep.subr.mxu0 %v1090
    %1755 = vmatpush1.msra.mxu0 %v1089
    %1756 = vmatprep.subr.mxu0 %v1098
    %1757 = vmatpush1.msra.mxu0 %v1097
    %1758 = vmatprep.subr.mxu0 %v1106
    %1759 = vmatpush1.msra.mxu0 %v1105
    %1760 = vmatprep.subr.mxu0 %v1114
    %1761 = vmatpush1.msra.mxu0 %v1113
    %1762 = vmatprep.subr.mxu0 %v1122
    %1763 = vmatpush1.msra.mxu0 %v1121
    %1764 = vmatprep.subr.mxu0 %v1130
    %1765 = vmatpush1.msra.mxu0 %v1129
    %1766 = vmatprep.subr.mxu0 %v1138
    %1767 = vmatpush1.msra.mxu0 %v1137
    %1768 = vmatprep.subr.mxu0 %v1146
    %1769 = vmatpush1.msra.mxu0 %v1145
    %1770 = vmatprep.mubr.f32.mxu0 %v1415
    %1771 = vmatmul.mubr.f32.gmra.mrb[0].mxu0 %v1414
    %v1772 = vpop.f32.mrb[0].mxu0
    %v1773 = vadd.f32 0.0, %v1772
    %v1774 = vpop.f32.mrb[0].mxu0
    %v1775 = vadd.f32 0.0, %v1774
    %1776 = vdwg.mxu0
    %1777 = vmatprep.subr.mxu0 %v1154
    %1778 = vmatpush1.msra.mxu0 %v1153
    %1779 = vmatprep.subr.mxu0 %v1162
    %1780 = vmatpush1.msra.mxu0 %v1161
    %1781 = vmatprep.subr.mxu0 %v1170
    %1782 = vmatpush1.msra.mxu0 %v1169
    %1783 = vmatprep.subr.mxu0 %v1178
    %1784 = vmatpush1.msra.mxu0 %v1177
    %1785 = vmatprep.subr.mxu0 %v1186
    %1786 = vmatpush1.msra.mxu0 %v1185
    %1787 = vmatprep.subr.mxu0 %v1194
    %1788 = vmatpush1.msra.mxu0 %v1193
    %1789 = vmatprep.subr.mxu0 %v1202
    %1790 = vmatpush1.msra.mxu0 %v1201
    %1791 = vmatprep.subr.mxu0 %v1210
    %1792 = vmatpush1.msra.mxu0 %v1209
    %1793 = vmatprep.subr.mxu0 %v1218
    %1794 = vmatpush1.msra.mxu0 %v1217
    %1795 = vmatprep.subr.mxu0 %v1226
    %1796 = vmatpush1.msra.mxu0 %v1225
    %1797 = vmatprep.subr.mxu0 %v1234
    %1798 = vmatpush1.msra.mxu0 %v1233
    %1799 = vmatprep.subr.mxu0 %v1242
    %1800 = vmatpush1.msra.mxu0 %v1241
    %1801 = vmatprep.subr.mxu0 %v1250
    %1802 = vmatpush1.msra.mxu0 %v1249
    %1803 = vmatprep.subr.mxu0 %v1258
    %1804 = vmatpush1.msra.mxu0 %v1257
    %1805 = vmatprep.subr.mxu0 %v1266
    %1806 = vmatpush1.msra.mxu0 %v1265
    %1807 = vmatprep.subr.mxu0 %v1274
    %1808 = vmatpush1.msra.mxu0 %v1273
    %1809 = vmatprep.subr.mxu0 %v1282
    %1810 = vmatpush1.msra.mxu0 %v1281
    %1811 = vmatprep.subr.mxu0 %v1290
    %1812 = vmatpush1.msra.mxu0 %v1289
    %1813 = vmatprep.subr.mxu0 %v1298
    %1814 = vmatpush1.msra.mxu0 %v1297
    %1815 = vmatprep.subr.mxu0 %v1306
    %1816 = vmatpush1.msra.mxu0 %v1305
    %1817 = vmatprep.subr.mxu0 %v1314
    %1818 = vmatpush1.msra.mxu0 %v1313
    %1819 = vmatprep.subr.mxu0 %v1322
    %1820 = vmatpush1.msra.mxu0 %v1321
    %1821 = vmatprep.subr.mxu0 %v1330
    %1822 = vmatpush1.msra.mxu0 %v1329
    %1823 = vmatprep.subr.mxu0 %v1338
    %1824 = vmatpush1.msra.mxu0 %v1337
    %1825 = vmatprep.subr.mxu0 %v1346
    %1826 = vmatpush1.msra.mxu0 %v1345
    %1827 = vmatprep.subr.mxu0 %v1354
    %1828 = vmatpush1.msra.mxu0 %v1353
    %1829 = vmatprep.subr.mxu0 %v1362
    %1830 = vmatpush1.msra.mxu0 %v1361
    %1831 = vmatprep.subr.mxu0 %v1370
    %1832 = vmatpush1.msra.mxu0 %v1369
    %1833 = vmatprep.subr.mxu0 %v1378
    %1834 = vmatpush1.msra.mxu0 %v1377
    %1835 = vmatprep.subr.mxu0 %v1386
    %1836 = vmatpush1.msra.mxu0 %v1385
    %1837 = vmatprep.subr.mxu0 %v1394
    %1838 = vmatpush1.msra.mxu0 %v1393
    %1839 = vmatprep.subr.mxu0 %v1402
    %1840 = vmatpush1.msra.mxu0 %v1401
    %1841 = vmatprep.mubr.f32.mxu0 %v1417
    %1842 = vmatmul.mubr.f32.gmra.mrb[0].mxu0 %v1416
    %v1843 = vpop.f32.mrb[0].mxu0
    %v1844 = vadd.f32 %v1773, %v1843
    %v1845 = vpop.f32.mrb[0].mxu0
    %v1846 = vadd.f32 %v1775, %v1845
    %1847 = vdwg.mxu0
    %1848 = vmatprep.subr.mxu0 %v900
    %1849 = vmatpush1.msra.mxu0 %v899
    %1850 = vmatprep.subr.mxu0 %v908
    %1851 = vmatpush1.msra.mxu0 %v907
    %1852 = vmatprep.subr.mxu0 %v916
    %1853 = vmatpush1.msra.mxu0 %v915
    %1854 = vmatprep.subr.mxu0 %v924
    %1855 = vmatpush1.msra.mxu0 %v923
    %1856 = vmatprep.subr.mxu0 %v932
    %1857 = vmatpush1.msra.mxu0 %v931
    %1858 = vmatprep.subr.mxu0 %v940
    %1859 = vmatpush1.msra.mxu0 %v939
    %1860 = vmatprep.subr.mxu0 %v948
    %1861 = vmatpush1.msra.mxu0 %v947
    %1862 = vmatprep.subr.mxu0 %v956
    %1863 = vmatpush1.msra.mxu0 %v955
    %1864 = vmatprep.subr.mxu0 %v964
    %1865 = vmatpush1.msra.mxu0 %v963
    %1866 = vmatprep.subr.mxu0 %v972
    %1867 = vmatpush1.msra.mxu0 %v971
    %1868 = vmatprep.subr.mxu0 %v980
    %1869 = vmatpush1.msra.mxu0 %v979
    %1870 = vmatprep.subr.mxu0 %v988
    %1871 = vmatpush1.msra.mxu0 %v987
    %1872 = vmatprep.subr.mxu0 %v996
    %1873 = vmatpush1.msra.mxu0 %v995
    %1874 = vmatprep.subr.mxu0 %v1004
    %1875 = vmatpush1.msra.mxu0 %v1003
    %1876 = vmatprep.subr.mxu0 %v1012
    %1877 = vmatpush1.msra.mxu0 %v1011
    %1878 = vmatprep.subr.mxu0 %v1020
    %1879 = vmatpush1.msra.mxu0 %v1019
    %1880 = vmatprep.subr.mxu0 %v1028
    %1881 = vmatpush1.msra.mxu0 %v1027
    %1882 = vmatprep.subr.mxu0 %v1036
    %1883 = vmatpush1.msra.mxu0 %v1035
    %1884 = vmatprep.subr.mxu0 %v1044
    %1885 = vmatpush1.msra.mxu0 %v1043
    %1886 = vmatprep.subr.mxu0 %v1052
    %1887 = vmatpush1.msra.mxu0 %v1051
    %1888 = vmatprep.subr.mxu0 %v1060
    %1889 = vmatpush1.msra.mxu0 %v1059
    %1890 = vmatprep.subr.mxu0 %v1068
    %1891 = vmatpush1.msra.mxu0 %v1067
    %1892 = vmatprep.subr.mxu0 %v1076
    %1893 = vmatpush1.msra.mxu0 %v1075
    %1894 = vmatprep.subr.mxu0 %v1084
    %1895 = vmatpush1.msra.mxu0 %v1083
    %1896 = vmatprep.subr.mxu0 %v1092
    %1897 = vmatpush1.msra.mxu0 %v1091
    %1898 = vmatprep.subr.mxu0 %v1100
    %1899 = vmatpush1.msra.mxu0 %v1099
    %1900 = vmatprep.subr.mxu0 %v1108
    %1901 = vmatpush1.msra.mxu0 %v1107
    %1902 = vmatprep.subr.mxu0 %v1116
    %1903 = vmatpush1.msra.mxu0 %v1115
    %1904 = vmatprep.subr.mxu0 %v1124
    %1905 = vmatpush1.msra.mxu0 %v1123
    %1906 = vmatprep.subr.mxu0 %v1132
    %1907 = vmatpush1.msra.mxu0 %v1131
    %1908 = vmatprep.subr.mxu0 %v1140
    %1909 = vmatpush1.msra.mxu0 %v1139
    %1910 = vmatprep.subr.mxu0 %v1148
    %1911 = vmatpush1.msra.mxu0 %v1147
    %1912 = vmatprep.mubr.f32.mxu0 %v1415
    %1913 = vmatmul.mubr.f32.gmra.mrb[0].mxu0 %v1414
    %v1914 = vpop.f32.mrb[0].mxu0
    %v1915 = vadd.f32 0.0, %v1914
    %v1916 = vpop.f32.mrb[0].mxu0
    %v1917 = vadd.f32 0.0, %v1916
    %1918 = vdwg.mxu0
    %1919 = vmatprep.subr.mxu0 %v1156
    %1920 = vmatpush1.msra.mxu0 %v1155
    %1921 = vmatprep.subr.mxu0 %v1164
    %1922 = vmatpush1.msra.mxu0 %v1163
    %1923 = vmatprep.subr.mxu0 %v1172
    %1924 = vmatpush1.msra.mxu0 %v1171
    %1925 = vmatprep.subr.mxu0 %v1180
    %1926 = vmatpush1.msra.mxu0 %v1179
    %1927 = vmatprep.subr.mxu0 %v1188
    %1928 = vmatpush1.msra.mxu0 %v1187
    %1929 = vmatprep.subr.mxu0 %v1196
    %1930 = vmatpush1.msra.mxu0 %v1195
    %1931 = vmatprep.subr.mxu0 %v1204
    %1932 = vmatpush1.msra.mxu0 %v1203
    %1933 = vmatprep.subr.mxu0 %v1212
    %1934 = vmatpush1.msra.mxu0 %v1211
    %1935 = vmatprep.subr.mxu0 %v1220
    %1936 = vmatpush1.msra.mxu0 %v1219
    %1937 = vmatprep.subr.mxu0 %v1228
    %1938 = vmatpush1.msra.mxu0 %v1227
    %1939 = vmatprep.subr.mxu0 %v1236
    %1940 = vmatpush1.msra.mxu0 %v1235
    %1941 = vmatprep.subr.mxu0 %v1244
    %1942 = vmatpush1.msra.mxu0 %v1243
    %1943 = vmatprep.subr.mxu0 %v1252
    %1944 = vmatpush1.msra.mxu0 %v1251
    %1945 = vmatprep.subr.mxu0 %v1260
    %1946 = vmatpush1.msra.mxu0 %v1259
    %1947 = vmatprep.subr.mxu0 %v1268
    %1948 = vmatpush1.msra.mxu0 %v1267
    %1949 = vmatprep.subr.mxu0 %v1276
    %1950 = vmatpush1.msra.mxu0 %v1275
    %1951 = vmatprep.subr.mxu0 %v1284
    %1952 = vmatpush1.msra.mxu0 %v1283
    %1953 = vmatprep.subr.mxu0 %v1292
    %1954 = vmatpush1.msra.mxu0 %v1291
    %1955 = vmatprep.subr.mxu0 %v1300
    %1956 = vmatpush1.msra.mxu0 %v1299
    %1957 = vmatprep.subr.mxu0 %v1308
    %1958 = vmatpush1.msra.mxu0 %v1307
    %1959 = vmatprep.subr.mxu0 %v1316
    %1960 = vmatpush1.msra.mxu0 %v1315
    %1961 = vmatprep.subr.mxu0 %v1324
    %1962 = vmatpush1.msra.mxu0 %v1323
    %1963 = vmatprep.subr.mxu0 %v1332
    %1964 = vmatpush1.msra.mxu0 %v1331
    %1965 = vmatprep.subr.mxu0 %v1340
    %1966 = vmatpush1.msra.mxu0 %v1339
    %1967 = vmatprep.subr.mxu0 %v1348
    %1968 = vmatpush1.msra.mxu0 %v1347
    %1969 = vmatprep.subr.mxu0 %v1356
    %1970 = vmatpush1.msra.mxu0 %v1355
    %1971 = vmatprep.subr.mxu0 %v1364
    %1972 = vmatpush1.msra.mxu0 %v1363
    %1973 = vmatprep.subr.mxu0 %v1372
    %1974 = vmatpush1.msra.mxu0 %v1371
    %1975 = vmatprep.subr.mxu0 %v1380
    %1976 = vmatpush1.msra.mxu0 %v1379
    %1977 = vmatprep.subr.mxu0 %v1388
    %1978 = vmatpush1.msra.mxu0 %v1387
    %1979 = vmatprep.subr.mxu0 %v1396
    %1980 = vmatpush1.msra.mxu0 %v1395
    %1981 = vmatprep.subr.mxu0 %v1404
    %1982 = vmatpush1.msra.mxu0 %v1403
    %1983 = vmatprep.mubr.f32.mxu0 %v1417
    %1984 = vmatmul.mubr.f32.gmra.mrb[0].mxu0 %v1416
    %v1985 = vpop.f32.mrb[0].mxu0
    %v1986 = vadd.f32 %v1915, %v1985
    %v1987 = vpop.f32.mrb[0].mxu0
    %v1988 = vadd.f32 %v1917, %v1987
    %1989 = vdwg.mxu0
    %v1998 = vsel %vm1413, %v181, %v129
    %v1999 = vsel %vm1413, %v194, %v142
    %v2000 = vsel %vm1413, %v207, %v155
    %v2001 = vsel %vm1413, %v220, %v168
    %2006 = vmatprep.subr.mxu0 %v382
    %2007 = vmatpush1.msra.mxu0 %v381
    %2008 = vmatprep.subr.mxu0 %v390
    %2009 = vmatpush1.msra.mxu0 %v389
    %2010 = vmatprep.subr.mxu0 %v398
    %2011 = vmatpush1.msra.mxu0 %v397
    %2012 = vmatprep.subr.mxu0 %v406
    %2013 = vmatpush1.msra.mxu0 %v405
    %2014 = vmatprep.subr.mxu0 %v414
    %2015 = vmatpush1.msra.mxu0 %v413
    %2016 = vmatprep.subr.mxu0 %v422
    %2017 = vmatpush1.msra.mxu0 %v421
    %2018 = vmatprep.subr.mxu0 %v430
    %2019 = vmatpush1.msra.mxu0 %v429
    %2020 = vmatprep.subr.mxu0 %v438
    %2021 = vmatpush1.msra.mxu0 %v437
    %2022 = vmatprep.subr.mxu0 %v446
    %2023 = vmatpush1.msra.mxu0 %v445
    %2024 = vmatprep.subr.mxu0 %v454
    %2025 = vmatpush1.msra.mxu0 %v453
    %2026 = vmatprep.subr.mxu0 %v462
    %2027 = vmatpush1.msra.mxu0 %v461
    %2028 = vmatprep.subr.mxu0 %v470
    %2029 = vmatpush1.msra.mxu0 %v469
    %2030 = vmatprep.subr.mxu0 %v478
    %2031 = vmatpush1.msra.mxu0 %v477
    %2032 = vmatprep.subr.mxu0 %v486
    %2033 = vmatpush1.msra.mxu0 %v485
    %2034 = vmatprep.subr.mxu0 %v494
    %2035 = vmatpush1.msra.mxu0 %v493
    %2036 = vmatprep.subr.mxu0 %v502
    %2037 = vmatpush1.msra.mxu0 %v501
    %2038 = vmatprep.subr.mxu0 %v510
    %2039 = vmatpush1.msra.mxu0 %v509
    %2040 = vmatprep.subr.mxu0 %v518
    %2041 = vmatpush1.msra.mxu0 %v517
    %2042 = vmatprep.subr.mxu0 %v526
    %2043 = vmatpush1.msra.mxu0 %v525
    %2044 = vmatprep.subr.mxu0 %v534
    %2045 = vmatpush1.msra.mxu0 %v533
    %2046 = vmatprep.subr.mxu0 %v542
    %2047 = vmatpush1.msra.mxu0 %v541
    %2048 = vmatprep.subr.mxu0 %v550
    %2049 = vmatpush1.msra.mxu0 %v549
    %2050 = vmatprep.subr.mxu0 %v558
    %2051 = vmatpush1.msra.mxu0 %v557
    %2052 = vmatprep.subr.mxu0 %v566
    %2053 = vmatpush1.msra.mxu0 %v565
    %2054 = vmatprep.subr.mxu0 %v574
    %2055 = vmatpush1.msra.mxu0 %v573
    %2056 = vmatprep.subr.mxu0 %v582
    %2057 = vmatpush1.msra.mxu0 %v581
    %2058 = vmatprep.subr.mxu0 %v590
    %2059 = vmatpush1.msra.mxu0 %v589
    %2060 = vmatprep.subr.mxu0 %v598
    %2061 = vmatpush1.msra.mxu0 %v597
    %2062 = vmatprep.subr.mxu0 %v606
    %2063 = vmatpush1.msra.mxu0 %v605
    %2064 = vmatprep.subr.mxu0 %v614
    %2065 = vmatpush1.msra.mxu0 %v613
    %2066 = vmatprep.subr.mxu0 %v622
    %2067 = vmatpush1.msra.mxu0 %v621
    %2068 = vmatprep.subr.mxu0 %v630
    %2069 = vmatpush1.msra.mxu0 %v629
    %2070 = vmatprep.mubr.f32.mxu0 %v1999
    %2071 = vmatmul.mubr.f32.gmra.mrb[0].mxu0 %v1998
    %v2072 = vpop.f32.mrb[0].mxu0
    %v2073 = vadd.f32 %v1560, %v2072
    %v2074 = vpop.f32.mrb[0].mxu0
    %v2075 = vadd.f32 %v1562, %v2074
    %2076 = vdwg.mxu0
    %2077 = vmatprep.subr.mxu0 %v638
    %2078 = vmatpush1.msra.mxu0 %v637
    %2079 = vmatprep.subr.mxu0 %v646
    %2080 = vmatpush1.msra.mxu0 %v645
    %2081 = vmatprep.subr.mxu0 %v654
    %2082 = vmatpush1.msra.mxu0 %v653
    %2083 = vmatprep.subr.mxu0 %v662
    %2084 = vmatpush1.msra.mxu0 %v661
    %2085 = vmatprep.subr.mxu0 %v670
    %2086 = vmatpush1.msra.mxu0 %v669
    %2087 = vmatprep.subr.mxu0 %v678
    %2088 = vmatpush1.msra.mxu0 %v677
    %2089 = vmatprep.subr.mxu0 %v686
    %2090 = vmatpush1.msra.mxu0 %v685
    %2091 = vmatprep.subr.mxu0 %v694
    %2092 = vmatpush1.msra.mxu0 %v693
    %2093 = vmatprep.subr.mxu0 %v702
    %2094 = vmatpush1.msra.mxu0 %v701
    %2095 = vmatprep.subr.mxu0 %v710
    %2096 = vmatpush1.msra.mxu0 %v709
    %2097 = vmatprep.subr.mxu0 %v718
    %2098 = vmatpush1.msra.mxu0 %v717
    %2099 = vmatprep.subr.mxu0 %v726
    %2100 = vmatpush1.msra.mxu0 %v725
    %2101 = vmatprep.subr.mxu0 %v734
    %2102 = vmatpush1.msra.mxu0 %v733
    %2103 = vmatprep.subr.mxu0 %v742
    %2104 = vmatpush1.msra.mxu0 %v741
    %2105 = vmatprep.subr.mxu0 %v750
    %2106 = vmatpush1.msra.mxu0 %v749
    %2107 = vmatprep.subr.mxu0 %v758
    %2108 = vmatpush1.msra.mxu0 %v757
    %2109 = vmatprep.subr.mxu0 %v766
    %2110 = vmatpush1.msra.mxu0 %v765
    %2111 = vmatprep.subr.mxu0 %v774
    %2112 = vmatpush1.msra.mxu0 %v773
    %2113 = vmatprep.subr.mxu0 %v782
    %2114 = vmatpush1.msra.mxu0 %v781
    %2115 = vmatprep.subr.mxu0 %v790
    %2116 = vmatpush1.msra.mxu0 %v789
    %2117 = vmatprep.subr.mxu0 %v798
    %2118 = vmatpush1.msra.mxu0 %v797
    %2119 = vmatprep.subr.mxu0 %v806
    %2120 = vmatpush1.msra.mxu0 %v805
    %2121 = vmatprep.subr.mxu0 %v814
    %2122 = vmatpush1.msra.mxu0 %v813
    %2123 = vmatprep.subr.mxu0 %v822
    %2124 = vmatpush1.msra.mxu0 %v821
    %2125 = vmatprep.subr.mxu0 %v830
    %2126 = vmatpush1.msra.mxu0 %v829
    %2127 = vmatprep.subr.mxu0 %v838
    %2128 = vmatpush1.msra.mxu0 %v837
    %2129 = vmatprep.subr.mxu0 %v846
    %2130 = vmatpush1.msra.mxu0 %v845
    %2131 = vmatprep.subr.mxu0 %v854
    %2132 = vmatpush1.msra.mxu0 %v853
    %2133 = vmatprep.subr.mxu0 %v862
    %2134 = vmatpush1.msra.mxu0 %v861
    %2135 = vmatprep.subr.mxu0 %v870
    %2136 = vmatpush1.msra.mxu0 %v869
    %2137 = vmatprep.subr.mxu0 %v878
    %2138 = vmatpush1.msra.mxu0 %v877
    %2139 = vmatprep.subr.mxu0 %v886
    %2140 = vmatpush1.msra.mxu0 %v885
    %2141 = vmatprep.mubr.f32.mxu0 %v2001
    %2142 = vmatmul.mubr.f32.gmra.mrb[0].mxu0 %v2000
    %v2143 = vpop.f32.mrb[0].mxu0
    %v2144 = vadd.f32 %v2073, %v2143
    %v2145 = vpop.f32.mrb[0].mxu0
    %v2146 = vadd.f32 %v2075, %v2145
    %2147 = vdwg.mxu0
    %2148 = vmatprep.subr.mxu0 %v384
    %2149 = vmatpush1.msra.mxu0 %v383
    %2150 = vmatprep.subr.mxu0 %v392
    %2151 = vmatpush1.msra.mxu0 %v391
    %2152 = vmatprep.subr.mxu0 %v400
    %2153 = vmatpush1.msra.mxu0 %v399
    %2154 = vmatprep.subr.mxu0 %v408
    %2155 = vmatpush1.msra.mxu0 %v407
    %2156 = vmatprep.subr.mxu0 %v416
    %2157 = vmatpush1.msra.mxu0 %v415
    %2158 = vmatprep.subr.mxu0 %v424
    %2159 = vmatpush1.msra.mxu0 %v423
    %2160 = vmatprep.subr.mxu0 %v432
    %2161 = vmatpush1.msra.mxu0 %v431
    %2162 = vmatprep.subr.mxu0 %v440
    %2163 = vmatpush1.msra.mxu0 %v439
    %2164 = vmatprep.subr.mxu0 %v448
    %2165 = vmatpush1.msra.mxu0 %v447
    %2166 = vmatprep.subr.mxu0 %v456
    %2167 = vmatpush1.msra.mxu0 %v455
    %2168 = vmatprep.subr.mxu0 %v464
    %2169 = vmatpush1.msra.mxu0 %v463
    %2170 = vmatprep.subr.mxu0 %v472
    %2171 = vmatpush1.msra.mxu0 %v471
    %2172 = vmatprep.subr.mxu0 %v480
    %2173 = vmatpush1.msra.mxu0 %v479
    %2174 = vmatprep.subr.mxu0 %v488
    %2175 = vmatpush1.msra.mxu0 %v487
    %2176 = vmatprep.subr.mxu0 %v496
    %2177 = vmatpush1.msra.mxu0 %v495
    %2178 = vmatprep.subr.mxu0 %v504
    %2179 = vmatpush1.msra.mxu0 %v503
    %2180 = vmatprep.subr.mxu0 %v512
    %2181 = vmatpush1.msra.mxu0 %v511
    %2182 = vmatprep.subr.mxu0 %v520
    %2183 = vmatpush1.msra.mxu0 %v519
    %2184 = vmatprep.subr.mxu0 %v528
    %2185 = vmatpush1.msra.mxu0 %v527
    %2186 = vmatprep.subr.mxu0 %v536
    %2187 = vmatpush1.msra.mxu0 %v535
    %2188 = vmatprep.subr.mxu0 %v544
    %2189 = vmatpush1.msra.mxu0 %v543
    %2190 = vmatprep.subr.mxu0 %v552
    %2191 = vmatpush1.msra.mxu0 %v551
    %2192 = vmatprep.subr.mxu0 %v560
    %2193 = vmatpush1.msra.mxu0 %v559
    %2194 = vmatprep.subr.mxu0 %v568
    %2195 = vmatpush1.msra.mxu0 %v567
    %2196 = vmatprep.subr.mxu0 %v576
    %2197 = vmatpush1.msra.mxu0 %v575
    %2198 = vmatprep.subr.mxu0 %v584
    %2199 = vmatpush1.msra.mxu0 %v583
    %2200 = vmatprep.subr.mxu0 %v592
    %2201 = vmatpush1.msra.mxu0 %v591
    %2202 = vmatprep.subr.mxu0 %v600
    %2203 = vmatpush1.msra.mxu0 %v599
    %2204 = vmatprep.subr.mxu0 %v608
    %2205 = vmatpush1.msra.mxu0 %v607
    %2206 = vmatprep.subr.mxu0 %v616
    %2207 = vmatpush1.msra.mxu0 %v615
    %2208 = vmatprep.subr.mxu0 %v624
    %2209 = vmatpush1.msra.mxu0 %v623
    %2210 = vmatprep.subr.mxu0 %v632
    %2211 = vmatpush1.msra.mxu0 %v631
    %2212 = vmatprep.mubr.f32.mxu0 %v1999
    %2213 = vmatmul.mubr.f32.gmra.mrb[0].mxu0 %v1998
    %v2214 = vpop.f32.mrb[0].mxu0
    %v2215 = vadd.f32 %v1702, %v2214
    %v2216 = vpop.f32.mrb[0].mxu0
    %v2217 = vadd.f32 %v1704, %v2216
    %2218 = vdwg.mxu0
    %2219 = vmatprep.subr.mxu0 %v640
    %2220 = vmatpush1.msra.mxu0 %v639
    %2221 = vmatprep.subr.mxu0 %v648
    %2222 = vmatpush1.msra.mxu0 %v647
    %2223 = vmatprep.subr.mxu0 %v656
    %2224 = vmatpush1.msra.mxu0 %v655
    %2225 = vmatprep.subr.mxu0 %v664
    %2226 = vmatpush1.msra.mxu0 %v663
    %2227 = vmatprep.subr.mxu0 %v672
    %2228 = vmatpush1.msra.mxu0 %v671
    %2229 = vmatprep.subr.mxu0 %v680
    %2230 = vmatpush1.msra.mxu0 %v679
    %2231 = vmatprep.subr.mxu0 %v688
    %2232 = vmatpush1.msra.mxu0 %v687
    %2233 = vmatprep.subr.mxu0 %v696
    %2234 = vmatpush1.msra.mxu0 %v695
    %2235 = vmatprep.subr.mxu0 %v704
    %2236 = vmatpush1.msra.mxu0 %v703
    %2237 = vmatprep.subr.mxu0 %v712
    %2238 = vmatpush1.msra.mxu0 %v711
    %2239 = vmatprep.subr.mxu0 %v720
    %2240 = vmatpush1.msra.mxu0 %v719
    %2241 = vmatprep.subr.mxu0 %v728
    %2242 = vmatpush1.msra.mxu0 %v727
    %2243 = vmatprep.subr.mxu0 %v736
    %2244 = vmatpush1.msra.mxu0 %v735
    %2245 = vmatprep.subr.mxu0 %v744
    %2246 = vmatpush1.msra.mxu0 %v743
    %2247 = vmatprep.subr.mxu0 %v752
    %2248 = vmatpush1.msra.mxu0 %v751
    %2249 = vmatprep.subr.mxu0 %v760
    %2250 = vmatpush1.msra.mxu0 %v759
    %2251 = vmatprep.subr.mxu0 %v768
    %2252 = vmatpush1.msra.mxu0 %v767
    %2253 = vmatprep.subr.mxu0 %v776
    %2254 = vmatpush1.msra.mxu0 %v775
    %2255 = vmatprep.subr.mxu0 %v784
    %2256 = vmatpush1.msra.mxu0 %v783
    %2257 = vmatprep.subr.mxu0 %v792
    %2258 = vmatpush1.msra.mxu0 %v791
    %2259 = vmatprep.subr.mxu0 %v800
    %2260 = vmatpush1.msra.mxu0 %v799
    %2261 = vmatprep.subr.mxu0 %v808
    %2262 = vmatpush1.msra.mxu0 %v807
    %2263 = vmatprep.subr.mxu0 %v816
    %2264 = vmatpush1.msra.mxu0 %v815
    %2265 = vmatprep.subr.mxu0 %v824
    %2266 = vmatpush1.msra.mxu0 %v823
    %2267 = vmatprep.subr.mxu0 %v832
    %2268 = vmatpush1.msra.mxu0 %v831
    %2269 = vmatprep.subr.mxu0 %v840
    %2270 = vmatpush1.msra.mxu0 %v839
    %2271 = vmatprep.subr.mxu0 %v848
    %2272 = vmatpush1.msra.mxu0 %v847
    %2273 = vmatprep.subr.mxu0 %v856
    %2274 = vmatpush1.msra.mxu0 %v855
    %2275 = vmatprep.subr.mxu0 %v864
    %2276 = vmatpush1.msra.mxu0 %v863
    %2277 = vmatprep.subr.mxu0 %v872
    %2278 = vmatpush1.msra.mxu0 %v871
    %2279 = vmatprep.subr.mxu0 %v880
    %2280 = vmatpush1.msra.mxu0 %v879
    %2281 = vmatprep.subr.mxu0 %v888
    %2282 = vmatpush1.msra.mxu0 %v887
    %2283 = vmatprep.mubr.f32.mxu0 %v2001
    %2284 = vmatmul.mubr.f32.gmra.mrb[0].mxu0 %v2000
    %v2285 = vpop.f32.mrb[0].mxu0
    %v2286 = vadd.f32 %v2215, %v2285
    %v2287 = vpop.f32.mrb[0].mxu0
    %v2288 = vadd.f32 %v2217, %v2287
    %2289 = vdwg.mxu0
    %2290 = vmatprep.subr.mxu0 %v386
    %2291 = vmatpush1.msra.mxu0 %v385
    %2292 = vmatprep.subr.mxu0 %v394
    %2293 = vmatpush1.msra.mxu0 %v393
    %2294 = vmatprep.subr.mxu0 %v402
    %2295 = vmatpush1.msra.mxu0 %v401
    %2296 = vmatprep.subr.mxu0 %v410
    %2297 = vmatpush1.msra.mxu0 %v409
    %2298 = vmatprep.subr.mxu0 %v418
    %2299 = vmatpush1.msra.mxu0 %v417
    %2300 = vmatprep.subr.mxu0 %v426
    %2301 = vmatpush1.msra.mxu0 %v425
    %2302 = vmatprep.subr.mxu0 %v434
    %2303 = vmatpush1.msra.mxu0 %v433
    %2304 = vmatprep.subr.mxu0 %v442
    %2305 = vmatpush1.msra.mxu0 %v441
    %2306 = vmatprep.subr.mxu0 %v450
    %2307 = vmatpush1.msra.mxu0 %v449
    %2308 = vmatprep.subr.mxu0 %v458
    %2309 = vmatpush1.msra.mxu0 %v457
    %2310 = vmatprep.subr.mxu0 %v466
    %2311 = vmatpush1.msra.mxu0 %v465
    %2312 = vmatprep.subr.mxu0 %v474
    %2313 = vmatpush1.msra.mxu0 %v473
    %2314 = vmatprep.subr.mxu0 %v482
    %2315 = vmatpush1.msra.mxu0 %v481
    %2316 = vmatprep.subr.mxu0 %v490
    %2317 = vmatpush1.msra.mxu0 %v489
    %2318 = vmatprep.subr.mxu0 %v498
    %2319 = vmatpush1.msra.mxu0 %v497
    %2320 = vmatprep.subr.mxu0 %v506
    %2321 = vmatpush1.msra.mxu0 %v505
    %2322 = vmatprep.subr.mxu0 %v514
    %2323 = vmatpush1.msra.mxu0 %v513
    %2324 = vmatprep.subr.mxu0 %v522
    %2325 = vmatpush1.msra.mxu0 %v521
    %2326 = vmatprep.subr.mxu0 %v530
    %2327 = vmatpush1.msra.mxu0 %v529
    %2328 = vmatprep.subr.mxu0 %v538
    %2329 = vmatpush1.msra.mxu0 %v537
    %2330 = vmatprep.subr.mxu0 %v546
    %2331 = vmatpush1.msra.mxu0 %v545
    %2332 = vmatprep.subr.mxu0 %v554
    %2333 = vmatpush1.msra.mxu0 %v553
    %2334 = vmatprep.subr.mxu0 %v562
    %2335 = vmatpush1.msra.mxu0 %v561
    %2336 = vmatprep.subr.mxu0 %v570
    %2337 = vmatpush1.msra.mxu0 %v569
    %2338 = vmatprep.subr.mxu0 %v578
    %2339 = vmatpush1.msra.mxu0 %v577
    %2340 = vmatprep.subr.mxu0 %v586
    %2341 = vmatpush1.msra.mxu0 %v585
    %2342 = vmatprep.subr.mxu0 %v594
    %2343 = vmatpush1.msra.mxu0 %v593
    %2344 = vmatprep.subr.mxu0 %v602
    %2345 = vmatpush1.msra.mxu0 %v601
    %2346 = vmatprep.subr.mxu0 %v610
    %2347 = vmatpush1.msra.mxu0 %v609
    %2348 = vmatprep.subr.mxu0 %v618
    %2349 = vmatpush1.msra.mxu0 %v617
    %2350 = vmatprep.subr.mxu0 %v626
    %2351 = vmatpush1.msra.mxu0 %v625
    %2352 = vmatprep.subr.mxu0 %v634
    %2353 = vmatpush1.msra.mxu0 %v633
    %2354 = vmatprep.mubr.f32.mxu0 %v1999
    %2355 = vmatmul.mubr.f32.gmra.mrb[0].mxu0 %v1998
    %v2356 = vpop.f32.mrb[0].mxu0
    %v2357 = vadd.f32 %v1844, %v2356
    %v2358 = vpop.f32.mrb[0].mxu0
    %v2359 = vadd.f32 %v1846, %v2358
    %2360 = vdwg.mxu0
    %2361 = vmatprep.subr.mxu0 %v642
    %2362 = vmatpush1.msra.mxu0 %v641
    %2363 = vmatprep.subr.mxu0 %v650
    %2364 = vmatpush1.msra.mxu0 %v649
    %2365 = vmatprep.subr.mxu0 %v658
    %2366 = vmatpush1.msra.mxu0 %v657
    %2367 = vmatprep.subr.mxu0 %v666
    %2368 = vmatpush1.msra.mxu0 %v665
    %2369 = vmatprep.subr.mxu0 %v674
    %2370 = vmatpush1.msra.mxu0 %v673
    %2371 = vmatprep.subr.mxu0 %v682
    %2372 = vmatpush1.msra.mxu0 %v681
    %2373 = vmatprep.subr.mxu0 %v690
    %2374 = vmatpush1.msra.mxu0 %v689
    %2375 = vmatprep.subr.mxu0 %v698
    %2376 = vmatpush1.msra.mxu0 %v697
    %2377 = vmatprep.subr.mxu0 %v706
    %2378 = vmatpush1.msra.mxu0 %v705
    %2379 = vmatprep.subr.mxu0 %v714
    %2380 = vmatpush1.msra.mxu0 %v713
    %2381 = vmatprep.subr.mxu0 %v722
    %2382 = vmatpush1.msra.mxu0 %v721
    %2383 = vmatprep.subr.mxu0 %v730
    %2384 = vmatpush1.msra.mxu0 %v729
    %2385 = vmatprep.subr.mxu0 %v738
    %2386 = vmatpush1.msra.mxu0 %v737
    %2387 = vmatprep.subr.mxu0 %v746
    %2388 = vmatpush1.msra.mxu0 %v745
    %2389 = vmatprep.subr.mxu0 %v754
    %2390 = vmatpush1.msra.mxu0 %v753
    %2391 = vmatprep.subr.mxu0 %v762
    %2392 = vmatpush1.msra.mxu0 %v761
    %2393 = vmatprep.subr.mxu0 %v770
    %2394 = vmatpush1.msra.mxu0 %v769
    %2395 = vmatprep.subr.mxu0 %v778
    %2396 = vmatpush1.msra.mxu0 %v777
    %2397 = vmatprep.subr.mxu0 %v786
    %2398 = vmatpush1.msra.mxu0 %v785
    %2399 = vmatprep.subr.mxu0 %v794
    %2400 = vmatpush1.msra.mxu0 %v793
    %2401 = vmatprep.subr.mxu0 %v802
    %2402 = vmatpush1.msra.mxu0 %v801
    %2403 = vmatprep.subr.mxu0 %v810
    %2404 = vmatpush1.msra.mxu0 %v809
    %2405 = vmatprep.subr.mxu0 %v818
    %2406 = vmatpush1.msra.mxu0 %v817
    %2407 = vmatprep.subr.mxu0 %v826
    %2408 = vmatpush1.msra.mxu0 %v825
    %2409 = vmatprep.subr.mxu0 %v834
    %2410 = vmatpush1.msra.mxu0 %v833
    %2411 = vmatprep.subr.mxu0 %v842
    %2412 = vmatpush1.msra.mxu0 %v841
    %2413 = vmatprep.subr.mxu0 %v850
    %2414 = vmatpush1.msra.mxu0 %v849
    %2415 = vmatprep.subr.mxu0 %v858
    %2416 = vmatpush1.msra.mxu0 %v857
    %2417 = vmatprep.subr.mxu0 %v866
    %2418 = vmatpush1.msra.mxu0 %v865
    %2419 = vmatprep.subr.mxu0 %v874
    %2420 = vmatpush1.msra.mxu0 %v873
    %2421 = vmatprep.subr.mxu0 %v882
    %2422 = vmatpush1.msra.mxu0 %v881
    %2423 = vmatprep.subr.mxu0 %v890
    %2424 = vmatpush1.msra.mxu0 %v889
    %2425 = vmatprep.mubr.f32.mxu0 %v2001
    %2426 = vmatmul.mubr.f32.gmra.mrb[0].mxu0 %v2000
    %v2427 = vpop.f32.mrb[0].mxu0
    %v2428 = vadd.f32 %v2357, %v2427
    %v2429 = vpop.f32.mrb[0].mxu0
    %v2430 = vadd.f32 %v2359, %v2429
    %2431 = vdwg.mxu0
    %2432 = vmatprep.subr.mxu0 %v388
    %2433 = vmatpush1.msra.mxu0 %v387
    %2434 = vmatprep.subr.mxu0 %v396
    %2435 = vmatpush1.msra.mxu0 %v395
    %2436 = vmatprep.subr.mxu0 %v404
    %2437 = vmatpush1.msra.mxu0 %v403
    %2438 = vmatprep.subr.mxu0 %v412
    %2439 = vmatpush1.msra.mxu0 %v411
    %2440 = vmatprep.subr.mxu0 %v420
    %2441 = vmatpush1.msra.mxu0 %v419
    %2442 = vmatprep.subr.mxu0 %v428
    %2443 = vmatpush1.msra.mxu0 %v427
    %2444 = vmatprep.subr.mxu0 %v436
    %2445 = vmatpush1.msra.mxu0 %v435
    %2446 = vmatprep.subr.mxu0 %v444
    %2447 = vmatpush1.msra.mxu0 %v443
    %2448 = vmatprep.subr.mxu0 %v452
    %2449 = vmatpush1.msra.mxu0 %v451
    %2450 = vmatprep.subr.mxu0 %v460
    %2451 = vmatpush1.msra.mxu0 %v459
    %2452 = vmatprep.subr.mxu0 %v468
    %2453 = vmatpush1.msra.mxu0 %v467
    %2454 = vmatprep.subr.mxu0 %v476
    %2455 = vmatpush1.msra.mxu0 %v475
    %2456 = vmatprep.subr.mxu0 %v484
    %2457 = vmatpush1.msra.mxu0 %v483
    %2458 = vmatprep.subr.mxu0 %v492
    %2459 = vmatpush1.msra.mxu0 %v491
    %2460 = vmatprep.subr.mxu0 %v500
    %2461 = vmatpush1.msra.mxu0 %v499
    %2462 = vmatprep.subr.mxu0 %v508
    %2463 = vmatpush1.msra.mxu0 %v507
    %2464 = vmatprep.subr.mxu0 %v516
    %2465 = vmatpush1.msra.mxu0 %v515
    %2466 = vmatprep.subr.mxu0 %v524
    %2467 = vmatpush1.msra.mxu0 %v523
    %2468 = vmatprep.subr.mxu0 %v532
    %2469 = vmatpush1.msra.mxu0 %v531
    %2470 = vmatprep.subr.mxu0 %v540
    %2471 = vmatpush1.msra.mxu0 %v539
    %2472 = vmatprep.subr.mxu0 %v548
    %2473 = vmatpush1.msra.mxu0 %v547
    %2474 = vmatprep.subr.mxu0 %v556
    %2475 = vmatpush1.msra.mxu0 %v555
    %2476 = vmatprep.subr.mxu0 %v564
    %2477 = vmatpush1.msra.mxu0 %v563
    %2478 = vmatprep.subr.mxu0 %v572
    %2479 = vmatpush1.msra.mxu0 %v571
    %2480 = vmatprep.subr.mxu0 %v580
    %2481 = vmatpush1.msra.mxu0 %v579
    %2482 = vmatprep.subr.mxu0 %v588
    %2483 = vmatpush1.msra.mxu0 %v587
    %2484 = vmatprep.subr.mxu0 %v596
    %2485 = vmatpush1.msra.mxu0 %v595
    %2486 = vmatprep.subr.mxu0 %v604
    %2487 = vmatpush1.msra.mxu0 %v603
    %2488 = vmatprep.subr.mxu0 %v612
    %2489 = vmatpush1.msra.mxu0 %v611
    %2490 = vmatprep.subr.mxu0 %v620
    %2491 = vmatpush1.msra.mxu0 %v619
    %2492 = vmatprep.subr.mxu0 %v628
    %2493 = vmatpush1.msra.mxu0 %v627
    %2494 = vmatprep.subr.mxu0 %v636
    %2495 = vmatpush1.msra.mxu0 %v635
    %2496 = vmatprep.mubr.f32.mxu0 %v1999
    %2497 = vmatmul.mubr.f32.gmra.mrb[0].mxu0 %v1998
    %v2498 = vpop.f32.mrb[0].mxu0
    %v2499 = vadd.f32 %v1986, %v2498
    %v2500 = vpop.f32.mrb[0].mxu0
    %v2501 = vadd.f32 %v1988, %v2500
    %2502 = vdwg.mxu0
    %2503 = vmatprep.subr.mxu0 %v644
    %2504 = vmatpush1.msra.mxu0 %v643
    %2505 = vmatprep.subr.mxu0 %v652
    %2506 = vmatpush1.msra.mxu0 %v651
    %2507 = vmatprep.subr.mxu0 %v660
    %2508 = vmatpush1.msra.mxu0 %v659
    %2509 = vmatprep.subr.mxu0 %v668
    %2510 = vmatpush1.msra.mxu0 %v667
    %2511 = vmatprep.subr.mxu0 %v676
    %2512 = vmatpush1.msra.mxu0 %v675
    %2513 = vmatprep.subr.mxu0 %v684
    %2514 = vmatpush1.msra.mxu0 %v683
    %2515 = vmatprep.subr.mxu0 %v692
    %2516 = vmatpush1.msra.mxu0 %v691
    %2517 = vmatprep.subr.mxu0 %v700
    %2518 = vmatpush1.msra.mxu0 %v699
    %2519 = vmatprep.subr.mxu0 %v708
    %2520 = vmatpush1.msra.mxu0 %v707
    %2521 = vmatprep.subr.mxu0 %v716
    %2522 = vmatpush1.msra.mxu0 %v715
    %2523 = vmatprep.subr.mxu0 %v724
    %2524 = vmatpush1.msra.mxu0 %v723
    %2525 = vmatprep.subr.mxu0 %v732
    %2526 = vmatpush1.msra.mxu0 %v731
    %2527 = vmatprep.subr.mxu0 %v740
    %2528 = vmatpush1.msra.mxu0 %v739
    %2529 = vmatprep.subr.mxu0 %v748
    %2530 = vmatpush1.msra.mxu0 %v747
    %2531 = vmatprep.subr.mxu0 %v756
    %2532 = vmatpush1.msra.mxu0 %v755
    %2533 = vmatprep.subr.mxu0 %v764
    %2534 = vmatpush1.msra.mxu0 %v763
    %2535 = vmatprep.subr.mxu0 %v772
    %2536 = vmatpush1.msra.mxu0 %v771
    %2537 = vmatprep.subr.mxu0 %v780
    %2538 = vmatpush1.msra.mxu0 %v779
    %2539 = vmatprep.subr.mxu0 %v788
    %2540 = vmatpush1.msra.mxu0 %v787
    %2541 = vmatprep.subr.mxu0 %v796
    %2542 = vmatpush1.msra.mxu0 %v795
    %2543 = vmatprep.subr.mxu0 %v804
    %2544 = vmatpush1.msra.mxu0 %v803
    %2545 = vmatprep.subr.mxu0 %v812
    %2546 = vmatpush1.msra.mxu0 %v811
    %2547 = vmatprep.subr.mxu0 %v820
    %2548 = vmatpush1.msra.mxu0 %v819
    %2549 = vmatprep.subr.mxu0 %v828
    %2550 = vmatpush1.msra.mxu0 %v827
    %2551 = vmatprep.subr.mxu0 %v836
    %2552 = vmatpush1.msra.mxu0 %v835
    %2553 = vmatprep.subr.mxu0 %v844
    %2554 = vmatpush1.msra.mxu0 %v843
    %2555 = vmatprep.subr.mxu0 %v852
    %2556 = vmatpush1.msra.mxu0 %v851
    %2557 = vmatprep.subr.mxu0 %v860
    %2558 = vmatpush1.msra.mxu0 %v859
    %2559 = vmatprep.subr.mxu0 %v868
    %2560 = vmatpush1.msra.mxu0 %v867
    %2561 = vmatprep.subr.mxu0 %v876
    %2562 = vmatpush1.msra.mxu0 %v875
    %2563 = vmatprep.subr.mxu0 %v884
    %2564 = vmatpush1.msra.mxu0 %v883
    %2565 = vmatprep.subr.mxu0 %v892
    %2566 = vmatpush1.msra.mxu0 %v891
    %2567 = vmatprep.mubr.f32.mxu0 %v2001
    %2568 = vmatmul.mubr.f32.gmra.mrb[0].mxu0 %v2000
    %v2569 = vpop.f32.mrb[0].mxu0
    %v2570 = vadd.f32 %v2499, %v2569
    %v2571 = vpop.f32.mrb[0].mxu0
    %v2572 = vadd.f32 %v2501, %v2571
    %2573 = vdwg.mxu0
    %v2574 = vld [vmem:[#allocation5] sm:$0xff]
    %v2576 = vlaneseq
    %v2577 = vshrl.u32 %v2576, 7
    %v2578 = vsub.s32 0, %v2577
    %v2579 = vrot.slane %v2574, %v2578
    %v2580 = vlaneseq
    %v2581 = vshrl.u32 %v2580, 7
    %v2582 = vsub.s32 1, %v2581
    %v2583 = vrot.slane %v2574, %v2582
    %v2584 = vlaneseq
    %v2585 = vshrl.u32 %v2584, 7
    %v2586 = vsub.s32 2, %v2585
    %v2587 = vrot.slane %v2574, %v2586
    %v2588 = vlaneseq
    %v2589 = vshrl.u32 %v2588, 7
    %v2590 = vsub.s32 3, %v2589
    %v2591 = vrot.slane %v2574, %v2590
    %v2592 = vlaneseq
    %v2593 = vshrl.u32 %v2592, 7
    %v2594 = vsub.s32 4, %v2593
    %v2595 = vrot.slane %v2574, %v2594
    %v2596 = vlaneseq
    %v2597 = vshrl.u32 %v2596, 7
    %v2598 = vsub.s32 5, %v2597
    %v2599 = vrot.slane %v2574, %v2598
    %v2600 = vlaneseq
    %v2601 = vshrl.u32 %v2600, 7
    %v2602 = vsub.s32 6, %v2601
    %v2603 = vrot.slane %v2574, %v2602
    %v2604 = vlaneseq
    %v2605 = vshrl.u32 %v2604, 7
    %v2606 = vsub.s32 7, %v2605
    %v2607 = vrot.slane %v2574, %v2606
    %v2616 = vadd.f32 %v2144, %v2579
    %v2617 = vadd.f32 %v2146, %v2583
    %v2618 = vadd.f32 %v2286, %v2587
    %v2619 = vadd.f32 %v2288, %v2591
    %v2620 = vadd.f32 %v2428, %v2595
    %v2621 = vadd.f32 %v2430, %v2599
    %v2622 = vadd.f32 %v2570, %v2603
    %v2623 = vadd.f32 %v2572, %v2607
    %v2624 = vmax.f32 %v2616, 0.0
    %v2625 = vmax.f32 %v2617, 0.0
    %v2626 = vmax.f32 %v2618, 0.0
    %v2627 = vmax.f32 %v2619, 0.0
    %v2628 = vmax.f32 %v2620, 0.0
    %v2629 = vmax.f32 %v2621, 0.0
    %v2630 = vmax.f32 %v2622, 0.0
    %v2631 = vmax.f32 %v2623, 0.0
    %v2632 = vld [vmem:[#allocation7] sm:$0xff]
    %v2633 = vld [vmem:[#allocation7 + $0x8] sm:$0xff]
    %v2634 = vld [vmem:[#allocation7 + $0x10] sm:$0xff]
    %v2635 = vld [vmem:[#allocation7 + $0x18] sm:$0xff]
    %v2636 = vld [vmem:[#allocation7 + $0x20] sm:$0xff]
    %v2637 = vld [vmem:[#allocation7 + $0x28] sm:$0xff]
    %v2638 = vld [vmem:[#allocation7 + $0x30] sm:$0xff]
    %v2639 = vld [vmem:[#allocation7 + $0x38] sm:$0xff]
    %v2640 = vld [vmem:[#allocation7 + $0x40] sm:$0xff]
    %v2641 = vld [vmem:[#allocation7 + $0x48] sm:$0xff]
    %v2642 = vld [vmem:[#allocation7 + $0x50] sm:$0xff]
    %v2643 = vld [vmem:[#allocation7 + $0x58] sm:$0xff]
    %v2644 = vld [vmem:[#allocation7 + $0x60] sm:$0xff]
    %v2645 = vld [vmem:[#allocation7 + $0x68] sm:$0xff]
    %v2646 = vld [vmem:[#allocation7 + $0x70] sm:$0xff]
    %v2647 = vld [vmem:[#allocation7 + $0x78] sm:$0xff]
    %v2648 = vld [vmem:[#allocation7 + $0x80] sm:$0xff]
    %v2649 = vld [vmem:[#allocation7 + $0x88] sm:$0xff]
    %v2650 = vld [vmem:[#allocation7 + $0x90] sm:$0xff]
    %v2651 = vld [vmem:[#allocation7 + $0x98] sm:$0xff]
    %v2652 = vld [vmem:[#allocation7 + $0xa0] sm:$0xff]
    %v2653 = vld [vmem:[#allocation7 + $0xa8] sm:$0xff]
    %v2654 = vld [vmem:[#allocation7 + $0xb0] sm:$0xff]
    %v2655 = vld [vmem:[#allocation7 + $0xb8] sm:$0xff]
    %v2656 = vld [vmem:[#allocation7 + $0xc0] sm:$0xff]
    %v2657 = vld [vmem:[#allocation7 + $0xc8] sm:$0xff]
    %v2658 = vld [vmem:[#allocation7 + $0xd0] sm:$0xff]
    %v2659 = vld [vmem:[#allocation7 + $0xd8] sm:$0xff]
    %v2660 = vld [vmem:[#allocation7 + $0xe0] sm:$0xff]
    %v2661 = vld [vmem:[#allocation7 + $0xe8] sm:$0xff]
    %v2662 = vld [vmem:[#allocation7 + $0xf0] sm:$0xff]
    %v2663 = vld [vmem:[#allocation7 + $0xf8] sm:$0xff]
    %v2664 = vld [vmem:[#allocation7 + $0x100] sm:$0xff]
    %v2665 = vld [vmem:[#allocation7 + $0x108] sm:$0xff]
    %v2666 = vld [vmem:[#allocation7 + $0x110] sm:$0xff]
    %v2667 = vld [vmem:[#allocation7 + $0x118] sm:$0xff]
    %v2668 = vld [vmem:[#allocation7 + $0x120] sm:$0xff]
    %v2669 = vld [vmem:[#allocation7 + $0x128] sm:$0xff]
    %v2670 = vld [vmem:[#allocation7 + $0x130] sm:$0xff]
    %v2671 = vld [vmem:[#allocation7 + $0x138] sm:$0xff]
    %v2672 = vld [vmem:[#allocation7 + $0x140] sm:$0xff]
    %v2673 = vld [vmem:[#allocation7 + $0x148] sm:$0xff]
    %v2674 = vld [vmem:[#allocation7 + $0x150] sm:$0xff]
    %v2675 = vld [vmem:[#allocation7 + $0x158] sm:$0xff]
    %v2676 = vld [vmem:[#allocation7 + $0x160] sm:$0xff]
    %v2677 = vld [vmem:[#allocation7 + $0x168] sm:$0xff]
    %v2678 = vld [vmem:[#allocation7 + $0x170] sm:$0xff]
    %v2679 = vld [vmem:[#allocation7 + $0x178] sm:$0xff]
    %v2680 = vld [vmem:[#allocation7 + $0x180] sm:$0xff]
    %v2681 = vld [vmem:[#allocation7 + $0x188] sm:$0xff]
    %v2682 = vld [vmem:[#allocation7 + $0x190] sm:$0xff]
    %v2683 = vld [vmem:[#allocation7 + $0x198] sm:$0xff]
    %v2684 = vld [vmem:[#allocation7 + $0x1a0] sm:$0xff]
    %v2685 = vld [vmem:[#allocation7 + $0x1a8] sm:$0xff]
    %v2686 = vld [vmem:[#allocation7 + $0x1b0] sm:$0xff]
    %v2687 = vld [vmem:[#allocation7 + $0x1b8] sm:$0xff]
    %v2688 = vld [vmem:[#allocation7 + $0x1c0] sm:$0xff]
    %v2689 = vld [vmem:[#allocation7 + $0x1c8] sm:$0xff]
    %v2690 = vld [vmem:[#allocation7 + $0x1d0] sm:$0xff]
    %v2691 = vld [vmem:[#allocation7 + $0x1d8] sm:$0xff]
    %v2692 = vld [vmem:[#allocation7 + $0x1e0] sm:$0xff]
    %v2693 = vld [vmem:[#allocation7 + $0x1e8] sm:$0xff]
    %v2694 = vld [vmem:[#allocation7 + $0x1f0] sm:$0xff]
    %v2695 = vld [vmem:[#allocation7 + $0x1f8] sm:$0xff]
    %v2696 = vld [vmem:[#allocation7 + $0x200] sm:$0xff]
    %v2697 = vld [vmem:[#allocation7 + $0x208] sm:$0xff]
    %v2698 = vld [vmem:[#allocation7 + $0x210] sm:$0xff]
    %v2699 = vld [vmem:[#allocation7 + $0x218] sm:$0xff]
    %v2700 = vld [vmem:[#allocation7 + $0x220] sm:$0xff]
    %v2701 = vld [vmem:[#allocation7 + $0x228] sm:$0xff]
    %v2702 = vld [vmem:[#allocation7 + $0x230] sm:$0xff]
    %v2703 = vld [vmem:[#allocation7 + $0x238] sm:$0xff]
    %v2704 = vld [vmem:[#allocation7 + $0x240] sm:$0xff]
    %v2705 = vld [vmem:[#allocation7 + $0x248] sm:$0xff]
    %v2706 = vld [vmem:[#allocation7 + $0x250] sm:$0xff]
    %v2707 = vld [vmem:[#allocation7 + $0x258] sm:$0xff]
    %v2708 = vld [vmem:[#allocation7 + $0x260] sm:$0xff]
    %v2709 = vld [vmem:[#allocation7 + $0x268] sm:$0xff]
    %v2710 = vld [vmem:[#allocation7 + $0x270] sm:$0xff]
    %v2711 = vld [vmem:[#allocation7 + $0x278] sm:$0xff]
    %v2712 = vld [vmem:[#allocation7 + $0x280] sm:$0xff]
    %v2713 = vld [vmem:[#allocation7 + $0x288] sm:$0xff]
    %v2714 = vld [vmem:[#allocation7 + $0x290] sm:$0xff]
    %v2715 = vld [vmem:[#allocation7 + $0x298] sm:$0xff]
    %v2716 = vld [vmem:[#allocation7 + $0x2a0] sm:$0xff]
    %v2717 = vld [vmem:[#allocation7 + $0x2a8] sm:$0xff]
    %v2718 = vld [vmem:[#allocation7 + $0x2b0] sm:$0xff]
    %v2719 = vld [vmem:[#allocation7 + $0x2b8] sm:$0xff]
    %v2720 = vld [vmem:[#allocation7 + $0x2c0] sm:$0xff]
    %v2721 = vld [vmem:[#allocation7 + $0x2c8] sm:$0xff]
    %v2722 = vld [vmem:[#allocation7 + $0x2d0] sm:$0xff]
    %v2723 = vld [vmem:[#allocation7 + $0x2d8] sm:$0xff]
    %v2724 = vld [vmem:[#allocation7 + $0x2e0] sm:$0xff]
    %v2725 = vld [vmem:[#allocation7 + $0x2e8] sm:$0xff]
    %v2726 = vld [vmem:[#allocation7 + $0x2f0] sm:$0xff]
    %v2727 = vld [vmem:[#allocation7 + $0x2f8] sm:$0xff]
    %v2728 = vld [vmem:[#allocation7 + $0x300] sm:$0xff]
    %v2729 = vld [vmem:[#allocation7 + $0x308] sm:$0xff]
    %v2730 = vld [vmem:[#allocation7 + $0x310] sm:$0xff]
    %v2731 = vld [vmem:[#allocation7 + $0x318] sm:$0xff]
    %v2732 = vld [vmem:[#allocation7 + $0x320] sm:$0xff]
    %v2733 = vld [vmem:[#allocation7 + $0x328] sm:$0xff]
    %v2734 = vld [vmem:[#allocation7 + $0x330] sm:$0xff]
    %v2735 = vld [vmem:[#allocation7 + $0x338] sm:$0xff]
    %v2736 = vld [vmem:[#allocation7 + $0x340] sm:$0xff]
    %v2737 = vld [vmem:[#allocation7 + $0x348] sm:$0xff]
    %v2738 = vld [vmem:[#allocation7 + $0x350] sm:$0xff]
    %v2739 = vld [vmem:[#allocation7 + $0x358] sm:$0xff]
    %v2740 = vld [vmem:[#allocation7 + $0x360] sm:$0xff]
    %v2741 = vld [vmem:[#allocation7 + $0x368] sm:$0xff]
    %v2742 = vld [vmem:[#allocation7 + $0x370] sm:$0xff]
    %v2743 = vld [vmem:[#allocation7 + $0x378] sm:$0xff]
    %v2744 = vld [vmem:[#allocation7 + $0x380] sm:$0xff]
    %v2745 = vld [vmem:[#allocation7 + $0x388] sm:$0xff]
    %v2746 = vld [vmem:[#allocation7 + $0x390] sm:$0xff]
    %v2747 = vld [vmem:[#allocation7 + $0x398] sm:$0xff]
    %v2748 = vld [vmem:[#allocation7 + $0x3a0] sm:$0xff]
    %v2749 = vld [vmem:[#allocation7 + $0x3a8] sm:$0xff]
    %v2750 = vld [vmem:[#allocation7 + $0x3b0] sm:$0xff]
    %v2751 = vld [vmem:[#allocation7 + $0x3b8] sm:$0xff]
    %v2752 = vld [vmem:[#allocation7 + $0x3c0] sm:$0xff]
    %v2753 = vld [vmem:[#allocation7 + $0x3c8] sm:$0xff]
    %v2754 = vld [vmem:[#allocation7 + $0x3d0] sm:$0xff]
    %v2755 = vld [vmem:[#allocation7 + $0x3d8] sm:$0xff]
    %v2756 = vld [vmem:[#allocation7 + $0x3e0] sm:$0xff]
    %v2757 = vld [vmem:[#allocation7 + $0x3e8] sm:$0xff]
    %v2758 = vld [vmem:[#allocation7 + $0x3f0] sm:$0xff]
    %v2759 = vld [vmem:[#allocation7 + $0x3f8] sm:$0xff]
    %2760 = vmatprep.subr.mxu0 0.0
    %2761 = vmatpush1.msra.mxu0 %v2632
    %2762 = vmatprep.subr.mxu0 0.0
    %2763 = vmatpush1.msra.mxu0 %v2633
    %2764 = vmatprep.subr.mxu0 0.0
    %2765 = vmatpush1.msra.mxu0 %v2634
    %2766 = vmatprep.subr.mxu0 0.0
    %2767 = vmatpush1.msra.mxu0 %v2635
    %2768 = vmatprep.subr.mxu0 0.0
    %2769 = vmatpush1.msra.mxu0 %v2636
    %2770 = vmatprep.subr.mxu0 0.0
    %2771 = vmatpush1.msra.mxu0 %v2637
    %2772 = vmatprep.subr.mxu0 0.0
    %2773 = vmatpush1.msra.mxu0 %v2638
    %2774 = vmatprep.subr.mxu0 0.0
    %2775 = vmatpush1.msra.mxu0 %v2639
    %2776 = vmatprep.subr.mxu0 0.0
    %2777 = vmatpush1.msra.mxu0 %v2640
    %2778 = vmatprep.subr.mxu0 0.0
    %2779 = vmatpush1.msra.mxu0 %v2641
    %2780 = vmatprep.subr.mxu0 0.0
    %2781 = vmatpush1.msra.mxu0 %v2642
    %2782 = vmatprep.subr.mxu0 0.0
    %2783 = vmatpush1.msra.mxu0 %v2643
    %2784 = vmatprep.subr.mxu0 0.0
    %2785 = vmatpush1.msra.mxu0 %v2644
    %2786 = vmatprep.subr.mxu0 0.0
    %2787 = vmatpush1.msra.mxu0 %v2645
    %2788 = vmatprep.subr.mxu0 0.0
    %2789 = vmatpush1.msra.mxu0 %v2646
    %2790 = vmatprep.subr.mxu0 0.0
    %2791 = vmatpush1.msra.mxu0 %v2647
    %2792 = vmatprep.subr.mxu0 0.0
    %2793 = vmatpush1.msra.mxu0 %v2648
    %2794 = vmatprep.subr.mxu0 0.0
    %2795 = vmatpush1.msra.mxu0 %v2649
    %2796 = vmatprep.subr.mxu0 0.0
    %2797 = vmatpush1.msra.mxu0 %v2650
    %2798 = vmatprep.subr.mxu0 0.0
    %2799 = vmatpush1.msra.mxu0 %v2651
    %2800 = vmatprep.subr.mxu0 0.0
    %2801 = vmatpush1.msra.mxu0 %v2652
    %2802 = vmatprep.subr.mxu0 0.0
    %2803 = vmatpush1.msra.mxu0 %v2653
    %2804 = vmatprep.subr.mxu0 0.0
    %2805 = vmatpush1.msra.mxu0 %v2654
    %2806 = vmatprep.subr.mxu0 0.0
    %2807 = vmatpush1.msra.mxu0 %v2655
    %2808 = vmatprep.subr.mxu0 0.0
    %2809 = vmatpush1.msra.mxu0 %v2656
    %2810 = vmatprep.subr.mxu0 0.0
    %2811 = vmatpush1.msra.mxu0 %v2657
    %2812 = vmatprep.subr.mxu0 0.0
    %2813 = vmatpush1.msra.mxu0 %v2658
    %2814 = vmatprep.subr.mxu0 0.0
    %2815 = vmatpush1.msra.mxu0 %v2659
    %2816 = vmatprep.subr.mxu0 0.0
    %2817 = vmatpush1.msra.mxu0 %v2660
    %2818 = vmatprep.subr.mxu0 0.0
    %2819 = vmatpush1.msra.mxu0 %v2661
    %2820 = vmatprep.subr.mxu0 0.0
    %2821 = vmatpush1.msra.mxu0 %v2662
    %2822 = vmatprep.subr.mxu0 0.0
    %2823 = vmatpush1.msra.mxu0 %v2663
    %2824 = vmatprep.mubr.f32.mxu0 %v2625
    %2825 = vmatmul.mubr.f32.gmra.mrb[0].mxu0 %v2624
    %v2826 = vpop.f32.mrb[0].mxu0
    %v2827 = vadd.f32 0.0, %v2826
    %v2828 = vpop.f32.mrb[0].mxu0
    %2829 = vdwg.mxu0
    %2830 = vmatprep.subr.mxu0 0.0
    %2831 = vmatpush1.msra.mxu0 %v2664
    %2832 = vmatprep.subr.mxu0 0.0
    %2833 = vmatpush1.msra.mxu0 %v2665
    %2834 = vmatprep.subr.mxu0 0.0
    %2835 = vmatpush1.msra.mxu0 %v2666
    %2836 = vmatprep.subr.mxu0 0.0
    %2837 = vmatpush1.msra.mxu0 %v2667
    %2838 = vmatprep.subr.mxu0 0.0
    %2839 = vmatpush1.msra.mxu0 %v2668
    %2840 = vmatprep.subr.mxu0 0.0
    %2841 = vmatpush1.msra.mxu0 %v2669
    %2842 = vmatprep.subr.mxu0 0.0
    %2843 = vmatpush1.msra.mxu0 %v2670
    %2844 = vmatprep.subr.mxu0 0.0
    %2845 = vmatpush1.msra.mxu0 %v2671
    %2846 = vmatprep.subr.mxu0 0.0
    %2847 = vmatpush1.msra.mxu0 %v2672
    %2848 = vmatprep.subr.mxu0 0.0
    %2849 = vmatpush1.msra.mxu0 %v2673
    %2850 = vmatprep.subr.mxu0 0.0
    %2851 = vmatpush1.msra.mxu0 %v2674
    %2852 = vmatprep.subr.mxu0 0.0
    %2853 = vmatpush1.msra.mxu0 %v2675
    %2854 = vmatprep.subr.mxu0 0.0
    %2855 = vmatpush1.msra.mxu0 %v2676
    %2856 = vmatprep.subr.mxu0 0.0
    %2857 = vmatpush1.msra.mxu0 %v2677
    %2858 = vmatprep.subr.mxu0 0.0
    %2859 = vmatpush1.msra.mxu0 %v2678
    %2860 = vmatprep.subr.mxu0 0.0
    %2861 = vmatpush1.msra.mxu0 %v2679
    %2862 = vmatprep.subr.mxu0 0.0
    %2863 = vmatpush1.msra.mxu0 %v2680
    %2864 = vmatprep.subr.mxu0 0.0
    %2865 = vmatpush1.msra.mxu0 %v2681
    %2866 = vmatprep.subr.mxu0 0.0
    %2867 = vmatpush1.msra.mxu0 %v2682
    %2868 = vmatprep.subr.mxu0 0.0
    %2869 = vmatpush1.msra.mxu0 %v2683
    %2870 = vmatprep.subr.mxu0 0.0
    %2871 = vmatpush1.msra.mxu0 %v2684
    %2872 = vmatprep.subr.mxu0 0.0
    %2873 = vmatpush1.msra.mxu0 %v2685
    %2874 = vmatprep.subr.mxu0 0.0
    %2875 = vmatpush1.msra.mxu0 %v2686
    %2876 = vmatprep.subr.mxu0 0.0
    %2877 = vmatpush1.msra.mxu0 %v2687
    %2878 = vmatprep.subr.mxu0 0.0
    %2879 = vmatpush1.msra.mxu0 %v2688
    %2880 = vmatprep.subr.mxu0 0.0
    %2881 = vmatpush1.msra.mxu0 %v2689
    %2882 = vmatprep.subr.mxu0 0.0
    %2883 = vmatpush1.msra.mxu0 %v2690
    %2884 = vmatprep.subr.mxu0 0.0
    %2885 = vmatpush1.msra.mxu0 %v2691
    %2886 = vmatprep.subr.mxu0 0.0
    %2887 = vmatpush1.msra.mxu0 %v2692
    %2888 = vmatprep.subr.mxu0 0.0
    %2889 = vmatpush1.msra.mxu0 %v2693
    %2890 = vmatprep.subr.mxu0 0.0
    %2891 = vmatpush1.msra.mxu0 %v2694
    %2892 = vmatprep.subr.mxu0 0.0
    %2893 = vmatpush1.msra.mxu0 %v2695
    %2894 = vmatprep.mubr.f32.mxu0 %v2627
    %2895 = vmatmul.mubr.f32.gmra.mrb[0].mxu0 %v2626
    %v2896 = vpop.f32.mrb[0].mxu0
    %v2897 = vadd.f32 %v2827, %v2896
    %v2898 = vpop.f32.mrb[0].mxu0
    %2899 = vdwg.mxu0
    %2900 = vmatprep.subr.mxu0 0.0
    %2901 = vmatpush1.msra.mxu0 %v2696
    %2902 = vmatprep.subr.mxu0 0.0
    %2903 = vmatpush1.msra.mxu0 %v2697
    %2904 = vmatprep.subr.mxu0 0.0
    %2905 = vmatpush1.msra.mxu0 %v2698
    %2906 = vmatprep.subr.mxu0 0.0
    %2907 = vmatpush1.msra.mxu0 %v2699
    %2908 = vmatprep.subr.mxu0 0.0
    %2909 = vmatpush1.msra.mxu0 %v2700
    %2910 = vmatprep.subr.mxu0 0.0
    %2911 = vmatpush1.msra.mxu0 %v2701
    %2912 = vmatprep.subr.mxu0 0.0
    %2913 = vmatpush1.msra.mxu0 %v2702
    %2914 = vmatprep.subr.mxu0 0.0
    %2915 = vmatpush1.msra.mxu0 %v2703
    %2916 = vmatprep.subr.mxu0 0.0
    %2917 = vmatpush1.msra.mxu0 %v2704
    %2918 = vmatprep.subr.mxu0 0.0
    %2919 = vmatpush1.msra.mxu0 %v2705
    %2920 = vmatprep.subr.mxu0 0.0
    %2921 = vmatpush1.msra.mxu0 %v2706
    %2922 = vmatprep.subr.mxu0 0.0
    %2923 = vmatpush1.msra.mxu0 %v2707
    %2924 = vmatprep.subr.mxu0 0.0
    %2925 = vmatpush1.msra.mxu0 %v2708
    %2926 = vmatprep.subr.mxu0 0.0
    %2927 = vmatpush1.msra.mxu0 %v2709
    %2928 = vmatprep.subr.mxu0 0.0
    %2929 = vmatpush1.msra.mxu0 %v2710
    %2930 = vmatprep.subr.mxu0 0.0
    %2931 = vmatpush1.msra.mxu0 %v2711
    %2932 = vmatprep.subr.mxu0 0.0
    %2933 = vmatpush1.msra.mxu0 %v2712
    %2934 = vmatprep.subr.mxu0 0.0
    %2935 = vmatpush1.msra.mxu0 %v2713
    %2936 = vmatprep.subr.mxu0 0.0
    %2937 = vmatpush1.msra.mxu0 %v2714
    %2938 = vmatprep.subr.mxu0 0.0
    %2939 = vmatpush1.msra.mxu0 %v2715
    %2940 = vmatprep.subr.mxu0 0.0
    %2941 = vmatpush1.msra.mxu0 %v2716
    %2942 = vmatprep.subr.mxu0 0.0
    %2943 = vmatpush1.msra.mxu0 %v2717
    %2944 = vmatprep.subr.mxu0 0.0
    %2945 = vmatpush1.msra.mxu0 %v2718
    %2946 = vmatprep.subr.mxu0 0.0
    %2947 = vmatpush1.msra.mxu0 %v2719
    %2948 = vmatprep.subr.mxu0 0.0
    %2949 = vmatpush1.msra.mxu0 %v2720
    %2950 = vmatprep.subr.mxu0 0.0
    %2951 = vmatpush1.msra.mxu0 %v2721
    %2952 = vmatprep.subr.mxu0 0.0
    %2953 = vmatpush1.msra.mxu0 %v2722
    %2954 = vmatprep.subr.mxu0 0.0
    %2955 = vmatpush1.msra.mxu0 %v2723
    %2956 = vmatprep.subr.mxu0 0.0
    %2957 = vmatpush1.msra.mxu0 %v2724
    %2958 = vmatprep.subr.mxu0 0.0
    %2959 = vmatpush1.msra.mxu0 %v2725
    %2960 = vmatprep.subr.mxu0 0.0
    %2961 = vmatpush1.msra.mxu0 %v2726
    %2962 = vmatprep.subr.mxu0 0.0
    %2963 = vmatpush1.msra.mxu0 %v2727
    %2964 = vmatprep.mubr.f32.mxu0 %v2629
    %2965 = vmatmul.mubr.f32.gmra.mrb[0].mxu0 %v2628
    %v2966 = vpop.f32.mrb[0].mxu0
    %v2967 = vadd.f32 %v2897, %v2966
    %v2968 = vpop.f32.mrb[0].mxu0
    %2969 = vdwg.mxu0
    %2970 = vmatprep.subr.mxu0 0.0
    %2971 = vmatpush1.msra.mxu0 %v2728
    %2972 = vmatprep.subr.mxu0 0.0
    %2973 = vmatpush1.msra.mxu0 %v2729
    %2974 = vmatprep.subr.mxu0 0.0
    %2975 = vmatpush1.msra.mxu0 %v2730
    %2976 = vmatprep.subr.mxu0 0.0
    %2977 = vmatpush1.msra.mxu0 %v2731
    %2978 = vmatprep.subr.mxu0 0.0
    %2979 = vmatpush1.msra.mxu0 %v2732
    %2980 = vmatprep.subr.mxu0 0.0
    %2981 = vmatpush1.msra.mxu0 %v2733
    %2982 = vmatprep.subr.mxu0 0.0
    %2983 = vmatpush1.msra.mxu0 %v2734
    %2984 = vmatprep.subr.mxu0 0.0
    %2985 = vmatpush1.msra.mxu0 %v2735
    %2986 = vmatprep.subr.mxu0 0.0
    %2987 = vmatpush1.msra.mxu0 %v2736
    %2988 = vmatprep.subr.mxu0 0.0
    %2989 = vmatpush1.msra.mxu0 %v2737
    %2990 = vmatprep.subr.mxu0 0.0
    %2991 = vmatpush1.msra.mxu0 %v2738
    %2992 = vmatprep.subr.mxu0 0.0
    %2993 = vmatpush1.msra.mxu0 %v2739
    %2994 = vmatprep.subr.mxu0 0.0
    %2995 = vmatpush1.msra.mxu0 %v2740
    %2996 = vmatprep.subr.mxu0 0.0
    %2997 = vmatpush1.msra.mxu0 %v2741
    %2998 = vmatprep.subr.mxu0 0.0
    %2999 = vmatpush1.msra.mxu0 %v2742
    %3000 = vmatprep.subr.mxu0 0.0
    %3001 = vmatpush1.msra.mxu0 %v2743
    %3002 = vmatprep.subr.mxu0 0.0
    %3003 = vmatpush1.msra.mxu0 %v2744
    %3004 = vmatprep.subr.mxu0 0.0
    %3005 = vmatpush1.msra.mxu0 %v2745
    %3006 = vmatprep.subr.mxu0 0.0
    %3007 = vmatpush1.msra.mxu0 %v2746
    %3008 = vmatprep.subr.mxu0 0.0
    %3009 = vmatpush1.msra.mxu0 %v2747
    %3010 = vmatprep.subr.mxu0 0.0
    %3011 = vmatpush1.msra.mxu0 %v2748
    %3012 = vmatprep.subr.mxu0 0.0
    %3013 = vmatpush1.msra.mxu0 %v2749
    %3014 = vmatprep.subr.mxu0 0.0
    %3015 = vmatpush1.msra.mxu0 %v2750
    %3016 = vmatprep.subr.mxu0 0.0
    %3017 = vmatpush1.msra.mxu0 %v2751
    %3018 = vmatprep.subr.mxu0 0.0
    %3019 = vmatpush1.msra.mxu0 %v2752
    %3020 = vmatprep.subr.mxu0 0.0
    %3021 = vmatpush1.msra.mxu0 %v2753
    %3022 = vmatprep.subr.mxu0 0.0
    %3023 = vmatpush1.msra.mxu0 %v2754
    %3024 = vmatprep.subr.mxu0 0.0
    %3025 = vmatpush1.msra.mxu0 %v2755
    %3026 = vmatprep.subr.mxu0 0.0
    %3027 = vmatpush1.msra.mxu0 %v2756
    %3028 = vmatprep.subr.mxu0 0.0
    %3029 = vmatpush1.msra.mxu0 %v2757
    %3030 = vmatprep.subr.mxu0 0.0
    %3031 = vmatpush1.msra.mxu0 %v2758
    %3032 = vmatprep.subr.mxu0 0.0
    %3033 = vmatpush1.msra.mxu0 %v2759
    %3034 = vmatprep.mubr.f32.mxu0 %v2631
    %3035 = vmatmul.mubr.f32.gmra.mrb[0].mxu0 %v2630
    %v3036 = vpop.f32.mrb[0].mxu0
    %v3037 = vadd.f32 %v2967, %v3036
    %v3038 = vpop.f32.mrb[0].mxu0
    %3039 = vdwg.mxu0
    %3040 = vst [vmem:[#allocation8] sm:$0x3] %v3037
    // Predicated region
    $region34: #{tpu_custom_call.1} parent=1 // pred_check
      _
    $region35: #{tpu_custom_call.1} parent=1 // pred_check_branch
      %3042 = sbr.rel (0) target = $region37
    $region36: #{tpu_custom_call.1} parent=1 // pred_region
      %s3044 = ssub.s32 32, 32
      %3045 = vsyncadd [#allocation4], %s3044
      %s3047 = sshll.u32 [#allocation8], 4
      %s3048 = int_to_ptr.vmem [resolvable:$true] %s3047
      %3050 = dma.vmem_to_hbm [thread:$0]  %s3048, 32, %s5, [#allocation4]
    $region37: #{tpu_custom_call.1} parent=1 // pred_fallthru
      _
    // Predicated region
    $region38: #{tpu_custom_call.1} parent=1 // pred_check
      _
    $region39: #{tpu_custom_call.1} parent=1 // pred_check_branch
      %3052 = sbr.rel (0) target = $region41
    $region40: #{tpu_custom_call.1} parent=1 // pred_region
      %3053 = dma.done [#allocation4], 32
    $region41: #{tpu_custom_call.1} parent=1 // pred_fallthru
      _
    %3054 = vsyncpa [#allocation3], 1
    %3055 = vsyncpa [#allocation6], 1
    %3056 = vsyncpa [#allocation4], 1

</llo_original>
